<compile_context>
chip_gen: v7x
topology: tpu7x:2x2x1
jax: 0.10.0
libtpu: 0.0.40
codegen_flags: <defaults>
</compile_context>

<pallas_src>
import functools
import math

import numpy as np
import jax
import jax.numpy as jnp
from jax.experimental import pallas as pl
from jax.experimental.pallas import tpu as pltpu

# -------- configuration (mirrors args / __init__ of the PyTorch module) ----
MODALITY_DIM = 20          # modality_dim
D_L          = 32          # args.d_l
NUM_HEADS    = 4           # args.num_heads
LAYERS       = 2           # args.layers
GRANS        = 4           # grans
HEAD_DIM     = D_L // NUM_HEADS
FFN_DIM      = 4 * D_L
EPS          = 1e-5        # LayerNorm eps (PyTorch default)


# ------------------------------ helpers ------------------------------------
def _layer_norm(x, g, b):
    mu = jnp.mean(x, axis=-1, keepdims=True)
    var = jnp.mean(jnp.square(x - mu), axis=-1, keepdims=True)
    return (x - mu) * jax.lax.rsqrt(var + EPS) * g + b


def sinusoidal_pos_emb(seq_len, dim):
    # MulT SinusoidalPositionalEmbedding rows for positions 1..T (padding_idx=0).
    # TODO(synk): exact-zero "padding token" detection from the conv output is not
    # reproduced; real-valued conv outputs are assumed non-zero (no padded frames).
    half = dim // 2
    emb = math.log(10000.0) / (half - 1)
    freqs = jnp.exp(jnp.arange(half, dtype=jnp.float32) * -emb)
    pos = jnp.arange(1, seq_len + 1, dtype=jnp.float32)[:, None] * freqs[None, :]
    table = jnp.concatenate([jnp.sin(pos), jnp.cos(pos)], axis=1)
    if dim % 2 == 1:
        table = jnp.concatenate([table, jnp.zeros((seq_len, 1), jnp.float32)], axis=1)
    return table.astype(jnp.float32)          # (T, D)


# ------------------------------ fused kernel --------------------------------
def fused_forward_kernel(feas_ref, conv_w_ref, pos_ref,
                         wq_ref, bq_ref, wk_ref, bk_ref, wv_ref, bv_ref,
                         wo_ref, bo_ref, g0_ref, be0_ref,
                         w1_ref, b1_ref, w2_ref, b2_ref, g1_ref, be1_ref,
                         lng_ref, lnb_ref,
                         out_ref, *, embed_scale):
    """Entire Audio_Video_network forward for the whole batch in one program."""
    B, T, M = feas_ref.shape
    BT = B * T
    D = pos_ref.shape[-1]

    # ---- Conv1d(k=3, stride=1, pad=1, no bias), flattened over the batch ----
    xf = feas_ref[...].reshape(BT, M)                                   # (BT, M)
    w = conv_w_ref[...]                                                 # (3, M, D)
    a  = jnp.dot(xf, w[0], preferred_element_type=jnp.float32)          # tap k=0 (left)
    c0 = jnp.dot(xf, w[1], preferred_element_type=jnp.float32)          # tap k=1 (center)
    c2 = jnp.dot(xf, w[2], preferred_element_type=jnp.float32)          # tap k=2 (right)

    # per-sequence time index (avoids cross-batch leakage through the flat roll)
    tpos = jax.lax.broadcasted_iota(jnp.int32, (B, T, D), 1).reshape(BT, D)
    left  = jnp.where(tpos == 0,     0.0, pltpu.roll(a,  shift=1,      axis=0))
    right = jnp.where(tpos == T - 1, 0.0, pltpu.roll(c2, shift=BT - 1, axis=0))
    conv = left + c0 + right                                            # (BT, D)

    # sqrt(D) embedding scale + sinusoidal positions
    x = (conv.reshape(B, T, D) * embed_scale + pos_ref[...][None]).reshape(BT, D)

    # ---- MulT pre-norm encoder layers (static unrolled loop) ----
    for l in range(LAYERS):
        # --- self attention block (pre-LN) ---
        xn = _layer_norm(x, g0_ref[l], be0_ref[l])                      # (BT, D)
        q = (jnp.dot(xn, wq_ref[l], preferred_element_type=jnp.float32)
             + bq_ref[l]) * (HEAD_DIM ** -0.5)
        k = jnp.dot(xn, wk_ref[l], preferred_element_type=jnp.float32) + bk_ref[l]
        v = jnp.dot(xn, wv_ref[l], preferred_element_type=jnp.float32) + bv_ref[l]
        q3 = q.reshape(B, T, D)
        k3 = k.reshape(B, T, D)
        v3 = v.reshape(B, T, D)

        ctx_heads = []
        for h in range(NUM_HEADS):
            lo = h * HEAD_DIM
            hi = lo + HEAD_DIM
            qh, kh, vh = q3[:, :, lo:hi], k3[:, :, lo:hi], v3[:, :, lo:hi]
            # batched over B: (B,T,hd) x (B,T,hd) -> (B,T,T)
            s = jnp.einsum('btd,bsd->bts', qh, kh,
                           preferred_element_type=jnp.float32)
            s = s - jnp.max(s, axis=-1, keepdims=True)
            p = jnp.exp(s)
            p = p * pl.reciprocal(jnp.sum(p, axis=-1, keepdims=True), approx=True)
            ctx_heads.append(jnp.einsum('bts,bsd->btd', p, vh,
                                        preferred_element_type=jnp.float32))
        # single output projection against the full W_o
        ctx = jnp.concatenate(ctx_heads, axis=-1).reshape(BT, D)        # (BT, D)
        x = x + jnp.dot(ctx, wo_ref[l], preferred_element_type=jnp.float32) + bo_ref[l]

        # --- feed-forward block (pre-LN) ---
        xn2 = _layer_norm(x, g1_ref[l], be1_ref[l])
        h1 = jnp.maximum(
            jnp.dot(xn2, w1_ref[l], preferred_element_type=jnp.float32) + b1_ref[l],
            0.0)
        x = x + jnp.dot(h1, w2_ref[l], preferred_element_type=jnp.float32) + b2_ref[l]

    # ---- final encoder LayerNorm + AdaptiveMaxPool1d(GRANS) / AdaptiveMaxPool1d(1) ----
    xn = _layer_norm(x, lng_ref[...], lnb_ref[...]).reshape(B, T, D)
    fine_bins = []
    for i in range(GRANS):
        s = (i * T) // GRANS
        e = -((-(i + 1) * T) // GRANS)                                  # ceil
        fine_bins.append(jnp.max(xn[:, s:e, :], axis=1, keepdims=True))
    fine = jnp.concatenate(fine_bins, axis=1)                           # (B, GRANS, D)
    # the GRANS bins tile [0, T): the global max is the max over the bin maxes
    coarse = jnp.max(fine, axis=1, keepdims=True)                       # (B, 1, D)
    out_ref[...] = jnp.concatenate([coarse, fine], axis=1)              # (B, GRANS+1, D)


# ------------------------------ wrapper --------------------------------------
def audio_video_network_forward(feas, params):
    """feas: (B, T, modality_dim)  ->  (coarse (B, d_l), fine (B, d_l, grans))."""
    B, T, _ = feas.shape
    kernel = functools.partial(fused_forward_kernel,
                               embed_scale=params['embed_scale'])
    # Single program, no grid: every array is a whole-block VMEM resident.
    out = pl.pallas_call(
        kernel,
        out_shape=jax.ShapeDtypeStruct((B, GRANS + 1, D_L), jnp.float32),
    )(feas, params['conv_w'], params['pos'],
      params['wq'], params['bq'], params['wk'], params['bk'],
      params['wv'], params['bv'], params['wo'], params['bo'],
      params['g0'], params['be0'], params['w1'], params['b1'],
      params['w2'], params['b2'], params['g1'], params['be1'],
      params['ln_g'], params['ln_b'])
    coarse = out[:, 0, :]                                   # (B, d_l)
    fine = jnp.transpose(out[:, 1:, :], (0, 2, 1))          # (B, d_l, grans)
    return coarse, fine


# -------------------------- deterministic params ----------------------------
def init_params(key, seq_len):
    def nrm(k, shape, scale=0.05):
        return scale * jax.random.normal(k, shape, dtype=jnp.float32)

    keys = iter(jax.random.split(key, 32))
    L = LAYERS
    return {
        'conv_w': nrm(next(keys), (3, MODALITY_DIM, D_L)),   # (k, Cin, Cout)
        'pos': sinusoidal_pos_emb(seq_len, D_L),
        'embed_scale': float(math.sqrt(D_L)),
        'ln_g': jnp.ones((1, D_L), jnp.float32),
        'ln_b': jnp.zeros((1, D_L), jnp.float32),
        # per-layer params stacked on a leading LAYERS axis
        'wq': nrm(next(keys), (L, D_L, D_L)), 'bq': nrm(next(keys), (L, 1, D_L)),
        'wk': nrm(next(keys), (L, D_L, D_L)), 'bk': nrm(next(keys), (L, 1, D_L)),
        'wv': nrm(next(keys), (L, D_L, D_L)), 'bv': nrm(next(keys), (L, 1, D_L)),
        'wo': nrm(next(keys), (L, D_L, D_L)), 'bo': nrm(next(keys), (L, 1, D_L)),
        'g0': jnp.ones((L, 1, D_L), jnp.float32), 'be0': jnp.zeros((L, 1, D_L), jnp.float32),
        'w1': nrm(next(keys), (L, D_L, FFN_DIM)), 'b1': nrm(next(keys), (L, 1, FFN_DIM)),
        'w2': nrm(next(keys), (L, FFN_DIM, D_L)), 'b2': nrm(next(keys), (L, 1, D_L)),
        'g1': jnp.ones((L, 1, D_L), jnp.float32), 'be1': jnp.zeros((L, 1, D_L), jnp.float32),
    }


# ---------------------------- pure-JAX reference -----------------------------
def reference_forward(feas, params):
    B, T, _ = feas.shape
    w = params['conv_w']
    xp = jnp.pad(feas, ((0, 0), (1, 1), (0, 0)))
    conv = (jnp.einsum('btm,md->btd', xp[:, 0:T], w[0]) +
            jnp.einsum('btm,md->btd', xp[:, 1:T + 1], w[1]) +
            jnp.einsum('btm,md->btd', xp[:, 2:T + 2], w[2]))
    x = conv * params['embed_scale'] + params['pos'][None]

    def ln(y, g, b):
        mu = y.mean(-1, keepdims=True)
        var = ((y - mu) ** 2).mean(-1, keepdims=True)
        return (y - mu) / jnp.sqrt(var + EPS) * g + b

    for l in range(LAYERS):
        xn = ln(x, params['g0'][l], params['be0'][l])
        q = (xn @ params['wq'][l] + params['bq'][l]) * HEAD_DIM ** -0.5
        k = xn @ params['wk'][l] + params['bk'][l]
        v = xn @ params['wv'][l] + params['bv'][l]
        qh = q.reshape(B, T, NUM_HEADS, HEAD_DIM)
        kh = k.reshape(B, T, NUM_HEADS, HEAD_DIM)
        vh = v.reshape(B, T, NUM_HEADS, HEAD_DIM)
        s = jnp.einsum('bthd,bshd->bhts', qh, kh)
        a = jax.nn.softmax(s, axis=-1)
        ctx = jnp.einsum('bhts,bshd->bthd', a, vh).reshape(B, T, D_L)
        x = x + ctx @ params['wo'][l] + params['bo'][l]
        xn2 = ln(x, params['g1'][l], params['be1'][l])
        h = jax.nn.relu(xn2 @ params['w1'][l] + params['b1'][l])
        x = x + h @ params['w2'][l] + params['b2'][l]
    xn = ln(x, params['ln_g'], params['ln_b'])
    coarse = xn.max(axis=1)
    bins = []
    for i in range(GRANS):
        s_ = (i * T) // GRANS
        e_ = -((-(i + 1) * T) // GRANS)
        bins.append(xn[:, s_:e_].max(axis=1))
    fine = jnp.stack(bins, axis=-1)
    return coarse, fine


# ------------------------------------ main -----------------------------------
if __name__ == "__main__":
    B, T = 2, 8
    key = jax.random.PRNGKey(0)
    kx, kp = jax.random.split(key)
    feas = jax.random.normal(kx, (B, T, MODALITY_DIM), dtype=jnp.float32)
    params = init_params(kp, T)

    coarse, fine = audio_video_network_forward(feas, params)
    (coarse, fine) = jax.block_until_ready((coarse, fine))

    assert coarse.shape == (B, D_L)
    assert fine.shape == (B, D_L, GRANS)

    rc, rf = reference_forward(feas, params)
    np.testing.assert_allclose(np.asarray(coarse), np.asarray(rc), rtol=1e-2, atol=1e-2)
    np.testing.assert_allclose(np.asarray(fine), np.asarray(rf), rtol=1e-2, atol=1e-2)

    print("KERNEL_OK")
</pallas_src>

<mosaic_0001>
module attributes {stable_mosaic.version = 11 : i64} {
  func.func @fused_forward_kernel(%arg0: memref<2x8x20xf32, #tpu.memory_space<vmem>>, %arg1: memref<3x20x32xf32, #tpu.memory_space<vmem>>, %arg2: memref<8x32xf32, #tpu.memory_space<vmem>>, %arg3: memref<2x32x32xf32, #tpu.memory_space<vmem>>, %arg4: memref<2x1x32xf32, #tpu.memory_space<vmem>>, %arg5: memref<2x32x32xf32, #tpu.memory_space<vmem>>, %arg6: memref<2x1x32xf32, #tpu.memory_space<vmem>>, %arg7: memref<2x32x32xf32, #tpu.memory_space<vmem>>, %arg8: memref<2x1x32xf32, #tpu.memory_space<vmem>>, %arg9: memref<2x32x32xf32, #tpu.memory_space<vmem>>, %arg10: memref<2x1x32xf32, #tpu.memory_space<vmem>>, %arg11: memref<2x1x32xf32, #tpu.memory_space<vmem>>, %arg12: memref<2x1x32xf32, #tpu.memory_space<vmem>>, %arg13: memref<2x32x128xf32, #tpu.memory_space<vmem>>, %arg14: memref<2x1x128xf32, #tpu.memory_space<vmem>>, %arg15: memref<2x128x32xf32, #tpu.memory_space<vmem>>, %arg16: memref<2x1x32xf32, #tpu.memory_space<vmem>>, %arg17: memref<2x1x32xf32, #tpu.memory_space<vmem>>, %arg18: memref<2x1x32xf32, #tpu.memory_space<vmem>>, %arg19: memref<1x32xf32, #tpu.memory_space<vmem>>, %arg20: memref<1x32xf32, #tpu.memory_space<vmem>>, %arg21: memref<2x5x32xf32, #tpu.memory_space<vmem>>) attributes {dimension_semantics = [], scalar_prefetch = 0 : i64, scratch_operands = 0 : i64, tpu.core_type = #tpu.core_type<tc>} {
    %c0 = arith.constant 0 : index
    %c0_0 = arith.constant 0 : index
    %c0_1 = arith.constant 0 : index
    %0 = vector.load %arg0[%c0, %c0_0, %c0_1] : memref<2x8x20xf32, #tpu.memory_space<vmem>>, vector<2x8x20xf32>
    %1 = vector.shape_cast %0 : vector<2x8x20xf32> to vector<16x20xf32>
    %c0_2 = arith.constant 0 : index
    %c0_3 = arith.constant 0 : index
    %c0_4 = arith.constant 0 : index
    %2 = vector.load %arg1[%c0_2, %c0_3, %c0_4] : memref<3x20x32xf32, #tpu.memory_space<vmem>>, vector<3x20x32xf32>
    %3 = vector.extract_strided_slice %2 {offsets = [0, 0, 0], sizes = [1, 20, 32], strides = [1, 1, 1]} : vector<3x20x32xf32> to vector<1x20x32xf32>
    %4 = vector.shape_cast %3 : vector<1x20x32xf32> to vector<20x32xf32>
    %cst = arith.constant dense<0.000000e+00> : vector<16x32xf32>
    %5 = tpu.matmul %1, %4, %cst {dimension_numbers = #tpu.dot_dimension_numbers<[1], [0], [0], [1], [0, 0, 1, 1], [], []>} : vector<16x20xf32>, vector<20x32xf32>, vector<16x32xf32> -> vector<16x32xf32>
    %6 = vector.extract_strided_slice %2 {offsets = [1, 0, 0], sizes = [1, 20, 32], strides = [1, 1, 1]} : vector<3x20x32xf32> to vector<1x20x32xf32>
    %7 = vector.shape_cast %6 : vector<1x20x32xf32> to vector<20x32xf32>
    %cst_5 = arith.constant dense<0.000000e+00> : vector<16x32xf32>
    %8 = tpu.matmul %1, %7, %cst_5 {dimension_numbers = #tpu.dot_dimension_numbers<[1], [0], [0], [1], [0, 0, 1, 1], [], []>} : vector<16x20xf32>, vector<20x32xf32>, vector<16x32xf32> -> vector<16x32xf32>
    %9 = vector.extract_strided_slice %2 {offsets = [2, 0, 0], sizes = [1, 20, 32], strides = [1, 1, 1]} : vector<3x20x32xf32> to vector<1x20x32xf32>
    %10 = vector.shape_cast %9 : vector<1x20x32xf32> to vector<20x32xf32>
    %cst_6 = arith.constant dense<0.000000e+00> : vector<16x32xf32>
    %11 = tpu.matmul %1, %10, %cst_6 {dimension_numbers = #tpu.dot_dimension_numbers<[1], [0], [0], [1], [0, 0, 1, 1], [], []>} : vector<16x20xf32>, vector<20x32xf32>, vector<16x32xf32> -> vector<16x32xf32>
    %12 = tpu.iota {dimensions = array<i32: 1>} : vector<2x8x32xi32>
    %13 = vector.shape_cast %12 : vector<2x8x32xi32> to vector<16x32xi32>
    %c0_i32 = arith.constant 0 : i32
    %14 = vector.broadcast %c0_i32 : i32 to vector<16x32xi32>
    %15 = arith.cmpi eq, %13, %14 : vector<16x32xi32>
    %c1_i32 = arith.constant 1 : i32
    %16 = tpu.dynamic_rotate %5 by %c1_i32 dim 0 : vector<16x32xf32>, i32 -> vector<16x32xf32>
    %cst_7 = arith.constant 0.000000e+00 : f32
    %17 = vector.broadcast %cst_7 : f32 to vector<16x32xf32>
    %18 = arith.select %15, %17, %16 : vector<16x32xi1>, vector<16x32xf32>
    %c7_i32 = arith.constant 7 : i32
    %19 = vector.broadcast %c7_i32 : i32 to vector<16x32xi32>
    %20 = arith.cmpi eq, %13, %19 : vector<16x32xi32>
    %c15_i32 = arith.constant 15 : i32
    %21 = tpu.dynamic_rotate %11 by %c15_i32 dim 0 : vector<16x32xf32>, i32 -> vector<16x32xf32>
    %cst_8 = arith.constant 0.000000e+00 : f32
    %22 = vector.broadcast %cst_8 : f32 to vector<16x32xf32>
    %23 = arith.select %20, %22, %21 : vector<16x32xi1>, vector<16x32xf32>
    %24 = arith.addf %18, %8 : vector<16x32xf32>
    %25 = arith.addf %24, %23 : vector<16x32xf32>
    %26 = vector.shape_cast %25 : vector<16x32xf32> to vector<2x8x32xf32>
    %cst_9 = arith.constant 5.65685415 : f32
    %27 = vector.broadcast %cst_9 : f32 to vector<2x8x32xf32>
    %28 = arith.mulf %26, %27 : vector<2x8x32xf32>
    %c0_10 = arith.constant 0 : index
    %c0_11 = arith.constant 0 : index
    %29 = vector.load %arg2[%c0_10, %c0_11] : memref<8x32xf32, #tpu.memory_space<vmem>>, vector<8x32xf32>
    %30 = vector.shape_cast %29 : vector<8x32xf32> to vector<1x8x32xf32>
    %31 = vector.broadcast %30 : vector<1x8x32xf32> to vector<2x8x32xf32>
    %32 = arith.addf %28, %31 : vector<2x8x32xf32>
    %33 = vector.shape_cast %32 : vector<2x8x32xf32> to vector<16x32xf32>
    %c0_12 = arith.constant 0 : index
    %c0_13 = arith.constant 0 : index
    %c0_14 = arith.constant 0 : index
    %34 = vector.load %arg11[%c0_12, %c0_13, %c0_14] : memref<2x1x32xf32, #tpu.memory_space<vmem>>, vector<1x1x32xf32>
    %35 = vector.shape_cast %34 : vector<1x1x32xf32> to vector<1x32xf32>
    %c0_15 = arith.constant 0 : index
    %c0_16 = arith.constant 0 : index
    %c0_17 = arith.constant 0 : index
    %36 = vector.load %arg12[%c0_15, %c0_16, %c0_17] : memref<2x1x32xf32, #tpu.memory_space<vmem>>, vector<1x1x32xf32>
    %37 = vector.shape_cast %36 : vector<1x1x32xf32> to vector<1x32xf32>
    %cst_18 = arith.constant dense<0.000000e+00> : vector<16xf32>
    %38 = vector.multi_reduction <add>, %33, %cst_18 [1] : vector<16x32xf32> to vector<16xf32>
    %39 = vector.shape_cast %38 : vector<16xf32> to vector<16x1xf32>
    %cst_19 = arith.constant 3.200000e+01 : f32
    %40 = vector.broadcast %cst_19 : f32 to vector<16x1xf32>
    %41 = arith.divf %39, %40 : vector<16x1xf32>
    %42 = vector.broadcast %41 : vector<16x1xf32> to vector<16x32xf32>
    %43 = arith.subf %33, %42 : vector<16x32xf32>
    %44 = arith.mulf %43, %43 : vector<16x32xf32>
    %cst_20 = arith.constant dense<0.000000e+00> : vector<16xf32>
    %45 = vector.multi_reduction <add>, %44, %cst_20 [1] : vector<16x32xf32> to vector<16xf32>
    %46 = vector.shape_cast %45 : vector<16xf32> to vector<16x1xf32>
    %cst_21 = arith.constant 3.200000e+01 : f32
    %47 = vector.broadcast %cst_21 : f32 to vector<16x1xf32>
    %48 = arith.divf %46, %47 : vector<16x1xf32>
    %49 = vector.broadcast %41 : vector<16x1xf32> to vector<16x32xf32>
    %50 = arith.subf %33, %49 : vector<16x32xf32>
    %cst_22 = arith.constant 9.99999974E-6 : f32
    %51 = vector.broadcast %cst_22 : f32 to vector<16x1xf32>
    %52 = arith.addf %48, %51 : vector<16x1xf32>
    %53 = math.rsqrt %52 : vector<16x1xf32>
    %54 = vector.broadcast %53 : vector<16x1xf32> to vector<16x32xf32>
    %55 = arith.mulf %50, %54 : vector<16x32xf32>
    %56 = vector.broadcast %35 : vector<1x32xf32> to vector<16x32xf32>
    %57 = arith.mulf %55, %56 : vector<16x32xf32>
    %58 = vector.broadcast %37 : vector<1x32xf32> to vector<16x32xf32>
    %59 = arith.addf %57, %58 : vector<16x32xf32>
    %c0_23 = arith.constant 0 : index
    %c0_24 = arith.constant 0 : index
    %c0_25 = arith.constant 0 : index
    %60 = vector.load %arg3[%c0_23, %c0_24, %c0_25] : memref<2x32x32xf32, #tpu.memory_space<vmem>>, vector<1x32x32xf32>
    %61 = vector.shape_cast %60 : vector<1x32x32xf32> to vector<32x32xf32>
    %cst_26 = arith.constant dense<0.000000e+00> : vector<16x32xf32>
    %62 = tpu.matmul %59, %61, %cst_26 {dimension_numbers = #tpu.dot_dimension_numbers<[1], [0], [0], [1], [0, 0, 1, 1], [], []>} : vector<16x32xf32>, vector<32x32xf32>, vector<16x32xf32> -> vector<16x32xf32>
    %c0_27 = arith.constant 0 : index
    %c0_28 = arith.constant 0 : index
    %c0_29 = arith.constant 0 : index
    %63 = vector.load %arg4[%c0_27, %c0_28, %c0_29] : memref<2x1x32xf32, #tpu.memory_space<vmem>>, vector<1x1x32xf32>
    %64 = vector.shape_cast %63 : vector<1x1x32xf32> to vector<1x32xf32>
    %65 = vector.broadcast %64 : vector<1x32xf32> to vector<16x32xf32>
    %66 = arith.addf %62, %65 : vector<16x32xf32>
    %cst_30 = arith.constant 0.353553385 : f32
    %67 = vector.broadcast %cst_30 : f32 to vector<16x32xf32>
    %68 = arith.mulf %66, %67 : vector<16x32xf32>
    %c0_31 = arith.constant 0 : index
    %c0_32 = arith.constant 0 : index
    %c0_33 = arith.constant 0 : index
    %69 = vector.load %arg5[%c0_31, %c0_32, %c0_33] : memref<2x32x32xf32, #tpu.memory_space<vmem>>, vector<1x32x32xf32>
    %70 = vector.shape_cast %69 : vector<1x32x32xf32> to vector<32x32xf32>
    %cst_34 = arith.constant dense<0.000000e+00> : vector<16x32xf32>
    %71 = tpu.matmul %59, %70, %cst_34 {dimension_numbers = #tpu.dot_dimension_numbers<[1], [0], [0], [1], [0, 0, 1, 1], [], []>} : vector<16x32xf32>, vector<32x32xf32>, vector<16x32xf32> -> vector<16x32xf32>
    %c0_35 = arith.constant 0 : index
    %c0_36 = arith.constant 0 : index
    %c0_37 = arith.constant 0 : index
    %72 = vector.load %arg6[%c0_35, %c0_36, %c0_37] : memref<2x1x32xf32, #tpu.memory_space<vmem>>, vector<1x1x32xf32>
    %73 = vector.shape_cast %72 : vector<1x1x32xf32> to vector<1x32xf32>
    %74 = vector.broadcast %73 : vector<1x32xf32> to vector<16x32xf32>
    %75 = arith.addf %71, %74 : vector<16x32xf32>
    %c0_38 = arith.constant 0 : index
    %c0_39 = arith.constant 0 : index
    %c0_40 = arith.constant 0 : index
    %76 = vector.load %arg7[%c0_38, %c0_39, %c0_40] : memref<2x32x32xf32, #tpu.memory_space<vmem>>, vector<1x32x32xf32>
    %77 = vector.shape_cast %76 : vector<1x32x32xf32> to vector<32x32xf32>
    %cst_41 = arith.constant dense<0.000000e+00> : vector<16x32xf32>
    %78 = tpu.matmul %59, %77, %cst_41 {dimension_numbers = #tpu.dot_dimension_numbers<[1], [0], [0], [1], [0, 0, 1, 1], [], []>} : vector<16x32xf32>, vector<32x32xf32>, vector<16x32xf32> -> vector<16x32xf32>
    %c0_42 = arith.constant 0 : index
    %c0_43 = arith.constant 0 : index
    %c0_44 = arith.constant 0 : index
    %79 = vector.load %arg8[%c0_42, %c0_43, %c0_44] : memref<2x1x32xf32, #tpu.memory_space<vmem>>, vector<1x1x32xf32>
    %80 = vector.shape_cast %79 : vector<1x1x32xf32> to vector<1x32xf32>
    %81 = vector.broadcast %80 : vector<1x32xf32> to vector<16x32xf32>
    %82 = arith.addf %78, %81 : vector<16x32xf32>
    %83 = vector.shape_cast %68 : vector<16x32xf32> to vector<2x8x32xf32>
    %84 = vector.shape_cast %75 : vector<16x32xf32> to vector<2x8x32xf32>
    %85 = vector.shape_cast %82 : vector<16x32xf32> to vector<2x8x32xf32>
    %86 = vector.extract_strided_slice %83 {offsets = [0, 0, 0], sizes = [2, 8, 8], strides = [1, 1, 1]} : vector<2x8x32xf32> to vector<2x8x8xf32>
    %87 = vector.extract_strided_slice %84 {offsets = [0, 0, 0], sizes = [2, 8, 8], strides = [1, 1, 1]} : vector<2x8x32xf32> to vector<2x8x8xf32>
    %88 = vector.extract_strided_slice %85 {offsets = [0, 0, 0], sizes = [2, 8, 8], strides = [1, 1, 1]} : vector<2x8x32xf32> to vector<2x8x8xf32>
    "tpu.trace_start"() <{level = 10 : i32, message = "btd,bsd->bts"}> : () -> ()
    %cst_45 = arith.constant dense<0.000000e+00> : vector<2x8x8xf32>
    %89 = tpu.matmul %86, %87, %cst_45 {dimension_numbers = #tpu.dot_dimension_numbers<[2], [2], [1], [1], [0, 0, 0, 1, 1, 1], [0], [0]>} : vector<2x8x8xf32>, vector<2x8x8xf32>, vector<2x8x8xf32> -> vector<2x8x8xf32>
    "tpu.trace_stop"() : () -> ()
    %cst_46 = arith.constant dense<0xFF800000> : vector<2x8xf32>
    %90 = vector.multi_reduction <maximumf>, %89, %cst_46 [2] : vector<2x8x8xf32> to vector<2x8xf32>
    %91 = vector.shape_cast %90 : vector<2x8xf32> to vector<2x8x1xf32>
    %92 = vector.broadcast %91 : vector<2x8x1xf32> to vector<2x8x8xf32>
    %93 = arith.subf %89, %92 : vector<2x8x8xf32>
    %94 = math.exp %93 : vector<2x8x8xf32>
    %cst_47 = arith.constant dense<0.000000e+00> : vector<2x8xf32>
    %95 = vector.multi_reduction <add>, %94, %cst_47 [2] : vector<2x8x8xf32> to vector<2x8xf32>
    %96 = vector.shape_cast %95 : vector<2x8xf32> to vector<2x8x1xf32>
    %97 = tpu.reciprocal %96 {approx = true} : vector<2x8x1xf32> -> vector<2x8x1xf32>
    %98 = vector.broadcast %97 : vector<2x8x1xf32> to vector<2x8x8xf32>
    %99 = arith.mulf %94, %98 : vector<2x8x8xf32>
    "tpu.trace_start"() <{level = 10 : i32, message = "bts,bsd->btd"}> : () -> ()
    %cst_48 = arith.constant dense<0.000000e+00> : vector<2x8x8xf32>
    %100 = tpu.matmul %99, %88, %cst_48 {dimension_numbers = #tpu.dot_dimension_numbers<[2], [1], [1], [2], [0, 0, 0, 1, 1, 2], [0], [0]>} : vector<2x8x8xf32>, vector<2x8x8xf32>, vector<2x8x8xf32> -> vector<2x8x8xf32>
    "tpu.trace_stop"() : () -> ()
    %101 = vector.extract_strided_slice %83 {offsets = [0, 0, 8], sizes = [2, 8, 8], strides = [1, 1, 1]} : vector<2x8x32xf32> to vector<2x8x8xf32>
    %102 = vector.extract_strided_slice %84 {offsets = [0, 0, 8], sizes = [2, 8, 8], strides = [1, 1, 1]} : vector<2x8x32xf32> to vector<2x8x8xf32>
    %103 = vector.extract_strided_slice %85 {offsets = [0, 0, 8], sizes = [2, 8, 8], strides = [1, 1, 1]} : vector<2x8x32xf32> to vector<2x8x8xf32>
    "tpu.trace_start"() <{level = 10 : i32, message = "btd,bsd->bts"}> : () -> ()
    %cst_49 = arith.constant dense<0.000000e+00> : vector<2x8x8xf32>
    %104 = tpu.matmul %101, %102, %cst_49 {dimension_numbers = #tpu.dot_dimension_numbers<[2], [2], [1], [1], [0, 0, 0, 1, 1, 1], [0], [0]>} : vector<2x8x8xf32>, vector<2x8x8xf32>, vector<2x8x8xf32> -> vector<2x8x8xf32>
    "tpu.trace_stop"() : () -> ()
    %cst_50 = arith.constant dense<0xFF800000> : vector<2x8xf32>
    %105 = vector.multi_reduction <maximumf>, %104, %cst_50 [2] : vector<2x8x8xf32> to vector<2x8xf32>
    %106 = vector.shape_cast %105 : vector<2x8xf32> to vector<2x8x1xf32>
    %107 = vector.broadcast %106 : vector<2x8x1xf32> to vector<2x8x8xf32>
    %108 = arith.subf %104, %107 : vector<2x8x8xf32>
    %109 = math.exp %108 : vector<2x8x8xf32>
    %cst_51 = arith.constant dense<0.000000e+00> : vector<2x8xf32>
    %110 = vector.multi_reduction <add>, %109, %cst_51 [2] : vector<2x8x8xf32> to vector<2x8xf32>
    %111 = vector.shape_cast %110 : vector<2x8xf32> to vector<2x8x1xf32>
    %112 = tpu.reciprocal %111 {approx = true} : vector<2x8x1xf32> -> vector<2x8x1xf32>
    %113 = vector.broadcast %112 : vector<2x8x1xf32> to vector<2x8x8xf32>
    %114 = arith.mulf %109, %113 : vector<2x8x8xf32>
    "tpu.trace_start"() <{level = 10 : i32, message = "bts,bsd->btd"}> : () -> ()
    %cst_52 = arith.constant dense<0.000000e+00> : vector<2x8x8xf32>
    %115 = tpu.matmul %114, %103, %cst_52 {dimension_numbers = #tpu.dot_dimension_numbers<[2], [1], [1], [2], [0, 0, 0, 1, 1, 2], [0], [0]>} : vector<2x8x8xf32>, vector<2x8x8xf32>, vector<2x8x8xf32> -> vector<2x8x8xf32>
    "tpu.trace_stop"() : () -> ()
    %116 = vector.extract_strided_slice %83 {offsets = [0, 0, 16], sizes = [2, 8, 8], strides = [1, 1, 1]} : vector<2x8x32xf32> to vector<2x8x8xf32>
    %117 = vector.extract_strided_slice %84 {offsets = [0, 0, 16], sizes = [2, 8, 8], strides = [1, 1, 1]} : vector<2x8x32xf32> to vector<2x8x8xf32>
    %118 = vector.extract_strided_slice %85 {offsets = [0, 0, 16], sizes = [2, 8, 8], strides = [1, 1, 1]} : vector<2x8x32xf32> to vector<2x8x8xf32>
    "tpu.trace_start"() <{level = 10 : i32, message = "btd,bsd->bts"}> : () -> ()
    %cst_53 = arith.constant dense<0.000000e+00> : vector<2x8x8xf32>
    %119 = tpu.matmul %116, %117, %cst_53 {dimension_numbers = #tpu.dot_dimension_numbers<[2], [2], [1], [1], [0, 0, 0, 1, 1, 1], [0], [0]>} : vector<2x8x8xf32>, vector<2x8x8xf32>, vector<2x8x8xf32> -> vector<2x8x8xf32>
    "tpu.trace_stop"() : () -> ()
    %cst_54 = arith.constant dense<0xFF800000> : vector<2x8xf32>
    %120 = vector.multi_reduction <maximumf>, %119, %cst_54 [2] : vector<2x8x8xf32> to vector<2x8xf32>
    %121 = vector.shape_cast %120 : vector<2x8xf32> to vector<2x8x1xf32>
    %122 = vector.broadcast %121 : vector<2x8x1xf32> to vector<2x8x8xf32>
    %123 = arith.subf %119, %122 : vector<2x8x8xf32>
    %124 = math.exp %123 : vector<2x8x8xf32>
    %cst_55 = arith.constant dense<0.000000e+00> : vector<2x8xf32>
    %125 = vector.multi_reduction <add>, %124, %cst_55 [2] : vector<2x8x8xf32> to vector<2x8xf32>
    %126 = vector.shape_cast %125 : vector<2x8xf32> to vector<2x8x1xf32>
    %127 = tpu.reciprocal %126 {approx = true} : vector<2x8x1xf32> -> vector<2x8x1xf32>
    %128 = vector.broadcast %127 : vector<2x8x1xf32> to vector<2x8x8xf32>
    %129 = arith.mulf %124, %128 : vector<2x8x8xf32>
    "tpu.trace_start"() <{level = 10 : i32, message = "bts,bsd->btd"}> : () -> ()
    %cst_56 = arith.constant dense<0.000000e+00> : vector<2x8x8xf32>
    %130 = tpu.matmul %129, %118, %cst_56 {dimension_numbers = #tpu.dot_dimension_numbers<[2], [1], [1], [2], [0, 0, 0, 1, 1, 2], [0], [0]>} : vector<2x8x8xf32>, vector<2x8x8xf32>, vector<2x8x8xf32> -> vector<2x8x8xf32>
    "tpu.trace_stop"() : () -> ()
    %131 = vector.extract_strided_slice %83 {offsets = [0, 0, 24], sizes = [2, 8, 8], strides = [1, 1, 1]} : vector<2x8x32xf32> to vector<2x8x8xf32>
    %132 = vector.extract_strided_slice %84 {offsets = [0, 0, 24], sizes = [2, 8, 8], strides = [1, 1, 1]} : vector<2x8x32xf32> to vector<2x8x8xf32>
    %133 = vector.extract_strided_slice %85 {offsets = [0, 0, 24], sizes = [2, 8, 8], strides = [1, 1, 1]} : vector<2x8x32xf32> to vector<2x8x8xf32>
    "tpu.trace_start"() <{level = 10 : i32, message = "btd,bsd->bts"}> : () -> ()
    %cst_57 = arith.constant dense<0.000000e+00> : vector<2x8x8xf32>
    %134 = tpu.matmul %131, %132, %cst_57 {dimension_numbers = #tpu.dot_dimension_numbers<[2], [2], [1], [1], [0, 0, 0, 1, 1, 1], [0], [0]>} : vector<2x8x8xf32>, vector<2x8x8xf32>, vector<2x8x8xf32> -> vector<2x8x8xf32>
    "tpu.trace_stop"() : () -> ()
    %cst_58 = arith.constant dense<0xFF800000> : vector<2x8xf32>
    %135 = vector.multi_reduction <maximumf>, %134, %cst_58 [2] : vector<2x8x8xf32> to vector<2x8xf32>
    %136 = vector.shape_cast %135 : vector<2x8xf32> to vector<2x8x1xf32>
    %137 = vector.broadcast %136 : vector<2x8x1xf32> to vector<2x8x8xf32>
    %138 = arith.subf %134, %137 : vector<2x8x8xf32>
    %139 = math.exp %138 : vector<2x8x8xf32>
    %cst_59 = arith.constant dense<0.000000e+00> : vector<2x8xf32>
    %140 = vector.multi_reduction <add>, %139, %cst_59 [2] : vector<2x8x8xf32> to vector<2x8xf32>
    %141 = vector.shape_cast %140 : vector<2x8xf32> to vector<2x8x1xf32>
    %142 = tpu.reciprocal %141 {approx = true} : vector<2x8x1xf32> -> vector<2x8x1xf32>
    %143 = vector.broadcast %142 : vector<2x8x1xf32> to vector<2x8x8xf32>
    %144 = arith.mulf %139, %143 : vector<2x8x8xf32>
    "tpu.trace_start"() <{level = 10 : i32, message = "bts,bsd->btd"}> : () -> ()
    %cst_60 = arith.constant dense<0.000000e+00> : vector<2x8x8xf32>
    %145 = tpu.matmul %144, %133, %cst_60 {dimension_numbers = #tpu.dot_dimension_numbers<[2], [1], [1], [2], [0, 0, 0, 1, 1, 2], [0], [0]>} : vector<2x8x8xf32>, vector<2x8x8xf32>, vector<2x8x8xf32> -> vector<2x8x8xf32>
    "tpu.trace_stop"() : () -> ()
    %146 = tpu.concatenate %100, %115, %130, %145 in 2 : vector<2x8x8xf32>, vector<2x8x8xf32>, vector<2x8x8xf32>, vector<2x8x8xf32> -> vector<2x8x32xf32>
    %147 = vector.shape_cast %146 : vector<2x8x32xf32> to vector<16x32xf32>
    %c0_61 = arith.constant 0 : index
    %c0_62 = arith.constant 0 : index
    %c0_63 = arith.constant 0 : index
    %148 = vector.load %arg9[%c0_61, %c0_62, %c0_63] : memref<2x32x32xf32, #tpu.memory_space<vmem>>, vector<1x32x32xf32>
    %149 = vector.shape_cast %148 : vector<1x32x32xf32> to vector<32x32xf32>
    %cst_64 = arith.constant dense<0.000000e+00> : vector<16x32xf32>
    %150 = tpu.matmul %147, %149, %cst_64 {dimension_numbers = #tpu.dot_dimension_numbers<[1], [0], [0], [1], [0, 0, 1, 1], [], []>} : vector<16x32xf32>, vector<32x32xf32>, vector<16x32xf32> -> vector<16x32xf32>
    %151 = arith.addf %33, %150 : vector<16x32xf32>
    %c0_65 = arith.constant 0 : index
    %c0_66 = arith.constant 0 : index
    %c0_67 = arith.constant 0 : index
    %152 = vector.load %arg10[%c0_65, %c0_66, %c0_67] : memref<2x1x32xf32, #tpu.memory_space<vmem>>, vector<1x1x32xf32>
    %153 = vector.shape_cast %152 : vector<1x1x32xf32> to vector<1x32xf32>
    %154 = vector.broadcast %153 : vector<1x32xf32> to vector<16x32xf32>
    %155 = arith.addf %151, %154 : vector<16x32xf32>
    %c0_68 = arith.constant 0 : index
    %c0_69 = arith.constant 0 : index
    %c0_70 = arith.constant 0 : index
    %156 = vector.load %arg17[%c0_68, %c0_69, %c0_70] : memref<2x1x32xf32, #tpu.memory_space<vmem>>, vector<1x1x32xf32>
    %157 = vector.shape_cast %156 : vector<1x1x32xf32> to vector<1x32xf32>
    %c0_71 = arith.constant 0 : index
    %c0_72 = arith.constant 0 : index
    %c0_73 = arith.constant 0 : index
    %158 = vector.load %arg18[%c0_71, %c0_72, %c0_73] : memref<2x1x32xf32, #tpu.memory_space<vmem>>, vector<1x1x32xf32>
    %159 = vector.shape_cast %158 : vector<1x1x32xf32> to vector<1x32xf32>
    %cst_74 = arith.constant dense<0.000000e+00> : vector<16xf32>
    %160 = vector.multi_reduction <add>, %155, %cst_74 [1] : vector<16x32xf32> to vector<16xf32>
    %161 = vector.shape_cast %160 : vector<16xf32> to vector<16x1xf32>
    %cst_75 = arith.constant 3.200000e+01 : f32
    %162 = vector.broadcast %cst_75 : f32 to vector<16x1xf32>
    %163 = arith.divf %161, %162 : vector<16x1xf32>
    %164 = vector.broadcast %163 : vector<16x1xf32> to vector<16x32xf32>
    %165 = arith.subf %155, %164 : vector<16x32xf32>
    %166 = arith.mulf %165, %165 : vector<16x32xf32>
    %cst_76 = arith.constant dense<0.000000e+00> : vector<16xf32>
    %167 = vector.multi_reduction <add>, %166, %cst_76 [1] : vector<16x32xf32> to vector<16xf32>
    %168 = vector.shape_cast %167 : vector<16xf32> to vector<16x1xf32>
    %cst_77 = arith.constant 3.200000e+01 : f32
    %169 = vector.broadcast %cst_77 : f32 to vector<16x1xf32>
    %170 = arith.divf %168, %169 : vector<16x1xf32>
    %171 = vector.broadcast %163 : vector<16x1xf32> to vector<16x32xf32>
    %172 = arith.subf %155, %171 : vector<16x32xf32>
    %cst_78 = arith.constant 9.99999974E-6 : f32
    %173 = vector.broadcast %cst_78 : f32 to vector<16x1xf32>
    %174 = arith.addf %170, %173 : vector<16x1xf32>
    %175 = math.rsqrt %174 : vector<16x1xf32>
    %176 = vector.broadcast %175 : vector<16x1xf32> to vector<16x32xf32>
    %177 = arith.mulf %172, %176 : vector<16x32xf32>
    %178 = vector.broadcast %157 : vector<1x32xf32> to vector<16x32xf32>
    %179 = arith.mulf %177, %178 : vector<16x32xf32>
    %180 = vector.broadcast %159 : vector<1x32xf32> to vector<16x32xf32>
    %181 = arith.addf %179, %180 : vector<16x32xf32>
    %c0_79 = arith.constant 0 : index
    %c0_80 = arith.constant 0 : index
    %c0_81 = arith.constant 0 : index
    %182 = vector.load %arg13[%c0_79, %c0_80, %c0_81] : memref<2x32x128xf32, #tpu.memory_space<vmem>>, vector<1x32x128xf32>
    %183 = vector.shape_cast %182 : vector<1x32x128xf32> to vector<32x128xf32>
    %cst_82 = arith.constant dense<0.000000e+00> : vector<16x128xf32>
    %184 = tpu.matmul %181, %183, %cst_82 {dimension_numbers = #tpu.dot_dimension_numbers<[1], [0], [0], [1], [0, 0, 1, 1], [], []>} : vector<16x32xf32>, vector<32x128xf32>, vector<16x128xf32> -> vector<16x128xf32>
    %c0_83 = arith.constant 0 : index
    %c0_84 = arith.constant 0 : index
    %c0_85 = arith.constant 0 : index
    %185 = vector.load %arg14[%c0_83, %c0_84, %c0_85] : memref<2x1x128xf32, #tpu.memory_space<vmem>>, vector<1x1x128xf32>
    %186 = vector.shape_cast %185 : vector<1x1x128xf32> to vector<1x128xf32>
    %187 = vector.broadcast %186 : vector<1x128xf32> to vector<16x128xf32>
    %188 = arith.addf %184, %187 : vector<16x128xf32>
    %cst_86 = arith.constant 0.000000e+00 : f32
    %189 = vector.broadcast %cst_86 : f32 to vector<16x128xf32>
    %190 = arith.maximumf %188, %189 : vector<16x128xf32>
    %c0_87 = arith.constant 0 : index
    %c0_88 = arith.constant 0 : index
    %c0_89 = arith.constant 0 : index
    %191 = vector.load %arg15[%c0_87, %c0_88, %c0_89] : memref<2x128x32xf32, #tpu.memory_space<vmem>>, vector<1x128x32xf32>
    %192 = vector.shape_cast %191 : vector<1x128x32xf32> to vector<128x32xf32>
    %cst_90 = arith.constant dense<0.000000e+00> : vector<16x32xf32>
    %193 = tpu.matmul %190, %192, %cst_90 {dimension_numbers = #tpu.dot_dimension_numbers<[1], [0], [0], [1], [0, 0, 1, 1], [], []>} : vector<16x128xf32>, vector<128x32xf32>, vector<16x32xf32> -> vector<16x32xf32>
    %194 = arith.addf %155, %193 : vector<16x32xf32>
    %c0_91 = arith.constant 0 : index
    %c0_92 = arith.constant 0 : index
    %c0_93 = arith.constant 0 : index
    %195 = vector.load %arg16[%c0_91, %c0_92, %c0_93] : memref<2x1x32xf32, #tpu.memory_space<vmem>>, vector<1x1x32xf32>
    %196 = vector.shape_cast %195 : vector<1x1x32xf32> to vector<1x32xf32>
    %197 = vector.broadcast %196 : vector<1x32xf32> to vector<16x32xf32>
    %198 = arith.addf %194, %197 : vector<16x32xf32>
    %c1 = arith.constant 1 : index
    %c0_94 = arith.constant 0 : index
    %c0_95 = arith.constant 0 : index
    %199 = vector.load %arg11[%c1, %c0_94, %c0_95] : memref<2x1x32xf32, #tpu.memory_space<vmem>>, vector<1x1x32xf32>
    %200 = vector.shape_cast %199 : vector<1x1x32xf32> to vector<1x32xf32>
    %c1_96 = arith.constant 1 : index
    %c0_97 = arith.constant 0 : index
    %c0_98 = arith.constant 0 : index
    %201 = vector.load %arg12[%c1_96, %c0_97, %c0_98] : memref<2x1x32xf32, #tpu.memory_space<vmem>>, vector<1x1x32xf32>
    %202 = vector.shape_cast %201 : vector<1x1x32xf32> to vector<1x32xf32>
    %cst_99 = arith.constant dense<0.000000e+00> : vector<16xf32>
    %203 = vector.multi_reduction <add>, %198, %cst_99 [1] : vector<16x32xf32> to vector<16xf32>
    %204 = vector.shape_cast %203 : vector<16xf32> to vector<16x1xf32>
    %cst_100 = arith.constant 3.200000e+01 : f32
    %205 = vector.broadcast %cst_100 : f32 to vector<16x1xf32>
    %206 = arith.divf %204, %205 : vector<16x1xf32>
    %207 = vector.broadcast %206 : vector<16x1xf32> to vector<16x32xf32>
    %208 = arith.subf %198, %207 : vector<16x32xf32>
    %209 = arith.mulf %208, %208 : vector<16x32xf32>
    %cst_101 = arith.constant dense<0.000000e+00> : vector<16xf32>
    %210 = vector.multi_reduction <add>, %209, %cst_101 [1] : vector<16x32xf32> to vector<16xf32>
    %211 = vector.shape_cast %210 : vector<16xf32> to vector<16x1xf32>
    %cst_102 = arith.constant 3.200000e+01 : f32
    %212 = vector.broadcast %cst_102 : f32 to vector<16x1xf32>
    %213 = arith.divf %211, %212 : vector<16x1xf32>
    %214 = vector.broadcast %206 : vector<16x1xf32> to vector<16x32xf32>
    %215 = arith.subf %198, %214 : vector<16x32xf32>
    %cst_103 = arith.constant 9.99999974E-6 : f32
    %216 = vector.broadcast %cst_103 : f32 to vector<16x1xf32>
    %217 = arith.addf %213, %216 : vector<16x1xf32>
    %218 = math.rsqrt %217 : vector<16x1xf32>
    %219 = vector.broadcast %218 : vector<16x1xf32> to vector<16x32xf32>
    %220 = arith.mulf %215, %219 : vector<16x32xf32>
    %221 = vector.broadcast %200 : vector<1x32xf32> to vector<16x32xf32>
    %222 = arith.mulf %220, %221 : vector<16x32xf32>
    %223 = vector.broadcast %202 : vector<1x32xf32> to vector<16x32xf32>
    %224 = arith.addf %222, %223 : vector<16x32xf32>
    %c1_104 = arith.constant 1 : index
    %c0_105 = arith.constant 0 : index
    %c0_106 = arith.constant 0 : index
    %225 = vector.load %arg3[%c1_104, %c0_105, %c0_106] : memref<2x32x32xf32, #tpu.memory_space<vmem>>, vector<1x32x32xf32>
    %226 = vector.shape_cast %225 : vector<1x32x32xf32> to vector<32x32xf32>
    %cst_107 = arith.constant dense<0.000000e+00> : vector<16x32xf32>
    %227 = tpu.matmul %224, %226, %cst_107 {dimension_numbers = #tpu.dot_dimension_numbers<[1], [0], [0], [1], [0, 0, 1, 1], [], []>} : vector<16x32xf32>, vector<32x32xf32>, vector<16x32xf32> -> vector<16x32xf32>
    %c1_108 = arith.constant 1 : index
    %c0_109 = arith.constant 0 : index
    %c0_110 = arith.constant 0 : index
    %228 = vector.load %arg4[%c1_108, %c0_109, %c0_110] : memref<2x1x32xf32, #tpu.memory_space<vmem>>, vector<1x1x32xf32>
    %229 = vector.shape_cast %228 : vector<1x1x32xf32> to vector<1x32xf32>
    %230 = vector.broadcast %229 : vector<1x32xf32> to vector<16x32xf32>
    %231 = arith.addf %227, %230 : vector<16x32xf32>
    %cst_111 = arith.constant 0.353553385 : f32
    %232 = vector.broadcast %cst_111 : f32 to vector<16x32xf32>
    %233 = arith.mulf %231, %232 : vector<16x32xf32>
    %c1_112 = arith.constant 1 : index
    %c0_113 = arith.constant 0 : index
    %c0_114 = arith.constant 0 : index
    %234 = vector.load %arg5[%c1_112, %c0_113, %c0_114] : memref<2x32x32xf32, #tpu.memory_space<vmem>>, vector<1x32x32xf32>
    %235 = vector.shape_cast %234 : vector<1x32x32xf32> to vector<32x32xf32>
    %cst_115 = arith.constant dense<0.000000e+00> : vector<16x32xf32>
    %236 = tpu.matmul %224, %235, %cst_115 {dimension_numbers = #tpu.dot_dimension_numbers<[1], [0], [0], [1], [0, 0, 1, 1], [], []>} : vector<16x32xf32>, vector<32x32xf32>, vector<16x32xf32> -> vector<16x32xf32>
    %c1_116 = arith.constant 1 : index
    %c0_117 = arith.constant 0 : index
    %c0_118 = arith.constant 0 : index
    %237 = vector.load %arg6[%c1_116, %c0_117, %c0_118] : memref<2x1x32xf32, #tpu.memory_space<vmem>>, vector<1x1x32xf32>
    %238 = vector.shape_cast %237 : vector<1x1x32xf32> to vector<1x32xf32>
    %239 = vector.broadcast %238 : vector<1x32xf32> to vector<16x32xf32>
    %240 = arith.addf %236, %239 : vector<16x32xf32>
    %c1_119 = arith.constant 1 : index
    %c0_120 = arith.constant 0 : index
    %c0_121 = arith.constant 0 : index
    %241 = vector.load %arg7[%c1_119, %c0_120, %c0_121] : memref<2x32x32xf32, #tpu.memory_space<vmem>>, vector<1x32x32xf32>
    %242 = vector.shape_cast %241 : vector<1x32x32xf32> to vector<32x32xf32>
    %cst_122 = arith.constant dense<0.000000e+00> : vector<16x32xf32>
    %243 = tpu.matmul %224, %242, %cst_122 {dimension_numbers = #tpu.dot_dimension_numbers<[1], [0], [0], [1], [0, 0, 1, 1], [], []>} : vector<16x32xf32>, vector<32x32xf32>, vector<16x32xf32> -> vector<16x32xf32>
    %c1_123 = arith.constant 1 : index
    %c0_124 = arith.constant 0 : index
    %c0_125 = arith.constant 0 : index
    %244 = vector.load %arg8[%c1_123, %c0_124, %c0_125] : memref<2x1x32xf32, #tpu.memory_space<vmem>>, vector<1x1x32xf32>
    %245 = vector.shape_cast %244 : vector<1x1x32xf32> to vector<1x32xf32>
    %246 = vector.broadcast %245 : vector<1x32xf32> to vector<16x32xf32>
    %247 = arith.addf %243, %246 : vector<16x32xf32>
    %248 = vector.shape_cast %233 : vector<16x32xf32> to vector<2x8x32xf32>
    %249 = vector.shape_cast %240 : vector<16x32xf32> to vector<2x8x32xf32>
    %250 = vector.shape_cast %247 : vector<16x32xf32> to vector<2x8x32xf32>
    %251 = vector.extract_strided_slice %248 {offsets = [0, 0, 0], sizes = [2, 8, 8], strides = [1, 1, 1]} : vector<2x8x32xf32> to vector<2x8x8xf32>
    %252 = vector.extract_strided_slice %249 {offsets = [0, 0, 0], sizes = [2, 8, 8], strides = [1, 1, 1]} : vector<2x8x32xf32> to vector<2x8x8xf32>
    %253 = vector.extract_strided_slice %250 {offsets = [0, 0, 0], sizes = [2, 8, 8], strides = [1, 1, 1]} : vector<2x8x32xf32> to vector<2x8x8xf32>
    "tpu.trace_start"() <{level = 10 : i32, message = "btd,bsd->bts"}> : () -> ()
    %cst_126 = arith.constant dense<0.000000e+00> : vector<2x8x8xf32>
    %254 = tpu.matmul %251, %252, %cst_126 {dimension_numbers = #tpu.dot_dimension_numbers<[2], [2], [1], [1], [0, 0, 0, 1, 1, 1], [0], [0]>} : vector<2x8x8xf32>, vector<2x8x8xf32>, vector<2x8x8xf32> -> vector<2x8x8xf32>
    "tpu.trace_stop"() : () -> ()
    %cst_127 = arith.constant dense<0xFF800000> : vector<2x8xf32>
    %255 = vector.multi_reduction <maximumf>, %254, %cst_127 [2] : vector<2x8x8xf32> to vector<2x8xf32>
    %256 = vector.shape_cast %255 : vector<2x8xf32> to vector<2x8x1xf32>
    %257 = vector.broadcast %256 : vector<2x8x1xf32> to vector<2x8x8xf32>
    %258 = arith.subf %254, %257 : vector<2x8x8xf32>
    %259 = math.exp %258 : vector<2x8x8xf32>
    %cst_128 = arith.constant dense<0.000000e+00> : vector<2x8xf32>
    %260 = vector.multi_reduction <add>, %259, %cst_128 [2] : vector<2x8x8xf32> to vector<2x8xf32>
    %261 = vector.shape_cast %260 : vector<2x8xf32> to vector<2x8x1xf32>
    %262 = tpu.reciprocal %261 {approx = true} : vector<2x8x1xf32> -> vector<2x8x1xf32>
    %263 = vector.broadcast %262 : vector<2x8x1xf32> to vector<2x8x8xf32>
    %264 = arith.mulf %259, %263 : vector<2x8x8xf32>
    "tpu.trace_start"() <{level = 10 : i32, message = "bts,bsd->btd"}> : () -> ()
    %cst_129 = arith.constant dense<0.000000e+00> : vector<2x8x8xf32>
    %265 = tpu.matmul %264, %253, %cst_129 {dimension_numbers = #tpu.dot_dimension_numbers<[2], [1], [1], [2], [0, 0, 0, 1, 1, 2], [0], [0]>} : vector<2x8x8xf32>, vector<2x8x8xf32>, vector<2x8x8xf32> -> vector<2x8x8xf32>
    "tpu.trace_stop"() : () -> ()
    %266 = vector.extract_strided_slice %248 {offsets = [0, 0, 8], sizes = [2, 8, 8], strides = [1, 1, 1]} : vector<2x8x32xf32> to vector<2x8x8xf32>
    %267 = vector.extract_strided_slice %249 {offsets = [0, 0, 8], sizes = [2, 8, 8], strides = [1, 1, 1]} : vector<2x8x32xf32> to vector<2x8x8xf32>
    %268 = vector.extract_strided_slice %250 {offsets = [0, 0, 8], sizes = [2, 8, 8], strides = [1, 1, 1]} : vector<2x8x32xf32> to vector<2x8x8xf32>
    "tpu.trace_start"() <{level = 10 : i32, message = "btd,bsd->bts"}> : () -> ()
    %cst_130 = arith.constant dense<0.000000e+00> : vector<2x8x8xf32>
    %269 = tpu.matmul %266, %267, %cst_130 {dimension_numbers = #tpu.dot_dimension_numbers<[2], [2], [1], [1], [0, 0, 0, 1, 1, 1], [0], [0]>} : vector<2x8x8xf32>, vector<2x8x8xf32>, vector<2x8x8xf32> -> vector<2x8x8xf32>
    "tpu.trace_stop"() : () -> ()
    %cst_131 = arith.constant dense<0xFF800000> : vector<2x8xf32>
    %270 = vector.multi_reduction <maximumf>, %269, %cst_131 [2] : vector<2x8x8xf32> to vector<2x8xf32>
    %271 = vector.shape_cast %270 : vector<2x8xf32> to vector<2x8x1xf32>
    %272 = vector.broadcast %271 : vector<2x8x1xf32> to vector<2x8x8xf32>
    %273 = arith.subf %269, %272 : vector<2x8x8xf32>
    %274 = math.exp %273 : vector<2x8x8xf32>
    %cst_132 = arith.constant dense<0.000000e+00> : vector<2x8xf32>
    %275 = vector.multi_reduction <add>, %274, %cst_132 [2] : vector<2x8x8xf32> to vector<2x8xf32>
    %276 = vector.shape_cast %275 : vector<2x8xf32> to vector<2x8x1xf32>
    %277 = tpu.reciprocal %276 {approx = true} : vector<2x8x1xf32> -> vector<2x8x1xf32>
    %278 = vector.broadcast %277 : vector<2x8x1xf32> to vector<2x8x8xf32>
    %279 = arith.mulf %274, %278 : vector<2x8x8xf32>
    "tpu.trace_start"() <{level = 10 : i32, message = "bts,bsd->btd"}> : () -> ()
    %cst_133 = arith.constant dense<0.000000e+00> : vector<2x8x8xf32>
    %280 = tpu.matmul %279, %268, %cst_133 {dimension_numbers = #tpu.dot_dimension_numbers<[2], [1], [1], [2], [0, 0, 0, 1, 1, 2], [0], [0]>} : vector<2x8x8xf32>, vector<2x8x8xf32>, vector<2x8x8xf32> -> vector<2x8x8xf32>
    "tpu.trace_stop"() : () -> ()
    %281 = vector.extract_strided_slice %248 {offsets = [0, 0, 16], sizes = [2, 8, 8], strides = [1, 1, 1]} : vector<2x8x32xf32> to vector<2x8x8xf32>
    %282 = vector.extract_strided_slice %249 {offsets = [0, 0, 16], sizes = [2, 8, 8], strides = [1, 1, 1]} : vector<2x8x32xf32> to vector<2x8x8xf32>
    %283 = vector.extract_strided_slice %250 {offsets = [0, 0, 16], sizes = [2, 8, 8], strides = [1, 1, 1]} : vector<2x8x32xf32> to vector<2x8x8xf32>
    "tpu.trace_start"() <{level = 10 : i32, message = "btd,bsd->bts"}> : () -> ()
    %cst_134 = arith.constant dense<0.000000e+00> : vector<2x8x8xf32>
    %284 = tpu.matmul %281, %282, %cst_134 {dimension_numbers = #tpu.dot_dimension_numbers<[2], [2], [1], [1], [0, 0, 0, 1, 1, 1], [0], [0]>} : vector<2x8x8xf32>, vector<2x8x8xf32>, vector<2x8x8xf32> -> vector<2x8x8xf32>
    "tpu.trace_stop"() : () -> ()
    %cst_135 = arith.constant dense<0xFF800000> : vector<2x8xf32>
    %285 = vector.multi_reduction <maximumf>, %284, %cst_135 [2] : vector<2x8x8xf32> to vector<2x8xf32>
    %286 = vector.shape_cast %285 : vector<2x8xf32> to vector<2x8x1xf32>
    %287 = vector.broadcast %286 : vector<2x8x1xf32> to vector<2x8x8xf32>
    %288 = arith.subf %284, %287 : vector<2x8x8xf32>
    %289 = math.exp %288 : vector<2x8x8xf32>
    %cst_136 = arith.constant dense<0.000000e+00> : vector<2x8xf32>
    %290 = vector.multi_reduction <add>, %289, %cst_136 [2] : vector<2x8x8xf32> to vector<2x8xf32>
    %291 = vector.shape_cast %290 : vector<2x8xf32> to vector<2x8x1xf32>
    %292 = tpu.reciprocal %291 {approx = true} : vector<2x8x1xf32> -> vector<2x8x1xf32>
    %293 = vector.broadcast %292 : vector<2x8x1xf32> to vector<2x8x8xf32>
    %294 = arith.mulf %289, %293 : vector<2x8x8xf32>
    "tpu.trace_start"() <{level = 10 : i32, message = "bts,bsd->btd"}> : () -> ()
    %cst_137 = arith.constant dense<0.000000e+00> : vector<2x8x8xf32>
    %295 = tpu.matmul %294, %283, %cst_137 {dimension_numbers = #tpu.dot_dimension_numbers<[2], [1], [1], [2], [0, 0, 0, 1, 1, 2], [0], [0]>} : vector<2x8x8xf32>, vector<2x8x8xf32>, vector<2x8x8xf32> -> vector<2x8x8xf32>
    "tpu.trace_stop"() : () -> ()
    %296 = vector.extract_strided_slice %248 {offsets = [0, 0, 24], sizes = [2, 8, 8], strides = [1, 1, 1]} : vector<2x8x32xf32> to vector<2x8x8xf32>
    %297 = vector.extract_strided_slice %249 {offsets = [0, 0, 24], sizes = [2, 8, 8], strides = [1, 1, 1]} : vector<2x8x32xf32> to vector<2x8x8xf32>
    %298 = vector.extract_strided_slice %250 {offsets = [0, 0, 24], sizes = [2, 8, 8], strides = [1, 1, 1]} : vector<2x8x32xf32> to vector<2x8x8xf32>
    "tpu.trace_start"() <{level = 10 : i32, message = "btd,bsd->bts"}> : () -> ()
    %cst_138 = arith.constant dense<0.000000e+00> : vector<2x8x8xf32>
    %299 = tpu.matmul %296, %297, %cst_138 {dimension_numbers = #tpu.dot_dimension_numbers<[2], [2], [1], [1], [0, 0, 0, 1, 1, 1], [0], [0]>} : vector<2x8x8xf32>, vector<2x8x8xf32>, vector<2x8x8xf32> -> vector<2x8x8xf32>
    "tpu.trace_stop"() : () -> ()
    %cst_139 = arith.constant dense<0xFF800000> : vector<2x8xf32>
    %300 = vector.multi_reduction <maximumf>, %299, %cst_139 [2] : vector<2x8x8xf32> to vector<2x8xf32>
    %301 = vector.shape_cast %300 : vector<2x8xf32> to vector<2x8x1xf32>
    %302 = vector.broadcast %301 : vector<2x8x1xf32> to vector<2x8x8xf32>
    %303 = arith.subf %299, %302 : vector<2x8x8xf32>
    %304 = math.exp %303 : vector<2x8x8xf32>
    %cst_140 = arith.constant dense<0.000000e+00> : vector<2x8xf32>
    %305 = vector.multi_reduction <add>, %304, %cst_140 [2] : vector<2x8x8xf32> to vector<2x8xf32>
    %306 = vector.shape_cast %305 : vector<2x8xf32> to vector<2x8x1xf32>
    %307 = tpu.reciprocal %306 {approx = true} : vector<2x8x1xf32> -> vector<2x8x1xf32>
    %308 = vector.broadcast %307 : vector<2x8x1xf32> to vector<2x8x8xf32>
    %309 = arith.mulf %304, %308 : vector<2x8x8xf32>
    "tpu.trace_start"() <{level = 10 : i32, message = "bts,bsd->btd"}> : () -> ()
    %cst_141 = arith.constant dense<0.000000e+00> : vector<2x8x8xf32>
    %310 = tpu.matmul %309, %298, %cst_141 {dimension_numbers = #tpu.dot_dimension_numbers<[2], [1], [1], [2], [0, 0, 0, 1, 1, 2], [0], [0]>} : vector<2x8x8xf32>, vector<2x8x8xf32>, vector<2x8x8xf32> -> vector<2x8x8xf32>
    "tpu.trace_stop"() : () -> ()
    %311 = tpu.concatenate %265, %280, %295, %310 in 2 : vector<2x8x8xf32>, vector<2x8x8xf32>, vector<2x8x8xf32>, vector<2x8x8xf32> -> vector<2x8x32xf32>
    %312 = vector.shape_cast %311 : vector<2x8x32xf32> to vector<16x32xf32>
    %c1_142 = arith.constant 1 : index
    %c0_143 = arith.constant 0 : index
    %c0_144 = arith.constant 0 : index
    %313 = vector.load %arg9[%c1_142, %c0_143, %c0_144] : memref<2x32x32xf32, #tpu.memory_space<vmem>>, vector<1x32x32xf32>
    %314 = vector.shape_cast %313 : vector<1x32x32xf32> to vector<32x32xf32>
    %cst_145 = arith.constant dense<0.000000e+00> : vector<16x32xf32>
    %315 = tpu.matmul %312, %314, %cst_145 {dimension_numbers = #tpu.dot_dimension_numbers<[1], [0], [0], [1], [0, 0, 1, 1], [], []>} : vector<16x32xf32>, vector<32x32xf32>, vector<16x32xf32> -> vector<16x32xf32>
    %316 = arith.addf %198, %315 : vector<16x32xf32>
    %c1_146 = arith.constant 1 : index
    %c0_147 = arith.constant 0 : index
    %c0_148 = arith.constant 0 : index
    %317 = vector.load %arg10[%c1_146, %c0_147, %c0_148] : memref<2x1x32xf32, #tpu.memory_space<vmem>>, vector<1x1x32xf32>
    %318 = vector.shape_cast %317 : vector<1x1x32xf32> to vector<1x32xf32>
    %319 = vector.broadcast %318 : vector<1x32xf32> to vector<16x32xf32>
    %320 = arith.addf %316, %319 : vector<16x32xf32>
    %c1_149 = arith.constant 1 : index
    %c0_150 = arith.constant 0 : index
    %c0_151 = arith.constant 0 : index
    %321 = vector.load %arg17[%c1_149, %c0_150, %c0_151] : memref<2x1x32xf32, #tpu.memory_space<vmem>>, vector<1x1x32xf32>
    %322 = vector.shape_cast %321 : vector<1x1x32xf32> to vector<1x32xf32>
    %c1_152 = arith.constant 1 : index
    %c0_153 = arith.constant 0 : index
    %c0_154 = arith.constant 0 : index
    %323 = vector.load %arg18[%c1_152, %c0_153, %c0_154] : memref<2x1x32xf32, #tpu.memory_space<vmem>>, vector<1x1x32xf32>
    %324 = vector.shape_cast %323 : vector<1x1x32xf32> to vector<1x32xf32>
    %cst_155 = arith.constant dense<0.000000e+00> : vector<16xf32>
    %325 = vector.multi_reduction <add>, %320, %cst_155 [1] : vector<16x32xf32> to vector<16xf32>
    %326 = vector.shape_cast %325 : vector<16xf32> to vector<16x1xf32>
    %cst_156 = arith.constant 3.200000e+01 : f32
    %327 = vector.broadcast %cst_156 : f32 to vector<16x1xf32>
    %328 = arith.divf %326, %327 : vector<16x1xf32>
    %329 = vector.broadcast %328 : vector<16x1xf32> to vector<16x32xf32>
    %330 = arith.subf %320, %329 : vector<16x32xf32>
    %331 = arith.mulf %330, %330 : vector<16x32xf32>
    %cst_157 = arith.constant dense<0.000000e+00> : vector<16xf32>
    %332 = vector.multi_reduction <add>, %331, %cst_157 [1] : vector<16x32xf32> to vector<16xf32>
    %333 = vector.shape_cast %332 : vector<16xf32> to vector<16x1xf32>
    %cst_158 = arith.constant 3.200000e+01 : f32
    %334 = vector.broadcast %cst_158 : f32 to vector<16x1xf32>
    %335 = arith.divf %333, %334 : vector<16x1xf32>
    %336 = vector.broadcast %328 : vector<16x1xf32> to vector<16x32xf32>
    %337 = arith.subf %320, %336 : vector<16x32xf32>
    %cst_159 = arith.constant 9.99999974E-6 : f32
    %338 = vector.broadcast %cst_159 : f32 to vector<16x1xf32>
    %339 = arith.addf %335, %338 : vector<16x1xf32>
    %340 = math.rsqrt %339 : vector<16x1xf32>
    %341 = vector.broadcast %340 : vector<16x1xf32> to vector<16x32xf32>
    %342 = arith.mulf %337, %341 : vector<16x32xf32>
    %343 = vector.broadcast %322 : vector<1x32xf32> to vector<16x32xf32>
    %344 = arith.mulf %342, %343 : vector<16x32xf32>
    %345 = vector.broadcast %324 : vector<1x32xf32> to vector<16x32xf32>
    %346 = arith.addf %344, %345 : vector<16x32xf32>
    %c1_160 = arith.constant 1 : index
    %c0_161 = arith.constant 0 : index
    %c0_162 = arith.constant 0 : index
    %347 = vector.load %arg13[%c1_160, %c0_161, %c0_162] : memref<2x32x128xf32, #tpu.memory_space<vmem>>, vector<1x32x128xf32>
    %348 = vector.shape_cast %347 : vector<1x32x128xf32> to vector<32x128xf32>
    %cst_163 = arith.constant dense<0.000000e+00> : vector<16x128xf32>
    %349 = tpu.matmul %346, %348, %cst_163 {dimension_numbers = #tpu.dot_dimension_numbers<[1], [0], [0], [1], [0, 0, 1, 1], [], []>} : vector<16x32xf32>, vector<32x128xf32>, vector<16x128xf32> -> vector<16x128xf32>
    %c1_164 = arith.constant 1 : index
    %c0_165 = arith.constant 0 : index
    %c0_166 = arith.constant 0 : index
    %350 = vector.load %arg14[%c1_164, %c0_165, %c0_166] : memref<2x1x128xf32, #tpu.memory_space<vmem>>, vector<1x1x128xf32>
    %351 = vector.shape_cast %350 : vector<1x1x128xf32> to vector<1x128xf32>
    %352 = vector.broadcast %351 : vector<1x128xf32> to vector<16x128xf32>
    %353 = arith.addf %349, %352 : vector<16x128xf32>
    %cst_167 = arith.constant 0.000000e+00 : f32
    %354 = vector.broadcast %cst_167 : f32 to vector<16x128xf32>
    %355 = arith.maximumf %353, %354 : vector<16x128xf32>
    %c1_168 = arith.constant 1 : index
    %c0_169 = arith.constant 0 : index
    %c0_170 = arith.constant 0 : index
    %356 = vector.load %arg15[%c1_168, %c0_169, %c0_170] : memref<2x128x32xf32, #tpu.memory_space<vmem>>, vector<1x128x32xf32>
    %357 = vector.shape_cast %356 : vector<1x128x32xf32> to vector<128x32xf32>
    %cst_171 = arith.constant dense<0.000000e+00> : vector<16x32xf32>
    %358 = tpu.matmul %355, %357, %cst_171 {dimension_numbers = #tpu.dot_dimension_numbers<[1], [0], [0], [1], [0, 0, 1, 1], [], []>} : vector<16x128xf32>, vector<128x32xf32>, vector<16x32xf32> -> vector<16x32xf32>
    %359 = arith.addf %320, %358 : vector<16x32xf32>
    %c1_172 = arith.constant 1 : index
    %c0_173 = arith.constant 0 : index
    %c0_174 = arith.constant 0 : index
    %360 = vector.load %arg16[%c1_172, %c0_173, %c0_174] : memref<2x1x32xf32, #tpu.memory_space<vmem>>, vector<1x1x32xf32>
    %361 = vector.shape_cast %360 : vector<1x1x32xf32> to vector<1x32xf32>
    %362 = vector.broadcast %361 : vector<1x32xf32> to vector<16x32xf32>
    %363 = arith.addf %359, %362 : vector<16x32xf32>
    %c0_175 = arith.constant 0 : index
    %c0_176 = arith.constant 0 : index
    %364 = vector.load %arg19[%c0_175, %c0_176] : memref<1x32xf32, #tpu.memory_space<vmem>>, vector<1x32xf32>
    %c0_177 = arith.constant 0 : index
    %c0_178 = arith.constant 0 : index
    %365 = vector.load %arg20[%c0_177, %c0_178] : memref<1x32xf32, #tpu.memory_space<vmem>>, vector<1x32xf32>
    %cst_179 = arith.constant dense<0.000000e+00> : vector<16xf32>
    %366 = vector.multi_reduction <add>, %363, %cst_179 [1] : vector<16x32xf32> to vector<16xf32>
    %367 = vector.shape_cast %366 : vector<16xf32> to vector<16x1xf32>
    %cst_180 = arith.constant 3.200000e+01 : f32
    %368 = vector.broadcast %cst_180 : f32 to vector<16x1xf32>
    %369 = arith.divf %367, %368 : vector<16x1xf32>
    %370 = vector.broadcast %369 : vector<16x1xf32> to vector<16x32xf32>
    %371 = arith.subf %363, %370 : vector<16x32xf32>
    %372 = arith.mulf %371, %371 : vector<16x32xf32>
    %cst_181 = arith.constant dense<0.000000e+00> : vector<16xf32>
    %373 = vector.multi_reduction <add>, %372, %cst_181 [1] : vector<16x32xf32> to vector<16xf32>
    %374 = vector.shape_cast %373 : vector<16xf32> to vector<16x1xf32>
    %cst_182 = arith.constant 3.200000e+01 : f32
    %375 = vector.broadcast %cst_182 : f32 to vector<16x1xf32>
    %376 = arith.divf %374, %375 : vector<16x1xf32>
    %377 = vector.broadcast %369 : vector<16x1xf32> to vector<16x32xf32>
    %378 = arith.subf %363, %377 : vector<16x32xf32>
    %cst_183 = arith.constant 9.99999974E-6 : f32
    %379 = vector.broadcast %cst_183 : f32 to vector<16x1xf32>
    %380 = arith.addf %376, %379 : vector<16x1xf32>
    %381 = math.rsqrt %380 : vector<16x1xf32>
    %382 = vector.broadcast %381 : vector<16x1xf32> to vector<16x32xf32>
    %383 = arith.mulf %378, %382 : vector<16x32xf32>
    %384 = vector.broadcast %364 : vector<1x32xf32> to vector<16x32xf32>
    %385 = arith.mulf %383, %384 : vector<16x32xf32>
    %386 = vector.broadcast %365 : vector<1x32xf32> to vector<16x32xf32>
    %387 = arith.addf %385, %386 : vector<16x32xf32>
    %388 = vector.shape_cast %387 : vector<16x32xf32> to vector<2x8x32xf32>
    %389 = vector.extract_strided_slice %388 {offsets = [0, 0, 0], sizes = [2, 2, 32], strides = [1, 1, 1]} : vector<2x8x32xf32> to vector<2x2x32xf32>
    %cst_184 = arith.constant dense<0xFF800000> : vector<2x32xf32>
    %390 = vector.multi_reduction <maximumf>, %389, %cst_184 [1] : vector<2x2x32xf32> to vector<2x32xf32>
    %391 = vector.shape_cast %390 : vector<2x32xf32> to vector<2x1x32xf32>
    %392 = vector.extract_strided_slice %388 {offsets = [0, 2, 0], sizes = [2, 2, 32], strides = [1, 1, 1]} : vector<2x8x32xf32> to vector<2x2x32xf32>
    %cst_185 = arith.constant dense<0xFF800000> : vector<2x32xf32>
    %393 = vector.multi_reduction <maximumf>, %392, %cst_185 [1] : vector<2x2x32xf32> to vector<2x32xf32>
    %394 = vector.shape_cast %393 : vector<2x32xf32> to vector<2x1x32xf32>
    %395 = vector.extract_strided_slice %388 {offsets = [0, 4, 0], sizes = [2, 2, 32], strides = [1, 1, 1]} : vector<2x8x32xf32> to vector<2x2x32xf32>
    %cst_186 = arith.constant dense<0xFF800000> : vector<2x32xf32>
    %396 = vector.multi_reduction <maximumf>, %395, %cst_186 [1] : vector<2x2x32xf32> to vector<2x32xf32>
    %397 = vector.shape_cast %396 : vector<2x32xf32> to vector<2x1x32xf32>
    %398 = vector.extract_strided_slice %388 {offsets = [0, 6, 0], sizes = [2, 2, 32], strides = [1, 1, 1]} : vector<2x8x32xf32> to vector<2x2x32xf32>
    %cst_187 = arith.constant dense<0xFF800000> : vector<2x32xf32>
    %399 = vector.multi_reduction <maximumf>, %398, %cst_187 [1] : vector<2x2x32xf32> to vector<2x32xf32>
    %400 = vector.shape_cast %399 : vector<2x32xf32> to vector<2x1x32xf32>
    %401 = tpu.concatenate %391, %394, %397, %400 in 1 : vector<2x1x32xf32>, vector<2x1x32xf32>, vector<2x1x32xf32>, vector<2x1x32xf32> -> vector<2x4x32xf32>
    %cst_188 = arith.constant dense<0xFF800000> : vector<2x32xf32>
    %402 = vector.multi_reduction <maximumf>, %401, %cst_188 [1] : vector<2x4x32xf32> to vector<2x32xf32>
    %403 = vector.shape_cast %402 : vector<2x32xf32> to vector<2x1x32xf32>
    %404 = tpu.concatenate %403, %401 in 1 : vector<2x1x32xf32>, vector<2x4x32xf32> -> vector<2x5x32xf32>
    %c0_189 = arith.constant 0 : index
    %c0_190 = arith.constant 0 : index
    %c0_191 = arith.constant 0 : index
    %405 = vector.load %arg21[%c0_189, %c0_190, %c0_191] : memref<2x5x32xf32, #tpu.memory_space<vmem>>, vector<2x5x32xf32>
    tpu.vector_store %arg21[%c0_189, %c0_190, %c0_191], %404 {strides = array<i32>} : memref<2x5x32xf32, #tpu.memory_space<vmem>>, vector<2x5x32xf32>,
    return
  }
}

</mosaic_0001>

<llo_original>
// kernel: tpu_custom_call.1
$region0: #{tpu_custom_call.1}
  #allocation0 [shape = 'u32[]', space=smem, size = 0x4, offset = 0x4, fixed_abs, tag = 'smem constant byte address 0x4 - core index']
  #allocation1 [shape = 'u32[144,128]{1,0:T(1,128)}', space=vmem, size = 0x12000, scoped, tag = 'internal scratch']
  %s0 = inlined_call_operand.hbm [shape: f32[2,8,20], index: 0, kind: input, shape index: {}]
  %s1 = inlined_call_operand.vmem [shape: f32[3,20,32], index: 1, kind: input, shape index: {}]
  %s2 = inlined_call_operand.hbm [shape: f32[8,32], index: 2, kind: input, shape index: {}]
  %s3 = inlined_call_operand.vmem [shape: f32[2,32,32], index: 3, kind: input, shape index: {}]
  %s4 = inlined_call_operand.vmem [shape: f32[2,1,32], index: 4, kind: input, shape index: {}]
  %s5 = inlined_call_operand.vmem [shape: f32[2,32,32], index: 5, kind: input, shape index: {}]
  %s6 = inlined_call_operand.vmem [shape: f32[2,1,32], index: 6, kind: input, shape index: {}]
  %s7 = inlined_call_operand.vmem [shape: f32[2,32,32], index: 7, kind: input, shape index: {}]
  %s8 = inlined_call_operand.vmem [shape: f32[2,1,32], index: 8, kind: input, shape index: {}]
  %s9 = inlined_call_operand.vmem [shape: f32[2,32,32], index: 9, kind: input, shape index: {}]
  %s10 = inlined_call_operand.vmem [shape: f32[2,1,32], index: 10, kind: input, shape index: {}]
  %s11 = inlined_call_operand.vmem [shape: f32[2,1,32], index: 11, kind: input, shape index: {}]
  %s12 = inlined_call_operand.vmem [shape: f32[2,1,32], index: 12, kind: input, shape index: {}]
  %s13 = inlined_call_operand.hbm [shape: f32[2,32,128], index: 13, kind: input, shape index: {}]
  %s14 = inlined_call_operand.vmem [shape: f32[2,1,128], index: 14, kind: input, shape index: {}]
  %s15 = inlined_call_operand.vmem [shape: f32[2,128,32], index: 15, kind: input, shape index: {}]
  %s16 = inlined_call_operand.vmem [shape: f32[2,1,32], index: 16, kind: input, shape index: {}]
  %s17 = inlined_call_operand.vmem [shape: f32[2,1,32], index: 17, kind: input, shape index: {}]
  %s18 = inlined_call_operand.vmem [shape: f32[2,1,32], index: 18, kind: input, shape index: {}]
  %s19 = inlined_call_operand.vmem [shape: f32[1,32], index: 19, kind: input, shape index: {}]
  %s20 = inlined_call_operand.vmem [shape: f32[1,32], index: 20, kind: input, shape index: {}]
  %s21 = inlined_call_operand.vmem [shape: f32[2,5,32], index: 21, kind: output, shape index: {}]
  %s22 = sld [smem:[#allocation0]]
  $region106: #{tpu_custom_call.1} parent=0
    _
  %s24 = ssub.s32 1, %s22
  %s25 = scalar_select 0, %s24, %s22
  $region1: #{tpu_custom_call.1} parent=0
    #allocation2 [shape = 'u8[8192]{0}', space=vmem, size = 0x2000, scoped, tag = 'input window, operand 0, single buffered']
    #allocation3 [shape = 's32[1]{0}', space=sflag, size = 0x4, scoped, tag = 'scoped memory for tpu_custom_call.1']
    #allocation4 [shape = 'u8[4096]{0}', space=vmem, size = 0x1000, scoped, tag = 'input window, operand 2, single buffered']
    #allocation5 [shape = 's32[1]{0}', space=sflag, size = 0x4, scoped, tag = 'scoped memory for tpu_custom_call.1']
    #allocation6 [shape = 'u8[32768]{0}', space=vmem, size = 0x8000, scoped, tag = 'input window, operand 13, single buffered']
    %26 = vsyncpa [#allocation3], 0
    %27 = vsyncpa [#allocation5], 0
    // Predicated region
    $region2: #{tpu_custom_call.1} parent=1 // pred_check
      _
    $region3: #{tpu_custom_call.1} parent=1 // pred_check_branch
      %29 = sbr.rel (0) target = $region5
    $region4: #{tpu_custom_call.1} parent=1 // pred_region
      %s31 = ssub.s32 256, 256
      %32 = vsyncadd [#allocation3], %s31
      %s33 = sshll.u32 [#allocation2], 4
      %s34 = int_to_ptr.vmem [resolvable:$true] %s33
      %39 = dma.hbm_to_vmem [thread:$0]  %s0, 256, %s34, [#allocation3], 128, 128, 8
    $region5: #{tpu_custom_call.1} parent=1 // pred_fallthru
      _
    // Predicated region
    $region6: #{tpu_custom_call.1} parent=1 // pred_check
      _
    $region7: #{tpu_custom_call.1} parent=1 // pred_check_branch
      %41 = sbr.rel (0) target = $region9
    $region8: #{tpu_custom_call.1} parent=1 // pred_region
      _
    $region9: #{tpu_custom_call.1} parent=1 // pred_fallthru
      _
    // Predicated region
    $region10: #{tpu_custom_call.1} parent=1 // pred_check
      _
    $region11: #{tpu_custom_call.1} parent=1 // pred_check_branch
      %43 = sbr.rel (0) target = $region13
    $region12: #{tpu_custom_call.1} parent=1 // pred_region
      %s45 = ssub.s32 128, 128
      %46 = vsyncadd [#allocation5], %s45
      %s48 = sshll.u32 [#allocation4], 4
      %s49 = int_to_ptr.vmem [resolvable:$true] %s48
      %51 = dma.hbm_to_vmem [thread:$0]  %s2, 128, %s49, [#allocation5]
    $region13: #{tpu_custom_call.1} parent=1 // pred_fallthru
      _
    // Predicated region
    $region14: #{tpu_custom_call.1} parent=1 // pred_check
      _
    $region15: #{tpu_custom_call.1} parent=1 // pred_check_branch
      %53 = sbr.rel (0) target = $region17
    $region16: #{tpu_custom_call.1} parent=1 // pred_region
      _
    $region17: #{tpu_custom_call.1} parent=1 // pred_fallthru
      _
    // Predicated region
    $region18: #{tpu_custom_call.1} parent=1 // pred_check
      _
    $region19: #{tpu_custom_call.1} parent=1 // pred_check_branch
      %55 = sbr.rel (0) target = $region21
    $region20: #{tpu_custom_call.1} parent=1 // pred_region
      _
    $region21: #{tpu_custom_call.1} parent=1 // pred_fallthru
      _
    // Predicated region
    $region22: #{tpu_custom_call.1} parent=1 // pred_check
      _
    $region23: #{tpu_custom_call.1} parent=1 // pred_check_branch
      %57 = sbr.rel (0) target = $region25
    $region24: #{tpu_custom_call.1} parent=1 // pred_region
      _
    $region25: #{tpu_custom_call.1} parent=1 // pred_fallthru
      _
    // Predicated region
    $region26: #{tpu_custom_call.1} parent=1 // pred_check
      _
    $region27: #{tpu_custom_call.1} parent=1 // pred_check_branch
      %59 = sbr.rel (0) target = $region29
    $region28: #{tpu_custom_call.1} parent=1 // pred_region
      _
    $region29: #{tpu_custom_call.1} parent=1 // pred_fallthru
      _
    // Predicated region
    $region30: #{tpu_custom_call.1} parent=1 // pred_check
      _
    $region31: #{tpu_custom_call.1} parent=1 // pred_check_branch
      %61 = sbr.rel (0) target = $region33
    $region32: #{tpu_custom_call.1} parent=1 // pred_region
      _
    $region33: #{tpu_custom_call.1} parent=1 // pred_fallthru
      _
    // Predicated region
    $region34: #{tpu_custom_call.1} parent=1 // pred_check
      _
    $region35: #{tpu_custom_call.1} parent=1 // pred_check_branch
      %63 = sbr.rel (0) target = $region37
    $region36: #{tpu_custom_call.1} parent=1 // pred_region
      _
    $region37: #{tpu_custom_call.1} parent=1 // pred_fallthru
      _
    // Predicated region
    $region38: #{tpu_custom_call.1} parent=1 // pred_check
      _
    $region39: #{tpu_custom_call.1} parent=1 // pred_check_branch
      %65 = sbr.rel (0) target = $region41
    $region40: #{tpu_custom_call.1} parent=1 // pred_region
      _
    $region41: #{tpu_custom_call.1} parent=1 // pred_fallthru
      _
    // Predicated region
    $region42: #{tpu_custom_call.1} parent=1 // pred_check
      _
    $region43: #{tpu_custom_call.1} parent=1 // pred_check_branch
      %67 = sbr.rel (0) target = $region45
    $region44: #{tpu_custom_call.1} parent=1 // pred_region
      _
    $region45: #{tpu_custom_call.1} parent=1 // pred_fallthru
      _
    // Predicated region
    $region46: #{tpu_custom_call.1} parent=1 // pred_check
      _
    $region47: #{tpu_custom_call.1} parent=1 // pred_check_branch
      %69 = sbr.rel (0) target = $region49
    $region48: #{tpu_custom_call.1} parent=1 // pred_region
      _
    $region49: #{tpu_custom_call.1} parent=1 // pred_fallthru
      _
    // Predicated region
    $region50: #{tpu_custom_call.1} parent=1 // pred_check
      _
    $region51: #{tpu_custom_call.1} parent=1 // pred_check_branch
      %71 = sbr.rel (0) target = $region53
    $region52: #{tpu_custom_call.1} parent=1 // pred_region
      _
    $region53: #{tpu_custom_call.1} parent=1 // pred_fallthru
      _
    // Predicated region
    $region54: #{tpu_custom_call.1} parent=1 // pred_check
      _
    $region55: #{tpu_custom_call.1} parent=1 // pred_check_branch
      %73 = sbr.rel (0) target = $region57
    $region56: #{tpu_custom_call.1} parent=1 // pred_region
      %s75 = ssub.s32 1024, 1024
      %76 = vsyncadd [#allocation5], %s75
      %s77 = sshll.u32 [#allocation6], 4
      %s78 = int_to_ptr.vmem [resolvable:$true] %s77
      %83 = dma.hbm_to_vmem [thread:$0]  %s13, 1024, %s78, [#allocation5], 128, 128, 8
    $region57: #{tpu_custom_call.1} parent=1 // pred_fallthru
      _
    // Predicated region
    $region58: #{tpu_custom_call.1} parent=1 // pred_check
      _
    $region59: #{tpu_custom_call.1} parent=1 // pred_check_branch
      %85 = sbr.rel (0) target = $region61
    $region60: #{tpu_custom_call.1} parent=1 // pred_region
      _
    $region61: #{tpu_custom_call.1} parent=1 // pred_fallthru
      _
    // Predicated region
    $region62: #{tpu_custom_call.1} parent=1 // pred_check
      _
    $region63: #{tpu_custom_call.1} parent=1 // pred_check_branch
      %87 = sbr.rel (0) target = $region65
    $region64: #{tpu_custom_call.1} parent=1 // pred_region
      _
    $region65: #{tpu_custom_call.1} parent=1 // pred_fallthru
      _
    // Predicated region
    $region66: #{tpu_custom_call.1} parent=1 // pred_check
      _
    $region67: #{tpu_custom_call.1} parent=1 // pred_check_branch
      %89 = sbr.rel (0) target = $region69
    $region68: #{tpu_custom_call.1} parent=1 // pred_region
      _
    $region69: #{tpu_custom_call.1} parent=1 // pred_fallthru
      _
    // Predicated region
    $region70: #{tpu_custom_call.1} parent=1 // pred_check
      _
    $region71: #{tpu_custom_call.1} parent=1 // pred_check_branch
      %91 = sbr.rel (0) target = $region73
    $region72: #{tpu_custom_call.1} parent=1 // pred_region
      _
    $region73: #{tpu_custom_call.1} parent=1 // pred_fallthru
      _
    // Predicated region
    $region74: #{tpu_custom_call.1} parent=1 // pred_check
      _
    $region75: #{tpu_custom_call.1} parent=1 // pred_check_branch
      %93 = sbr.rel (0) target = $region77
    $region76: #{tpu_custom_call.1} parent=1 // pred_region
      _
    $region77: #{tpu_custom_call.1} parent=1 // pred_fallthru
      _
    // Predicated region
    $region78: #{tpu_custom_call.1} parent=1 // pred_check
      _
    $region79: #{tpu_custom_call.1} parent=1 // pred_check_branch
      %95 = sbr.rel (0) target = $region81
    $region80: #{tpu_custom_call.1} parent=1 // pred_region
      _
    $region81: #{tpu_custom_call.1} parent=1 // pred_fallthru
      _
    // Predicated region
    $region82: #{tpu_custom_call.1} parent=1 // pred_check
      _
    $region83: #{tpu_custom_call.1} parent=1 // pred_check_branch
      %97 = sbr.rel (0) target = $region85
    $region84: #{tpu_custom_call.1} parent=1 // pred_region
      _
    $region85: #{tpu_custom_call.1} parent=1 // pred_fallthru
      _
    // Predicated region
    $region86: #{tpu_custom_call.1} parent=1 // pred_check
      _
    $region87: #{tpu_custom_call.1} parent=1 // pred_check_branch
      %99 = sbr.rel (0) target = $region89
    $region88: #{tpu_custom_call.1} parent=1 // pred_region
      %100 = dma.done [#allocation3], 256
    $region89: #{tpu_custom_call.1} parent=1 // pred_fallthru
      _
    // Predicated region
    $region90: #{tpu_custom_call.1} parent=1 // pred_check
      _
    $region91: #{tpu_custom_call.1} parent=1 // pred_check_branch
      %102 = sbr.rel (0) target = $region93
    $region92: #{tpu_custom_call.1} parent=1 // pred_region
      %103 = dma.done [#allocation5], 128
    $region93: #{tpu_custom_call.1} parent=1 // pred_fallthru
      _
    // Predicated region
    $region94: #{tpu_custom_call.1} parent=1 // pred_check
      _
    $region95: #{tpu_custom_call.1} parent=1 // pred_check_branch
      %105 = sbr.rel (0) target = $region97
    $region96: #{tpu_custom_call.1} parent=1 // pred_region
      %106 = dma.done [#allocation5], 1024
    $region97: #{tpu_custom_call.1} parent=1 // pred_fallthru
      _
    %v107 = vld [vmem:[#allocation2] sm:$0xff]
    %v108 = vld [vmem:[#allocation2 + $0x8] sm:$0xff]
    %v109 = vld [vmem:[%s1] sm:$0xff]
    %v110 = vld [vmem:[%s1 + $0x8] sm:$0xff]
    %v111 = vld [vmem:[%s1 + $0x10] sm:$0xf]
    %v112 = vld [vmem:[%s1 + $0x18] sm:$0xff]
    %v113 = vld [vmem:[%s1 + $0x20] sm:$0xff]
    %v114 = vld [vmem:[%s1 + $0x28] sm:$0xf]
    %v115 = vld [vmem:[%s1 + $0x30] sm:$0xff]
    %v116 = vld [vmem:[%s1 + $0x38] sm:$0xff]
    %v117 = vld [vmem:[%s1 + $0x40] sm:$0xf]
    %vm118 = vcmask 162816
    %v120 = vsel %vm118, %v107, 0
    %v123 = vsel %vm118, %v108, 0
    %vm125 = vcmask 1043456
    %v127 = vsel %vm125, %v111, 0
    %129 = vmatprep.subr.mxu0 0.0
    %130 = vmatpush1.msra.mxu0 %v109
    %131 = vmatprep.subr.mxu0 0.0
    %132 = vmatpush1.msra.mxu0 %v110
    %133 = vmatprep.subr.mxu0 0.0
    %134 = vmatpush1.msra.mxu0 %v127
    %135 = vmatprep.subr.mxu0 0.0
    %136 = vmatpush1.msra.mxu0 0.0
    %137 = vmatprep.subr.mxu0 0.0
    %138 = vmatpush1.msra.mxu0 0.0
    %139 = vmatprep.subr.mxu0 0.0
    %140 = vmatpush1.msra.mxu0 0.0
    %141 = vmatprep.subr.mxu0 0.0
    %142 = vmatpush1.msra.mxu0 0.0
    %143 = vmatprep.subr.mxu0 0.0
    %144 = vmatpush1.msra.mxu0 0.0
    %145 = vmatprep.subr.mxu0 0.0
    %146 = vmatpush1.msra.mxu0 0.0
    %147 = vmatprep.subr.mxu0 0.0
    %148 = vmatpush1.msra.mxu0 0.0
    %149 = vmatprep.subr.mxu0 0.0
    %150 = vmatpush1.msra.mxu0 0.0
    %151 = vmatprep.subr.mxu0 0.0
    %152 = vmatpush1.msra.mxu0 0.0
    %153 = vmatprep.subr.mxu0 0.0
    %154 = vmatpush1.msra.mxu0 0.0
    %155 = vmatprep.subr.mxu0 0.0
    %156 = vmatpush1.msra.mxu0 0.0
    %157 = vmatprep.subr.mxu0 0.0
    %158 = vmatpush1.msra.mxu0 0.0
    %159 = vmatprep.subr.mxu0 0.0
    %160 = vmatpush1.msra.mxu0 0.0
    %161 = vmatprep.subr.mxu0 0.0
    %162 = vmatpush1.msra.mxu0 0.0
    %163 = vmatprep.subr.mxu0 0.0
    %164 = vmatpush1.msra.mxu0 0.0
    %165 = vmatprep.subr.mxu0 0.0
    %166 = vmatpush1.msra.mxu0 0.0
    %167 = vmatprep.subr.mxu0 0.0
    %168 = vmatpush1.msra.mxu0 0.0
    %169 = vmatprep.subr.mxu0 0.0
    %170 = vmatpush1.msra.mxu0 0.0
    %171 = vmatprep.subr.mxu0 0.0
    %172 = vmatpush1.msra.mxu0 0.0
    %173 = vmatprep.subr.mxu0 0.0
    %174 = vmatpush1.msra.mxu0 0.0
    %175 = vmatprep.subr.mxu0 0.0
    %176 = vmatpush1.msra.mxu0 0.0
    %177 = vmatprep.subr.mxu0 0.0
    %178 = vmatpush1.msra.mxu0 0.0
    %179 = vmatprep.subr.mxu0 0.0
    %180 = vmatpush1.msra.mxu0 0.0
    %181 = vmatprep.subr.mxu0 0.0
    %182 = vmatpush1.msra.mxu0 0.0
    %183 = vmatprep.subr.mxu0 0.0
    %184 = vmatpush1.msra.mxu0 0.0
    %185 = vmatprep.subr.mxu0 0.0
    %186 = vmatpush1.msra.mxu0 0.0
    %187 = vmatprep.subr.mxu0 0.0
    %188 = vmatpush1.msra.mxu0 0.0
    %189 = vmatprep.subr.mxu0 0.0
    %190 = vmatpush1.msra.mxu0 0.0
    %191 = vmatprep.subr.mxu0 0.0
    %192 = vmatpush1.msra.mxu0 0.0
    %193 = vmatprep.mubr.f32.mxu0 0.0
    %194 = vmatmul.mubr.f32.gmra.mrb[0].mxu0 %v120
    %v195 = vpop.f32.mrb[0].mxu0
    %v196 = vadd.f32 0.0, %v195
    %v197 = vpop.f32.mrb[0].mxu0
    %198 = vmatprep.mubr.f32.mxu0 0.0
    %199 = vmatmul.mubr.f32.gmra.mrb[0].mxu0 %v123
    %v200 = vpop.f32.mrb[0].mxu0
    %v201 = vadd.f32 0.0, %v200
    %v202 = vpop.f32.mrb[0].mxu0
    %203 = vdwg.mxu0
    %v205 = vsel %vm125, %v114, 0
    %207 = vmatprep.subr.mxu0 0.0
    %208 = vmatpush1.msra.mxu0 %v112
    %209 = vmatprep.subr.mxu0 0.0
    %210 = vmatpush1.msra.mxu0 %v113
    %211 = vmatprep.subr.mxu0 0.0
    %212 = vmatpush1.msra.mxu0 %v205
    %213 = vmatprep.subr.mxu0 0.0
    %214 = vmatpush1.msra.mxu0 0.0
    %215 = vmatprep.subr.mxu0 0.0
    %216 = vmatpush1.msra.mxu0 0.0
    %217 = vmatprep.subr.mxu0 0.0
    %218 = vmatpush1.msra.mxu0 0.0
    %219 = vmatprep.subr.mxu0 0.0
    %220 = vmatpush1.msra.mxu0 0.0
    %221 = vmatprep.subr.mxu0 0.0
    %222 = vmatpush1.msra.mxu0 0.0
    %223 = vmatprep.subr.mxu0 0.0
    %224 = vmatpush1.msra.mxu0 0.0
    %225 = vmatprep.subr.mxu0 0.0
    %226 = vmatpush1.msra.mxu0 0.0
    %227 = vmatprep.subr.mxu0 0.0
    %228 = vmatpush1.msra.mxu0 0.0
    %229 = vmatprep.subr.mxu0 0.0
    %230 = vmatpush1.msra.mxu0 0.0
    %231 = vmatprep.subr.mxu0 0.0
    %232 = vmatpush1.msra.mxu0 0.0
    %233 = vmatprep.subr.mxu0 0.0
    %234 = vmatpush1.msra.mxu0 0.0
    %235 = vmatprep.subr.mxu0 0.0
    %236 = vmatpush1.msra.mxu0 0.0
    %237 = vmatprep.subr.mxu0 0.0
    %238 = vmatpush1.msra.mxu0 0.0
    %239 = vmatprep.subr.mxu0 0.0
    %240 = vmatpush1.msra.mxu0 0.0
    %241 = vmatprep.subr.mxu0 0.0
    %242 = vmatpush1.msra.mxu0 0.0
    %243 = vmatprep.subr.mxu0 0.0
    %244 = vmatpush1.msra.mxu0 0.0
    %245 = vmatprep.subr.mxu0 0.0
    %246 = vmatpush1.msra.mxu0 0.0
    %247 = vmatprep.subr.mxu0 0.0
    %248 = vmatpush1.msra.mxu0 0.0
    %249 = vmatprep.subr.mxu0 0.0
    %250 = vmatpush1.msra.mxu0 0.0
    %251 = vmatprep.subr.mxu0 0.0
    %252 = vmatpush1.msra.mxu0 0.0
    %253 = vmatprep.subr.mxu0 0.0
    %254 = vmatpush1.msra.mxu0 0.0
    %255 = vmatprep.subr.mxu0 0.0
    %256 = vmatpush1.msra.mxu0 0.0
    %257 = vmatprep.subr.mxu0 0.0
    %258 = vmatpush1.msra.mxu0 0.0
    %259 = vmatprep.subr.mxu0 0.0
    %260 = vmatpush1.msra.mxu0 0.0
    %261 = vmatprep.subr.mxu0 0.0
    %262 = vmatpush1.msra.mxu0 0.0
    %263 = vmatprep.subr.mxu0 0.0
    %264 = vmatpush1.msra.mxu0 0.0
    %265 = vmatprep.subr.mxu0 0.0
    %266 = vmatpush1.msra.mxu0 0.0
    %267 = vmatprep.subr.mxu0 0.0
    %268 = vmatpush1.msra.mxu0 0.0
    %269 = vmatprep.subr.mxu0 0.0
    %270 = vmatpush1.msra.mxu0 0.0
    %271 = vmatprep.mubr.f32.mxu0 0.0
    %272 = vmatmul.mubr.f32.gmra.mrb[0].mxu0 %v120
    %v273 = vpop.f32.mrb[0].mxu0
    %v274 = vadd.f32 0.0, %v273
    %v275 = vpop.f32.mrb[0].mxu0
    %276 = vmatprep.mubr.f32.mxu0 0.0
    %277 = vmatmul.mubr.f32.gmra.mrb[0].mxu0 %v123
    %v278 = vpop.f32.mrb[0].mxu0
    %v279 = vadd.f32 0.0, %v278
    %v280 = vpop.f32.mrb[0].mxu0
    %281 = vdwg.mxu0
    %v283 = vsel %vm125, %v117, 0
    %285 = vmatprep.subr.mxu0 0.0
    %286 = vmatpush1.msra.mxu0 %v115
    %287 = vmatprep.subr.mxu0 0.0
    %288 = vmatpush1.msra.mxu0 %v116
    %289 = vmatprep.subr.mxu0 0.0
    %290 = vmatpush1.msra.mxu0 %v283
    %291 = vmatprep.subr.mxu0 0.0
    %292 = vmatpush1.msra.mxu0 0.0
    %293 = vmatprep.subr.mxu0 0.0
    %294 = vmatpush1.msra.mxu0 0.0
    %295 = vmatprep.subr.mxu0 0.0
    %296 = vmatpush1.msra.mxu0 0.0
    %297 = vmatprep.subr.mxu0 0.0
    %298 = vmatpush1.msra.mxu0 0.0
    %299 = vmatprep.subr.mxu0 0.0
    %300 = vmatpush1.msra.mxu0 0.0
    %301 = vmatprep.subr.mxu0 0.0
    %302 = vmatpush1.msra.mxu0 0.0
    %303 = vmatprep.subr.mxu0 0.0
    %304 = vmatpush1.msra.mxu0 0.0
    %305 = vmatprep.subr.mxu0 0.0
    %306 = vmatpush1.msra.mxu0 0.0
    %307 = vmatprep.subr.mxu0 0.0
    %308 = vmatpush1.msra.mxu0 0.0
    %309 = vmatprep.subr.mxu0 0.0
    %310 = vmatpush1.msra.mxu0 0.0
    %311 = vmatprep.subr.mxu0 0.0
    %312 = vmatpush1.msra.mxu0 0.0
    %313 = vmatprep.subr.mxu0 0.0
    %314 = vmatpush1.msra.mxu0 0.0
    %315 = vmatprep.subr.mxu0 0.0
    %316 = vmatpush1.msra.mxu0 0.0
    %317 = vmatprep.subr.mxu0 0.0
    %318 = vmatpush1.msra.mxu0 0.0
    %319 = vmatprep.subr.mxu0 0.0
    %320 = vmatpush1.msra.mxu0 0.0
    %321 = vmatprep.subr.mxu0 0.0
    %322 = vmatpush1.msra.mxu0 0.0
    %323 = vmatprep.subr.mxu0 0.0
    %324 = vmatpush1.msra.mxu0 0.0
    %325 = vmatprep.subr.mxu0 0.0
    %326 = vmatpush1.msra.mxu0 0.0
    %327 = vmatprep.subr.mxu0 0.0
    %328 = vmatpush1.msra.mxu0 0.0
    %329 = vmatprep.subr.mxu0 0.0
    %330 = vmatpush1.msra.mxu0 0.0
    %331 = vmatprep.subr.mxu0 0.0
    %332 = vmatpush1.msra.mxu0 0.0
    %333 = vmatprep.subr.mxu0 0.0
    %334 = vmatpush1.msra.mxu0 0.0
    %335 = vmatprep.subr.mxu0 0.0
    %336 = vmatpush1.msra.mxu0 0.0
    %337 = vmatprep.subr.mxu0 0.0
    %338 = vmatpush1.msra.mxu0 0.0
    %339 = vmatprep.subr.mxu0 0.0
    %340 = vmatpush1.msra.mxu0 0.0
    %341 = vmatprep.subr.mxu0 0.0
    %342 = vmatpush1.msra.mxu0 0.0
    %343 = vmatprep.subr.mxu0 0.0
    %344 = vmatpush1.msra.mxu0 0.0
    %345 = vmatprep.subr.mxu0 0.0
    %346 = vmatpush1.msra.mxu0 0.0
    %347 = vmatprep.subr.mxu0 0.0
    %348 = vmatpush1.msra.mxu0 0.0
    %349 = vmatprep.mubr.f32.mxu0 0.0
    %350 = vmatmul.mubr.f32.gmra.mrb[0].mxu0 %v120
    %v351 = vpop.f32.mrb[0].mxu0
    %v352 = vadd.f32 0.0, %v351
    %v353 = vpop.f32.mrb[0].mxu0
    %354 = vmatprep.mubr.f32.mxu0 0.0
    %355 = vmatmul.mubr.f32.gmra.mrb[0].mxu0 %v123
    %v356 = vpop.f32.mrb[0].mxu0
    %v357 = vadd.f32 0.0, %v356
    %v358 = vpop.f32.mrb[0].mxu0
    %359 = vdwg.mxu0
    %v360 = vlaneseq
    %v361 = vshrl.u32 %v360, 7
    %vm362 = vcmp.eq.s32.totalorder %v361, 0
    %v363 = vrot.slane %v196, 7
    %v364 = vrot.slane %v201, 7
    %vm365 = vcmp.lt.s32.totalorder %v361, 1
    %v366 = vsel %vm365, %v363, %v364
    %v367 = vsel %vm365, %v364, %v363
    %v368 = vsel %vm362, 0.0, %v367
    %v369 = vsel %vm362, 0.0, %v366
    %vm370 = vcmp.eq.s32.totalorder %v361, 7
    %v371 = vrot.slane %v352, 1
    %v372 = vrot.slane %v357, 1
    %vm373 = vcmp.lt.s32.totalorder %v361, 7
    %v374 = vsel %vm373, %v371, %v372
    %v375 = vsel %vm373, %v372, %v371
    %v376 = vsel %vm370, 0.0, %v374
    %v377 = vsel %vm370, 0.0, %v375
    %v378 = vadd.f32 %v368, %v274
    %v379 = vadd.f32 %v369, %v279
    %v380 = vadd.f32 %v378, %v376
    %v381 = vadd.f32 %v379, %v377
    %v382 = vmul.f32 %v380, 5.656854
    %v383 = vmul.f32 %v381, 5.656854
    %v384 = vld [vmem:[#allocation4] sm:$0xff]
    %v385 = vadd.f32 %v382, %v384
    %v386 = vadd.f32 %v383, %v384
    %v387 = vld [vmem:[%s11] sm:$0x1]
    %v388 = vld [vmem:[%s12] sm:$0x1]
    %vm389 = vcmask 261120
    %v390 = vsel %vm389, %v385, 0.0
    %391 = vadd.xlane.f32.xlu0 %v390
    %v392 = vpop.xlane.xlu0 %391
    %v393 = vsel %vm389, %v386, 0.0
    %394 = vadd.xlane.f32.xlu0 %v393
    %v395 = vpop.xlane.xlu0 %394
    %v396 = vrcp.pop 32.0
    %v397 = vmul.f32 %v392, %v396
    %v398 = vmul.f32 %v395, %v396
    %v399 = vsub.f32 %v385, %v397
    %v400 = vsub.f32 %v386, %v398
    %v401 = vmul.f32 %v399, %v399
    %v402 = vmul.f32 %v400, %v400
    %v403 = vsel %vm389, %v401, 0.0
    %404 = vadd.xlane.f32.xlu0 %v403
    %v405 = vpop.xlane.xlu0 %404
    %v406 = vsel %vm389, %v402, 0.0
    %407 = vadd.xlane.f32.xlu0 %v406
    %v408 = vpop.xlane.xlu0 %407
    %v409 = vmul.f32 %v405, %v396
    %v410 = vmul.f32 %v408, %v396
    %v411 = vadd.f32 %v409, 1e-05
    %v412 = vadd.f32 %v410, 1e-05
    %v413 = vrsqrt.pop %v411
    %v414 = vrsqrt.pop %v412
    %v415 = vmul.f32 %v399, %v413
    %v416 = vmul.f32 %v400, %v414
    %v418 = vlaneseq
    %v419 = vshrl.u32 %v418, 7
    %v420 = vsub.s32 0, %v419
    %v421 = vrot.slane %v387, %v420
    %v423 = vmul.f32 %v415, %v421
    %v424 = vmul.f32 %v416, %v421
    %v426 = vlaneseq
    %v427 = vshrl.u32 %v426, 7
    %v428 = vsub.s32 0, %v427
    %v429 = vrot.slane %v388, %v428
    %v431 = vadd.f32 %v423, %v429
    %v432 = vadd.f32 %v424, %v429
    %v433 = vld [vmem:[%s3] sm:$0xff]
    %v434 = vld [vmem:[%s3 + $0x8] sm:$0xff]
    %v435 = vld [vmem:[%s3 + $0x10] sm:$0xff]
    %v436 = vld [vmem:[%s3 + $0x18] sm:$0xff]
    %v437 = vld [vmem:[%s4] sm:$0x1]
    %v439 = vlaneseq
    %v440 = vshrl.u32 %v439, 7
    %v441 = vsub.s32 0, %v440
    %v442 = vrot.slane %v437, %v441
    %v445 = vsel %vm389, %v431, 0
    %v448 = vsel %vm389, %v432, 0
    %450 = vmatprep.subr.mxu0 0.0
    %451 = vmatpush1.msra.mxu0 %v433
    %452 = vmatprep.subr.mxu0 0.0
    %453 = vmatpush1.msra.mxu0 %v434
    %454 = vmatprep.subr.mxu0 0.0
    %455 = vmatpush1.msra.mxu0 %v435
    %456 = vmatprep.subr.mxu0 0.0
    %457 = vmatpush1.msra.mxu0 %v436
    %458 = vmatprep.subr.mxu0 0.0
    %459 = vmatpush1.msra.mxu0 0.0
    %460 = vmatprep.subr.mxu0 0.0
    %461 = vmatpush1.msra.mxu0 0.0
    %462 = vmatprep.subr.mxu0 0.0
    %463 = vmatpush1.msra.mxu0 0.0
    %464 = vmatprep.subr.mxu0 0.0
    %465 = vmatpush1.msra.mxu0 0.0
    %466 = vmatprep.subr.mxu0 0.0
    %467 = vmatpush1.msra.mxu0 0.0
    %468 = vmatprep.subr.mxu0 0.0
    %469 = vmatpush1.msra.mxu0 0.0
    %470 = vmatprep.subr.mxu0 0.0
    %471 = vmatpush1.msra.mxu0 0.0
    %472 = vmatprep.subr.mxu0 0.0
    %473 = vmatpush1.msra.mxu0 0.0
    %474 = vmatprep.subr.mxu0 0.0
    %475 = vmatpush1.msra.mxu0 0.0
    %476 = vmatprep.subr.mxu0 0.0
    %477 = vmatpush1.msra.mxu0 0.0
    %478 = vmatprep.subr.mxu0 0.0
    %479 = vmatpush1.msra.mxu0 0.0
    %480 = vmatprep.subr.mxu0 0.0
    %481 = vmatpush1.msra.mxu0 0.0
    %482 = vmatprep.subr.mxu0 0.0
    %483 = vmatpush1.msra.mxu0 0.0
    %484 = vmatprep.subr.mxu0 0.0
    %485 = vmatpush1.msra.mxu0 0.0
    %486 = vmatprep.subr.mxu0 0.0
    %487 = vmatpush1.msra.mxu0 0.0
    %488 = vmatprep.subr.mxu0 0.0
    %489 = vmatpush1.msra.mxu0 0.0
    %490 = vmatprep.subr.mxu0 0.0
    %491 = vmatpush1.msra.mxu0 0.0
    %492 = vmatprep.subr.mxu0 0.0
    %493 = vmatpush1.msra.mxu0 0.0
    %494 = vmatprep.subr.mxu0 0.0
    %495 = vmatpush1.msra.mxu0 0.0
    %496 = vmatprep.subr.mxu0 0.0
    %497 = vmatpush1.msra.mxu0 0.0
    %498 = vmatprep.subr.mxu0 0.0
    %499 = vmatpush1.msra.mxu0 0.0
    %500 = vmatprep.subr.mxu0 0.0
    %501 = vmatpush1.msra.mxu0 0.0
    %502 = vmatprep.subr.mxu0 0.0
    %503 = vmatpush1.msra.mxu0 0.0
    %504 = vmatprep.subr.mxu0 0.0
    %505 = vmatpush1.msra.mxu0 0.0
    %506 = vmatprep.subr.mxu0 0.0
    %507 = vmatpush1.msra.mxu0 0.0
    %508 = vmatprep.subr.mxu0 0.0
    %509 = vmatpush1.msra.mxu0 0.0
    %510 = vmatprep.subr.mxu0 0.0
    %511 = vmatpush1.msra.mxu0 0.0
    %512 = vmatprep.subr.mxu0 0.0
    %513 = vmatpush1.msra.mxu0 0.0
    %514 = vmatprep.mubr.f32.mxu0 0.0
    %515 = vmatmul.mubr.f32.gmra.mrb[0].mxu0 %v445
    %v516 = vpop.f32.mrb[0].mxu0
    %v517 = vadd.f32 %v442, %v516
    %v518 = vpop.f32.mrb[0].mxu0
    %519 = vmatprep.mubr.f32.mxu0 0.0
    %520 = vmatmul.mubr.f32.gmra.mrb[0].mxu0 %v448
    %v521 = vpop.f32.mrb[0].mxu0
    %v522 = vadd.f32 %v442, %v521
    %v523 = vpop.f32.mrb[0].mxu0
    %524 = vdwg.mxu0
    %v525 = vmul.f32 %v517, 0.35355338
    %v526 = vmul.f32 %v522, 0.35355338
    %v527 = vld [vmem:[%s5] sm:$0xff]
    %v528 = vld [vmem:[%s5 + $0x8] sm:$0xff]
    %v529 = vld [vmem:[%s5 + $0x10] sm:$0xff]
    %v530 = vld [vmem:[%s5 + $0x18] sm:$0xff]
    %v531 = vld [vmem:[%s6] sm:$0x1]
    %v533 = vlaneseq
    %v534 = vshrl.u32 %v533, 7
    %v535 = vsub.s32 0, %v534
    %v536 = vrot.slane %v531, %v535
    %538 = vmatprep.subr.mxu0 0.0
    %539 = vmatpush1.msra.mxu0 %v527
    %540 = vmatprep.subr.mxu0 0.0
    %541 = vmatpush1.msra.mxu0 %v528
    %542 = vmatprep.subr.mxu0 0.0
    %543 = vmatpush1.msra.mxu0 %v529
    %544 = vmatprep.subr.mxu0 0.0
    %545 = vmatpush1.msra.mxu0 %v530
    %546 = vmatprep.subr.mxu0 0.0
    %547 = vmatpush1.msra.mxu0 0.0
    %548 = vmatprep.subr.mxu0 0.0
    %549 = vmatpush1.msra.mxu0 0.0
    %550 = vmatprep.subr.mxu0 0.0
    %551 = vmatpush1.msra.mxu0 0.0
    %552 = vmatprep.subr.mxu0 0.0
    %553 = vmatpush1.msra.mxu0 0.0
    %554 = vmatprep.subr.mxu0 0.0
    %555 = vmatpush1.msra.mxu0 0.0
    %556 = vmatprep.subr.mxu0 0.0
    %557 = vmatpush1.msra.mxu0 0.0
    %558 = vmatprep.subr.mxu0 0.0
    %559 = vmatpush1.msra.mxu0 0.0
    %560 = vmatprep.subr.mxu0 0.0
    %561 = vmatpush1.msra.mxu0 0.0
    %562 = vmatprep.subr.mxu0 0.0
    %563 = vmatpush1.msra.mxu0 0.0
    %564 = vmatprep.subr.mxu0 0.0
    %565 = vmatpush1.msra.mxu0 0.0
    %566 = vmatprep.subr.mxu0 0.0
    %567 = vmatpush1.msra.mxu0 0.0
    %568 = vmatprep.subr.mxu0 0.0
    %569 = vmatpush1.msra.mxu0 0.0
    %570 = vmatprep.subr.mxu0 0.0
    %571 = vmatpush1.msra.mxu0 0.0
    %572 = vmatprep.subr.mxu0 0.0
    %573 = vmatpush1.msra.mxu0 0.0
    %574 = vmatprep.subr.mxu0 0.0
    %575 = vmatpush1.msra.mxu0 0.0
    %576 = vmatprep.subr.mxu0 0.0
    %577 = vmatpush1.msra.mxu0 0.0
    %578 = vmatprep.subr.mxu0 0.0
    %579 = vmatpush1.msra.mxu0 0.0
    %580 = vmatprep.subr.mxu0 0.0
    %581 = vmatpush1.msra.mxu0 0.0
    %582 = vmatprep.subr.mxu0 0.0
    %583 = vmatpush1.msra.mxu0 0.0
    %584 = vmatprep.subr.mxu0 0.0
    %585 = vmatpush1.msra.mxu0 0.0
    %586 = vmatprep.subr.mxu0 0.0
    %587 = vmatpush1.msra.mxu0 0.0
    %588 = vmatprep.subr.mxu0 0.0
    %589 = vmatpush1.msra.mxu0 0.0
    %590 = vmatprep.subr.mxu0 0.0
    %591 = vmatpush1.msra.mxu0 0.0
    %592 = vmatprep.subr.mxu0 0.0
    %593 = vmatpush1.msra.mxu0 0.0
    %594 = vmatprep.subr.mxu0 0.0
    %595 = vmatpush1.msra.mxu0 0.0
    %596 = vmatprep.subr.mxu0 0.0
    %597 = vmatpush1.msra.mxu0 0.0
    %598 = vmatprep.subr.mxu0 0.0
    %599 = vmatpush1.msra.mxu0 0.0
    %600 = vmatprep.subr.mxu0 0.0
    %601 = vmatpush1.msra.mxu0 0.0
    %602 = vmatprep.mubr.f32.mxu0 0.0
    %603 = vmatmul.mubr.f32.gmra.mrb[0].mxu0 %v445
    %v604 = vpop.f32.mrb[0].mxu0
    %v605 = vadd.f32 %v536, %v604
    %v606 = vpop.f32.mrb[0].mxu0
    %607 = vmatprep.mubr.f32.mxu0 0.0
    %608 = vmatmul.mubr.f32.gmra.mrb[0].mxu0 %v448
    %v609 = vpop.f32.mrb[0].mxu0
    %v610 = vadd.f32 %v536, %v609
    %v611 = vpop.f32.mrb[0].mxu0
    %612 = vdwg.mxu0
    %v613 = vld [vmem:[%s7] sm:$0xff]
    %v614 = vld [vmem:[%s7 + $0x8] sm:$0xff]
    %v615 = vld [vmem:[%s7 + $0x10] sm:$0xff]
    %v616 = vld [vmem:[%s7 + $0x18] sm:$0xff]
    %v617 = vld [vmem:[%s8] sm:$0x1]
    %v619 = vlaneseq
    %v620 = vshrl.u32 %v619, 7
    %v621 = vsub.s32 0, %v620
    %v622 = vrot.slane %v617, %v621
    %624 = vmatprep.subr.mxu0 0.0
    %625 = vmatpush1.msra.mxu0 %v613
    %626 = vmatprep.subr.mxu0 0.0
    %627 = vmatpush1.msra.mxu0 %v614
    %628 = vmatprep.subr.mxu0 0.0
    %629 = vmatpush1.msra.mxu0 %v615
    %630 = vmatprep.subr.mxu0 0.0
    %631 = vmatpush1.msra.mxu0 %v616
    %632 = vmatprep.subr.mxu0 0.0
    %633 = vmatpush1.msra.mxu0 0.0
    %634 = vmatprep.subr.mxu0 0.0
    %635 = vmatpush1.msra.mxu0 0.0
    %636 = vmatprep.subr.mxu0 0.0
    %637 = vmatpush1.msra.mxu0 0.0
    %638 = vmatprep.subr.mxu0 0.0
    %639 = vmatpush1.msra.mxu0 0.0
    %640 = vmatprep.subr.mxu0 0.0
    %641 = vmatpush1.msra.mxu0 0.0
    %642 = vmatprep.subr.mxu0 0.0
    %643 = vmatpush1.msra.mxu0 0.0
    %644 = vmatprep.subr.mxu0 0.0
    %645 = vmatpush1.msra.mxu0 0.0
    %646 = vmatprep.subr.mxu0 0.0
    %647 = vmatpush1.msra.mxu0 0.0
    %648 = vmatprep.subr.mxu0 0.0
    %649 = vmatpush1.msra.mxu0 0.0
    %650 = vmatprep.subr.mxu0 0.0
    %651 = vmatpush1.msra.mxu0 0.0
    %652 = vmatprep.subr.mxu0 0.0
    %653 = vmatpush1.msra.mxu0 0.0
    %654 = vmatprep.subr.mxu0 0.0
    %655 = vmatpush1.msra.mxu0 0.0
    %656 = vmatprep.subr.mxu0 0.0
    %657 = vmatpush1.msra.mxu0 0.0
    %658 = vmatprep.subr.mxu0 0.0
    %659 = vmatpush1.msra.mxu0 0.0
    %660 = vmatprep.subr.mxu0 0.0
    %661 = vmatpush1.msra.mxu0 0.0
    %662 = vmatprep.subr.mxu0 0.0
    %663 = vmatpush1.msra.mxu0 0.0
    %664 = vmatprep.subr.mxu0 0.0
    %665 = vmatpush1.msra.mxu0 0.0
    %666 = vmatprep.subr.mxu0 0.0
    %667 = vmatpush1.msra.mxu0 0.0
    %668 = vmatprep.subr.mxu0 0.0
    %669 = vmatpush1.msra.mxu0 0.0
    %670 = vmatprep.subr.mxu0 0.0
    %671 = vmatpush1.msra.mxu0 0.0
    %672 = vmatprep.subr.mxu0 0.0
    %673 = vmatpush1.msra.mxu0 0.0
    %674 = vmatprep.subr.mxu0 0.0
    %675 = vmatpush1.msra.mxu0 0.0
    %676 = vmatprep.subr.mxu0 0.0
    %677 = vmatpush1.msra.mxu0 0.0
    %678 = vmatprep.subr.mxu0 0.0
    %679 = vmatpush1.msra.mxu0 0.0
    %680 = vmatprep.subr.mxu0 0.0
    %681 = vmatpush1.msra.mxu0 0.0
    %682 = vmatprep.subr.mxu0 0.0
    %683 = vmatpush1.msra.mxu0 0.0
    %684 = vmatprep.subr.mxu0 0.0
    %685 = vmatpush1.msra.mxu0 0.0
    %686 = vmatprep.subr.mxu0 0.0
    %687 = vmatpush1.msra.mxu0 0.0
    %688 = vmatprep.mubr.f32.mxu0 0.0
    %689 = vmatmul.mubr.f32.gmra.mrb[0].mxu0 %v445
    %v690 = vpop.f32.mrb[0].mxu0
    %v691 = vadd.f32 %v622, %v690
    %v692 = vpop.f32.mrb[0].mxu0
    %693 = vmatprep.mubr.f32.mxu0 0.0
    %694 = vmatmul.mubr.f32.gmra.mrb[0].mxu0 %v448
    %v695 = vpop.f32.mrb[0].mxu0
    %v696 = vadd.f32 %v622, %v695
    %v697 = vpop.f32.mrb[0].mxu0
    %698 = vdwg.mxu0
    %vm699 = vcmask 64512
    %v701 = vsel %vm699, %v525, 0
    %v704 = vsel %vm699, %v605, 0
    %706 = vmatprep.subr.mxu0 0.0
    %707 = vmatpush1.xpose.msra.mxu0 %v704
    %708 = vmatprep.subr.mxu0 0.0
    %709 = vmatpush1.xpose.msra.mxu0 0.0
    %710 = vmatprep.subr.mxu0 0.0
    %711 = vmatpush1.xpose.msra.mxu0 0.0
    %712 = vmatprep.subr.mxu0 0.0
    %713 = vmatpush1.xpose.msra.mxu0 0.0
    %714 = vmatprep.subr.mxu0 0.0
    %715 = vmatpush1.xpose.msra.mxu0 0.0
    %716 = vmatprep.subr.mxu0 0.0
    %717 = vmatpush1.xpose.msra.mxu0 0.0
    %718 = vmatprep.subr.mxu0 0.0
    %719 = vmatpush1.xpose.msra.mxu0 0.0
    %720 = vmatprep.subr.mxu0 0.0
    %721 = vmatpush1.xpose.msra.mxu0 0.0
    %722 = vmatprep.subr.mxu0 0.0
    %723 = vmatpush1.xpose.msra.mxu0 0.0
    %724 = vmatprep.subr.mxu0 0.0
    %725 = vmatpush1.xpose.msra.mxu0 0.0
    %726 = vmatprep.subr.mxu0 0.0
    %727 = vmatpush1.xpose.msra.mxu0 0.0
    %728 = vmatprep.subr.mxu0 0.0
    %729 = vmatpush1.xpose.msra.mxu0 0.0
    %730 = vmatprep.subr.mxu0 0.0
    %731 = vmatpush1.xpose.msra.mxu0 0.0
    %732 = vmatprep.subr.mxu0 0.0
    %733 = vmatpush1.xpose.msra.mxu0 0.0
    %734 = vmatprep.subr.mxu0 0.0
    %735 = vmatpush1.xpose.msra.mxu0 0.0
    %736 = vmatprep.subr.mxu0 0.0
    %737 = vmatpush1.xpose.msra.mxu0 0.0
    %738 = vmatprep.subr.mxu0 0.0
    %739 = vmatpush1.xpose.msra.mxu0 0.0
    %740 = vmatprep.subr.mxu0 0.0
    %741 = vmatpush1.xpose.msra.mxu0 0.0
    %742 = vmatprep.subr.mxu0 0.0
    %743 = vmatpush1.xpose.msra.mxu0 0.0
    %744 = vmatprep.subr.mxu0 0.0
    %745 = vmatpush1.xpose.msra.mxu0 0.0
    %746 = vmatprep.subr.mxu0 0.0
    %747 = vmatpush1.xpose.msra.mxu0 0.0
    %748 = vmatprep.subr.mxu0 0.0
    %749 = vmatpush1.xpose.msra.mxu0 0.0
    %750 = vmatprep.subr.mxu0 0.0
    %751 = vmatpush1.xpose.msra.mxu0 0.0
    %752 = vmatprep.subr.mxu0 0.0
    %753 = vmatpush1.xpose.msra.mxu0 0.0
    %754 = vmatprep.subr.mxu0 0.0
    %755 = vmatpush1.xpose.msra.mxu0 0.0
    %756 = vmatprep.subr.mxu0 0.0
    %757 = vmatpush1.xpose.msra.mxu0 0.0
    %758 = vmatprep.subr.mxu0 0.0
    %759 = vmatpush1.xpose.msra.mxu0 0.0
    %760 = vmatprep.subr.mxu0 0.0
    %761 = vmatpush1.xpose.msra.mxu0 0.0
    %762 = vmatprep.subr.mxu0 0.0
    %763 = vmatpush1.xpose.msra.mxu0 0.0
    %764 = vmatprep.subr.mxu0 0.0
    %765 = vmatpush1.xpose.msra.mxu0 0.0
    %766 = vmatprep.subr.mxu0 0.0
    %767 = vmatpush1.xpose.msra.mxu0 0.0
    %768 = vmatprep.subr.mxu0 0.0
    %769 = vmatpush1.xpose.msra.mxu0 0.0
    %770 = vmatprep.mubr.f32.mxu0 0.0
    %771 = vmatmul.mubr.f32.gmra.mrb[0].mxu0 %v701
    %v772 = vpop.f32.mrb[0].mxu0
    %v773 = vadd.f32 0.0, %v772
    %v774 = vpop.f32.mrb[0].mxu0
    %775 = vdwg.mxu0
    %v777 = vsel %vm699, %v526, 0
    %v780 = vsel %vm699, %v610, 0
    %782 = vmatprep.subr.mxu0 0.0
    %783 = vmatpush1.xpose.msra.mxu0 %v780
    %784 = vmatprep.subr.mxu0 0.0
    %785 = vmatpush1.xpose.msra.mxu0 0.0
    %786 = vmatprep.subr.mxu0 0.0
    %787 = vmatpush1.xpose.msra.mxu0 0.0
    %788 = vmatprep.subr.mxu0 0.0
    %789 = vmatpush1.xpose.msra.mxu0 0.0
    %790 = vmatprep.subr.mxu0 0.0
    %791 = vmatpush1.xpose.msra.mxu0 0.0
    %792 = vmatprep.subr.mxu0 0.0
    %793 = vmatpush1.xpose.msra.mxu0 0.0
    %794 = vmatprep.subr.mxu0 0.0
    %795 = vmatpush1.xpose.msra.mxu0 0.0
    %796 = vmatprep.subr.mxu0 0.0
    %797 = vmatpush1.xpose.msra.mxu0 0.0
    %798 = vmatprep.subr.mxu0 0.0
    %799 = vmatpush1.xpose.msra.mxu0 0.0
    %800 = vmatprep.subr.mxu0 0.0
    %801 = vmatpush1.xpose.msra.mxu0 0.0
    %802 = vmatprep.subr.mxu0 0.0
    %803 = vmatpush1.xpose.msra.mxu0 0.0
    %804 = vmatprep.subr.mxu0 0.0
    %805 = vmatpush1.xpose.msra.mxu0 0.0
    %806 = vmatprep.subr.mxu0 0.0
    %807 = vmatpush1.xpose.msra.mxu0 0.0
    %808 = vmatprep.subr.mxu0 0.0
    %809 = vmatpush1.xpose.msra.mxu0 0.0
    %810 = vmatprep.subr.mxu0 0.0
    %811 = vmatpush1.xpose.msra.mxu0 0.0
    %812 = vmatprep.subr.mxu0 0.0
    %813 = vmatpush1.xpose.msra.mxu0 0.0
    %814 = vmatprep.subr.mxu0 0.0
    %815 = vmatpush1.xpose.msra.mxu0 0.0
    %816 = vmatprep.subr.mxu0 0.0
    %817 = vmatpush1.xpose.msra.mxu0 0.0
    %818 = vmatprep.subr.mxu0 0.0
    %819 = vmatpush1.xpose.msra.mxu0 0.0
    %820 = vmatprep.subr.mxu0 0.0
    %821 = vmatpush1.xpose.msra.mxu0 0.0
    %822 = vmatprep.subr.mxu0 0.0
    %823 = vmatpush1.xpose.msra.mxu0 0.0
    %824 = vmatprep.subr.mxu0 0.0
    %825 = vmatpush1.xpose.msra.mxu0 0.0
    %826 = vmatprep.subr.mxu0 0.0
    %827 = vmatpush1.xpose.msra.mxu0 0.0
    %828 = vmatprep.subr.mxu0 0.0
    %829 = vmatpush1.xpose.msra.mxu0 0.0
    %830 = vmatprep.subr.mxu0 0.0
    %831 = vmatpush1.xpose.msra.mxu0 0.0
    %832 = vmatprep.subr.mxu0 0.0
    %833 = vmatpush1.xpose.msra.mxu0 0.0
    %834 = vmatprep.subr.mxu0 0.0
    %835 = vmatpush1.xpose.msra.mxu0 0.0
    %836 = vmatprep.subr.mxu0 0.0
    %837 = vmatpush1.xpose.msra.mxu0 0.0
    %838 = vmatprep.subr.mxu0 0.0
    %839 = vmatpush1.xpose.msra.mxu0 0.0
    %840 = vmatprep.subr.mxu0 0.0
    %841 = vmatpush1.xpose.msra.mxu0 0.0
    %842 = vmatprep.subr.mxu0 0.0
    %843 = vmatpush1.xpose.msra.mxu0 0.0
    %844 = vmatprep.subr.mxu0 0.0
    %845 = vmatpush1.xpose.msra.mxu0 0.0
    %846 = vmatprep.mubr.f32.mxu0 0.0
    %847 = vmatmul.mubr.f32.gmra.mrb[0].mxu0 %v777
    %v848 = vpop.f32.mrb[0].mxu0
    %v849 = vadd.f32 0.0, %v848
    %v850 = vpop.f32.mrb[0].mxu0
    %851 = vdwg.mxu0
    %v852 = vsel %vm699, %v773, -inf
    %853 = vmax.xlane.f32.xlu0 %v852
    %v854 = vpop.xlane.xlu0 %853
    %v855 = vsel %vm699, %v849, -inf
    %856 = vmax.xlane.f32.xlu0 %v855
    %v857 = vpop.xlane.xlu0 %856
    %v858 = vsub.f32 %v773, %v854
    %v859 = vsub.f32 %v849, %v857
    %v860 = vmul.f32 %v858, 1.442695
    %v861 = vpow.pop %v860
    %v862 = vmul.f32 %v859, 1.442695
    %v863 = vpow.pop %v862
    %v864 = vsel %vm699, %v861, 0.0
    %865 = vadd.xlane.f32.xlu0 %v864
    %v866 = vpop.xlane.xlu0 %865
    %v867 = vsel %vm699, %v863, 0.0
    %868 = vadd.xlane.f32.xlu0 %v867
    %v869 = vpop.xlane.xlu0 %868
    %v870 = vrcp.pop %v866
    %v871 = vrcp.pop %v869
    %v872 = vmul.f32 %v861, %v870
    %v873 = vmul.f32 %v863, %v871
    %v875 = vsel %vm699, %v872, 0
    %877 = vmatprep.subr.mxu0 0.0
    %878 = vmatpush1.msra.mxu0 %v691
    %879 = vmatprep.subr.mxu0 0.0
    %880 = vmatpush1.msra.mxu0 0.0
    %881 = vmatprep.subr.mxu0 0.0
    %882 = vmatpush1.msra.mxu0 0.0
    %883 = vmatprep.subr.mxu0 0.0
    %884 = vmatpush1.msra.mxu0 0.0
    %885 = vmatprep.subr.mxu0 0.0
    %886 = vmatpush1.msra.mxu0 0.0
    %887 = vmatprep.subr.mxu0 0.0
    %888 = vmatpush1.msra.mxu0 0.0
    %889 = vmatprep.subr.mxu0 0.0
    %890 = vmatpush1.msra.mxu0 0.0
    %891 = vmatprep.subr.mxu0 0.0
    %892 = vmatpush1.msra.mxu0 0.0
    %893 = vmatprep.subr.mxu0 0.0
    %894 = vmatpush1.msra.mxu0 0.0
    %895 = vmatprep.subr.mxu0 0.0
    %896 = vmatpush1.msra.mxu0 0.0
    %897 = vmatprep.subr.mxu0 0.0
    %898 = vmatpush1.msra.mxu0 0.0
    %899 = vmatprep.subr.mxu0 0.0
    %900 = vmatpush1.msra.mxu0 0.0
    %901 = vmatprep.subr.mxu0 0.0
    %902 = vmatpush1.msra.mxu0 0.0
    %903 = vmatprep.subr.mxu0 0.0
    %904 = vmatpush1.msra.mxu0 0.0
    %905 = vmatprep.subr.mxu0 0.0
    %906 = vmatpush1.msra.mxu0 0.0
    %907 = vmatprep.subr.mxu0 0.0
    %908 = vmatpush1.msra.mxu0 0.0
    %909 = vmatprep.subr.mxu0 0.0
    %910 = vmatpush1.msra.mxu0 0.0
    %911 = vmatprep.subr.mxu0 0.0
    %912 = vmatpush1.msra.mxu0 0.0
    %913 = vmatprep.subr.mxu0 0.0
    %914 = vmatpush1.msra.mxu0 0.0
    %915 = vmatprep.subr.mxu0 0.0
    %916 = vmatpush1.msra.mxu0 0.0
    %917 = vmatprep.subr.mxu0 0.0
    %918 = vmatpush1.msra.mxu0 0.0
    %919 = vmatprep.subr.mxu0 0.0
    %920 = vmatpush1.msra.mxu0 0.0
    %921 = vmatprep.subr.mxu0 0.0
    %922 = vmatpush1.msra.mxu0 0.0
    %923 = vmatprep.subr.mxu0 0.0
    %924 = vmatpush1.msra.mxu0 0.0
    %925 = vmatprep.subr.mxu0 0.0
    %926 = vmatpush1.msra.mxu0 0.0
    %927 = vmatprep.subr.mxu0 0.0
    %928 = vmatpush1.msra.mxu0 0.0
    %929 = vmatprep.subr.mxu0 0.0
    %930 = vmatpush1.msra.mxu0 0.0
    %931 = vmatprep.subr.mxu0 0.0
    %932 = vmatpush1.msra.mxu0 0.0
    %933 = vmatprep.subr.mxu0 0.0
    %934 = vmatpush1.msra.mxu0 0.0
    %935 = vmatprep.subr.mxu0 0.0
    %936 = vmatpush1.msra.mxu0 0.0
    %937 = vmatprep.subr.mxu0 0.0
    %938 = vmatpush1.msra.mxu0 0.0
    %939 = vmatprep.subr.mxu0 0.0
    %940 = vmatpush1.msra.mxu0 0.0
    %941 = vmatprep.mubr.f32.mxu0 0.0
    %942 = vmatmul.mubr.f32.gmra.mrb[0].mxu0 %v875
    %v943 = vpop.f32.mrb[0].mxu0
    %v944 = vadd.f32 0.0, %v943
    %v945 = vpop.f32.mrb[0].mxu0
    %946 = vdwg.mxu0
    %v948 = vsel %vm699, %v873, 0
    %950 = vmatprep.subr.mxu0 0.0
    %951 = vmatpush1.msra.mxu0 %v696
    %952 = vmatprep.subr.mxu0 0.0
    %953 = vmatpush1.msra.mxu0 0.0
    %954 = vmatprep.subr.mxu0 0.0
    %955 = vmatpush1.msra.mxu0 0.0
    %956 = vmatprep.subr.mxu0 0.0
    %957 = vmatpush1.msra.mxu0 0.0
    %958 = vmatprep.subr.mxu0 0.0
    %959 = vmatpush1.msra.mxu0 0.0
    %960 = vmatprep.subr.mxu0 0.0
    %961 = vmatpush1.msra.mxu0 0.0
    %962 = vmatprep.subr.mxu0 0.0
    %963 = vmatpush1.msra.mxu0 0.0
    %964 = vmatprep.subr.mxu0 0.0
    %965 = vmatpush1.msra.mxu0 0.0
    %966 = vmatprep.subr.mxu0 0.0
    %967 = vmatpush1.msra.mxu0 0.0
    %968 = vmatprep.subr.mxu0 0.0
    %969 = vmatpush1.msra.mxu0 0.0
    %970 = vmatprep.subr.mxu0 0.0
    %971 = vmatpush1.msra.mxu0 0.0
    %972 = vmatprep.subr.mxu0 0.0
    %973 = vmatpush1.msra.mxu0 0.0
    %974 = vmatprep.subr.mxu0 0.0
    %975 = vmatpush1.msra.mxu0 0.0
    %976 = vmatprep.subr.mxu0 0.0
    %977 = vmatpush1.msra.mxu0 0.0
    %978 = vmatprep.subr.mxu0 0.0
    %979 = vmatpush1.msra.mxu0 0.0
    %980 = vmatprep.subr.mxu0 0.0
    %981 = vmatpush1.msra.mxu0 0.0
    %982 = vmatprep.subr.mxu0 0.0
    %983 = vmatpush1.msra.mxu0 0.0
    %984 = vmatprep.subr.mxu0 0.0
    %985 = vmatpush1.msra.mxu0 0.0
    %986 = vmatprep.subr.mxu0 0.0
    %987 = vmatpush1.msra.mxu0 0.0
    %988 = vmatprep.subr.mxu0 0.0
    %989 = vmatpush1.msra.mxu0 0.0
    %990 = vmatprep.subr.mxu0 0.0
    %991 = vmatpush1.msra.mxu0 0.0
    %992 = vmatprep.subr.mxu0 0.0
    %993 = vmatpush1.msra.mxu0 0.0
    %994 = vmatprep.subr.mxu0 0.0
    %995 = vmatpush1.msra.mxu0 0.0
    %996 = vmatprep.subr.mxu0 0.0
    %997 = vmatpush1.msra.mxu0 0.0
    %998 = vmatprep.subr.mxu0 0.0
    %999 = vmatpush1.msra.mxu0 0.0
    %1000 = vmatprep.subr.mxu0 0.0
    %1001 = vmatpush1.msra.mxu0 0.0
    %1002 = vmatprep.subr.mxu0 0.0
    %1003 = vmatpush1.msra.mxu0 0.0
    %1004 = vmatprep.subr.mxu0 0.0
    %1005 = vmatpush1.msra.mxu0 0.0
    %1006 = vmatprep.subr.mxu0 0.0
    %1007 = vmatpush1.msra.mxu0 0.0
    %1008 = vmatprep.subr.mxu0 0.0
    %1009 = vmatpush1.msra.mxu0 0.0
    %1010 = vmatprep.subr.mxu0 0.0
    %1011 = vmatpush1.msra.mxu0 0.0
    %1012 = vmatprep.subr.mxu0 0.0
    %1013 = vmatpush1.msra.mxu0 0.0
    %1014 = vmatprep.mubr.f32.mxu0 0.0
    %1015 = vmatmul.mubr.f32.gmra.mrb[0].mxu0 %v948
    %v1016 = vpop.f32.mrb[0].mxu0
    %v1017 = vadd.f32 0.0, %v1016
    %v1018 = vpop.f32.mrb[0].mxu0
    %1019 = vdwg.mxu0
    %1020 = vrot.lane.b32.xlu0 %v525, 120
    %v1021 = vpop.permute.xlu0 %1020
    %1022 = vrot.lane.b32.xlu0 %v605, 120
    %v1023 = vpop.permute.xlu0 %1022
    %v1024 = vsel %vm699, %v1021, 0
    %v1026 = vsel %vm699, %v1023, 0
    %1028 = vmatprep.subr.mxu0 0.0
    %1029 = vmatpush1.xpose.msra.mxu0 %v1026
    %1030 = vmatprep.subr.mxu0 0.0
    %1031 = vmatpush1.xpose.msra.mxu0 0.0
    %1032 = vmatprep.subr.mxu0 0.0
    %1033 = vmatpush1.xpose.msra.mxu0 0.0
    %1034 = vmatprep.subr.mxu0 0.0
    %1035 = vmatpush1.xpose.msra.mxu0 0.0
    %1036 = vmatprep.subr.mxu0 0.0
    %1037 = vmatpush1.xpose.msra.mxu0 0.0
    %1038 = vmatprep.subr.mxu0 0.0
    %1039 = vmatpush1.xpose.msra.mxu0 0.0
    %1040 = vmatprep.subr.mxu0 0.0
    %1041 = vmatpush1.xpose.msra.mxu0 0.0
    %1042 = vmatprep.subr.mxu0 0.0
    %1043 = vmatpush1.xpose.msra.mxu0 0.0
    %1044 = vmatprep.subr.mxu0 0.0
    %1045 = vmatpush1.xpose.msra.mxu0 0.0
    %1046 = vmatprep.subr.mxu0 0.0
    %1047 = vmatpush1.xpose.msra.mxu0 0.0
    %1048 = vmatprep.subr.mxu0 0.0
    %1049 = vmatpush1.xpose.msra.mxu0 0.0
    %1050 = vmatprep.subr.mxu0 0.0
    %1051 = vmatpush1.xpose.msra.mxu0 0.0
    %1052 = vmatprep.subr.mxu0 0.0
    %1053 = vmatpush1.xpose.msra.mxu0 0.0
    %1054 = vmatprep.subr.mxu0 0.0
    %1055 = vmatpush1.xpose.msra.mxu0 0.0
    %1056 = vmatprep.subr.mxu0 0.0
    %1057 = vmatpush1.xpose.msra.mxu0 0.0
    %1058 = vmatprep.subr.mxu0 0.0
    %1059 = vmatpush1.xpose.msra.mxu0 0.0
    %1060 = vmatprep.subr.mxu0 0.0
    %1061 = vmatpush1.xpose.msra.mxu0 0.0
    %1062 = vmatprep.subr.mxu0 0.0
    %1063 = vmatpush1.xpose.msra.mxu0 0.0
    %1064 = vmatprep.subr.mxu0 0.0
    %1065 = vmatpush1.xpose.msra.mxu0 0.0
    %1066 = vmatprep.subr.mxu0 0.0
    %1067 = vmatpush1.xpose.msra.mxu0 0.0
    %1068 = vmatprep.subr.mxu0 0.0
    %1069 = vmatpush1.xpose.msra.mxu0 0.0
    %1070 = vmatprep.subr.mxu0 0.0
    %1071 = vmatpush1.xpose.msra.mxu0 0.0
    %1072 = vmatprep.subr.mxu0 0.0
    %1073 = vmatpush1.xpose.msra.mxu0 0.0
    %1074 = vmatprep.subr.mxu0 0.0
    %1075 = vmatpush1.xpose.msra.mxu0 0.0
    %1076 = vmatprep.subr.mxu0 0.0
    %1077 = vmatpush1.xpose.msra.mxu0 0.0
    %1078 = vmatprep.subr.mxu0 0.0
    %1079 = vmatpush1.xpose.msra.mxu0 0.0
    %1080 = vmatprep.subr.mxu0 0.0
    %1081 = vmatpush1.xpose.msra.mxu0 0.0
    %1082 = vmatprep.subr.mxu0 0.0
    %1083 = vmatpush1.xpose.msra.mxu0 0.0
    %1084 = vmatprep.subr.mxu0 0.0
    %1085 = vmatpush1.xpose.msra.mxu0 0.0
    %1086 = vmatprep.subr.mxu0 0.0
    %1087 = vmatpush1.xpose.msra.mxu0 0.0
    %1088 = vmatprep.subr.mxu0 0.0
    %1089 = vmatpush1.xpose.msra.mxu0 0.0
    %1090 = vmatprep.subr.mxu0 0.0
    %1091 = vmatpush1.xpose.msra.mxu0 0.0
    %1092 = vmatprep.mubr.f32.mxu0 0.0
    %1093 = vmatmul.mubr.f32.gmra.mrb[0].mxu0 %v1024
    %v1094 = vpop.f32.mrb[0].mxu0
    %v1095 = vadd.f32 0.0, %v1094
    %v1096 = vpop.f32.mrb[0].mxu0
    %1097 = vdwg.mxu0
    %1098 = vrot.lane.b32.xlu0 %v526, 120
    %v1099 = vpop.permute.xlu0 %1098
    %1100 = vrot.lane.b32.xlu0 %v610, 120
    %v1101 = vpop.permute.xlu0 %1100
    %v1102 = vsel %vm699, %v1099, 0
    %v1104 = vsel %vm699, %v1101, 0
    %1106 = vmatprep.subr.mxu0 0.0
    %1107 = vmatpush1.xpose.msra.mxu0 %v1104
    %1108 = vmatprep.subr.mxu0 0.0
    %1109 = vmatpush1.xpose.msra.mxu0 0.0
    %1110 = vmatprep.subr.mxu0 0.0
    %1111 = vmatpush1.xpose.msra.mxu0 0.0
    %1112 = vmatprep.subr.mxu0 0.0
    %1113 = vmatpush1.xpose.msra.mxu0 0.0
    %1114 = vmatprep.subr.mxu0 0.0
    %1115 = vmatpush1.xpose.msra.mxu0 0.0
    %1116 = vmatprep.subr.mxu0 0.0
    %1117 = vmatpush1.xpose.msra.mxu0 0.0
    %1118 = vmatprep.subr.mxu0 0.0
    %1119 = vmatpush1.xpose.msra.mxu0 0.0
    %1120 = vmatprep.subr.mxu0 0.0
    %1121 = vmatpush1.xpose.msra.mxu0 0.0
    %1122 = vmatprep.subr.mxu0 0.0
    %1123 = vmatpush1.xpose.msra.mxu0 0.0
    %1124 = vmatprep.subr.mxu0 0.0
    %1125 = vmatpush1.xpose.msra.mxu0 0.0
    %1126 = vmatprep.subr.mxu0 0.0
    %1127 = vmatpush1.xpose.msra.mxu0 0.0
    %1128 = vmatprep.subr.mxu0 0.0
    %1129 = vmatpush1.xpose.msra.mxu0 0.0
    %1130 = vmatprep.subr.mxu0 0.0
    %1131 = vmatpush1.xpose.msra.mxu0 0.0
    %1132 = vmatprep.subr.mxu0 0.0
    %1133 = vmatpush1.xpose.msra.mxu0 0.0
    %1134 = vmatprep.subr.mxu0 0.0
    %1135 = vmatpush1.xpose.msra.mxu0 0.0
    %1136 = vmatprep.subr.mxu0 0.0
    %1137 = vmatpush1.xpose.msra.mxu0 0.0
    %1138 = vmatprep.subr.mxu0 0.0
    %1139 = vmatpush1.xpose.msra.mxu0 0.0
    %1140 = vmatprep.subr.mxu0 0.0
    %1141 = vmatpush1.xpose.msra.mxu0 0.0
    %1142 = vmatprep.subr.mxu0 0.0
    %1143 = vmatpush1.xpose.msra.mxu0 0.0
    %1144 = vmatprep.subr.mxu0 0.0
    %1145 = vmatpush1.xpose.msra.mxu0 0.0
    %1146 = vmatprep.subr.mxu0 0.0
    %1147 = vmatpush1.xpose.msra.mxu0 0.0
    %1148 = vmatprep.subr.mxu0 0.0
    %1149 = vmatpush1.xpose.msra.mxu0 0.0
    %1150 = vmatprep.subr.mxu0 0.0
    %1151 = vmatpush1.xpose.msra.mxu0 0.0
    %1152 = vmatprep.subr.mxu0 0.0
    %1153 = vmatpush1.xpose.msra.mxu0 0.0
    %1154 = vmatprep.subr.mxu0 0.0
    %1155 = vmatpush1.xpose.msra.mxu0 0.0
    %1156 = vmatprep.subr.mxu0 0.0
    %1157 = vmatpush1.xpose.msra.mxu0 0.0
    %1158 = vmatprep.subr.mxu0 0.0
    %1159 = vmatpush1.xpose.msra.mxu0 0.0
    %1160 = vmatprep.subr.mxu0 0.0
    %1161 = vmatpush1.xpose.msra.mxu0 0.0
    %1162 = vmatprep.subr.mxu0 0.0
    %1163 = vmatpush1.xpose.msra.mxu0 0.0
    %1164 = vmatprep.subr.mxu0 0.0
    %1165 = vmatpush1.xpose.msra.mxu0 0.0
    %1166 = vmatprep.subr.mxu0 0.0
    %1167 = vmatpush1.xpose.msra.mxu0 0.0
    %1168 = vmatprep.subr.mxu0 0.0
    %1169 = vmatpush1.xpose.msra.mxu0 0.0
    %1170 = vmatprep.mubr.f32.mxu0 0.0
    %1171 = vmatmul.mubr.f32.gmra.mrb[0].mxu0 %v1102
    %v1172 = vpop.f32.mrb[0].mxu0
    %v1173 = vadd.f32 0.0, %v1172
    %v1174 = vpop.f32.mrb[0].mxu0
    %1175 = vdwg.mxu0
    %v1176 = vsel %vm699, %v1095, -inf
    %1177 = vmax.xlane.f32.xlu0 %v1176
    %v1178 = vpop.xlane.xlu0 %1177
    %v1179 = vsel %vm699, %v1173, -inf
    %1180 = vmax.xlane.f32.xlu0 %v1179
    %v1181 = vpop.xlane.xlu0 %1180
    %v1182 = vsub.f32 %v1095, %v1178
    %v1183 = vsub.f32 %v1173, %v1181
    %v1184 = vmul.f32 %v1182, 1.442695
    %v1185 = vpow.pop %v1184
    %v1186 = vmul.f32 %v1183, 1.442695
    %v1187 = vpow.pop %v1186
    %v1188 = vsel %vm699, %v1185, 0.0
    %1189 = vadd.xlane.f32.xlu0 %v1188
    %v1190 = vpop.xlane.xlu0 %1189
    %v1191 = vsel %vm699, %v1187, 0.0
    %1192 = vadd.xlane.f32.xlu0 %v1191
    %v1193 = vpop.xlane.xlu0 %1192
    %v1194 = vrcp.pop %v1190
    %v1195 = vrcp.pop %v1193
    %v1196 = vmul.f32 %v1185, %v1194
    %v1197 = vmul.f32 %v1187, %v1195
    %1199 = vrot.lane.b32.xlu0 %v691, 120
    %v1200 = vpop.permute.xlu0 %1199
    %v1203 = vsel %vm699, %v1196, 0
    %1205 = vmatprep.subr.mxu0 0.0
    %1206 = vmatpush1.msra.mxu0 %v1200
    %1207 = vmatprep.subr.mxu0 0.0
    %1208 = vmatpush1.msra.mxu0 0.0
    %1209 = vmatprep.subr.mxu0 0.0
    %1210 = vmatpush1.msra.mxu0 0.0
    %1211 = vmatprep.subr.mxu0 0.0
    %1212 = vmatpush1.msra.mxu0 0.0
    %1213 = vmatprep.subr.mxu0 0.0
    %1214 = vmatpush1.msra.mxu0 0.0
    %1215 = vmatprep.subr.mxu0 0.0
    %1216 = vmatpush1.msra.mxu0 0.0
    %1217 = vmatprep.subr.mxu0 0.0
    %1218 = vmatpush1.msra.mxu0 0.0
    %1219 = vmatprep.subr.mxu0 0.0
    %1220 = vmatpush1.msra.mxu0 0.0
    %1221 = vmatprep.subr.mxu0 0.0
    %1222 = vmatpush1.msra.mxu0 0.0
    %1223 = vmatprep.subr.mxu0 0.0
    %1224 = vmatpush1.msra.mxu0 0.0
    %1225 = vmatprep.subr.mxu0 0.0
    %1226 = vmatpush1.msra.mxu0 0.0
    %1227 = vmatprep.subr.mxu0 0.0
    %1228 = vmatpush1.msra.mxu0 0.0
    %1229 = vmatprep.subr.mxu0 0.0
    %1230 = vmatpush1.msra.mxu0 0.0
    %1231 = vmatprep.subr.mxu0 0.0
    %1232 = vmatpush1.msra.mxu0 0.0
    %1233 = vmatprep.subr.mxu0 0.0
    %1234 = vmatpush1.msra.mxu0 0.0
    %1235 = vmatprep.subr.mxu0 0.0
    %1236 = vmatpush1.msra.mxu0 0.0
    %1237 = vmatprep.subr.mxu0 0.0
    %1238 = vmatpush1.msra.mxu0 0.0
    %1239 = vmatprep.subr.mxu0 0.0
    %1240 = vmatpush1.msra.mxu0 0.0
    %1241 = vmatprep.subr.mxu0 0.0
    %1242 = vmatpush1.msra.mxu0 0.0
    %1243 = vmatprep.subr.mxu0 0.0
    %1244 = vmatpush1.msra.mxu0 0.0
    %1245 = vmatprep.subr.mxu0 0.0
    %1246 = vmatpush1.msra.mxu0 0.0
    %1247 = vmatprep.subr.mxu0 0.0
    %1248 = vmatpush1.msra.mxu0 0.0
    %1249 = vmatprep.subr.mxu0 0.0
    %1250 = vmatpush1.msra.mxu0 0.0
    %1251 = vmatprep.subr.mxu0 0.0
    %1252 = vmatpush1.msra.mxu0 0.0
    %1253 = vmatprep.subr.mxu0 0.0
    %1254 = vmatpush1.msra.mxu0 0.0
    %1255 = vmatprep.subr.mxu0 0.0
    %1256 = vmatpush1.msra.mxu0 0.0
    %1257 = vmatprep.subr.mxu0 0.0
    %1258 = vmatpush1.msra.mxu0 0.0
    %1259 = vmatprep.subr.mxu0 0.0
    %1260 = vmatpush1.msra.mxu0 0.0
    %1261 = vmatprep.subr.mxu0 0.0
    %1262 = vmatpush1.msra.mxu0 0.0
    %1263 = vmatprep.subr.mxu0 0.0
    %1264 = vmatpush1.msra.mxu0 0.0
    %1265 = vmatprep.subr.mxu0 0.0
    %1266 = vmatpush1.msra.mxu0 0.0
    %1267 = vmatprep.subr.mxu0 0.0
    %1268 = vmatpush1.msra.mxu0 0.0
    %1269 = vmatprep.mubr.f32.mxu0 0.0
    %1270 = vmatmul.mubr.f32.gmra.mrb[0].mxu0 %v1203
    %v1271 = vpop.f32.mrb[0].mxu0
    %v1272 = vadd.f32 0.0, %v1271
    %v1273 = vpop.f32.mrb[0].mxu0
    %1274 = vdwg.mxu0
    %1276 = vrot.lane.b32.xlu0 %v696, 120
    %v1277 = vpop.permute.xlu0 %1276
    %v1280 = vsel %vm699, %v1197, 0
    %1282 = vmatprep.subr.mxu0 0.0
    %1283 = vmatpush1.msra.mxu0 %v1277
    %1284 = vmatprep.subr.mxu0 0.0
    %1285 = vmatpush1.msra.mxu0 0.0
    %1286 = vmatprep.subr.mxu0 0.0
    %1287 = vmatpush1.msra.mxu0 0.0
    %1288 = vmatprep.subr.mxu0 0.0
    %1289 = vmatpush1.msra.mxu0 0.0
    %1290 = vmatprep.subr.mxu0 0.0
    %1291 = vmatpush1.msra.mxu0 0.0
    %1292 = vmatprep.subr.mxu0 0.0
    %1293 = vmatpush1.msra.mxu0 0.0
    %1294 = vmatprep.subr.mxu0 0.0
    %1295 = vmatpush1.msra.mxu0 0.0
    %1296 = vmatprep.subr.mxu0 0.0
    %1297 = vmatpush1.msra.mxu0 0.0
    %1298 = vmatprep.subr.mxu0 0.0
    %1299 = vmatpush1.msra.mxu0 0.0
    %1300 = vmatprep.subr.mxu0 0.0
    %1301 = vmatpush1.msra.mxu0 0.0
    %1302 = vmatprep.subr.mxu0 0.0
    %1303 = vmatpush1.msra.mxu0 0.0
    %1304 = vmatprep.subr.mxu0 0.0
    %1305 = vmatpush1.msra.mxu0 0.0
    %1306 = vmatprep.subr.mxu0 0.0
    %1307 = vmatpush1.msra.mxu0 0.0
    %1308 = vmatprep.subr.mxu0 0.0
    %1309 = vmatpush1.msra.mxu0 0.0
    %1310 = vmatprep.subr.mxu0 0.0
    %1311 = vmatpush1.msra.mxu0 0.0
    %1312 = vmatprep.subr.mxu0 0.0
    %1313 = vmatpush1.msra.mxu0 0.0
    %1314 = vmatprep.subr.mxu0 0.0
    %1315 = vmatpush1.msra.mxu0 0.0
    %1316 = vmatprep.subr.mxu0 0.0
    %1317 = vmatpush1.msra.mxu0 0.0
    %1318 = vmatprep.subr.mxu0 0.0
    %1319 = vmatpush1.msra.mxu0 0.0
    %1320 = vmatprep.subr.mxu0 0.0
    %1321 = vmatpush1.msra.mxu0 0.0
    %1322 = vmatprep.subr.mxu0 0.0
    %1323 = vmatpush1.msra.mxu0 0.0
    %1324 = vmatprep.subr.mxu0 0.0
    %1325 = vmatpush1.msra.mxu0 0.0
    %1326 = vmatprep.subr.mxu0 0.0
    %1327 = vmatpush1.msra.mxu0 0.0
    %1328 = vmatprep.subr.mxu0 0.0
    %1329 = vmatpush1.msra.mxu0 0.0
    %1330 = vmatprep.subr.mxu0 0.0
    %1331 = vmatpush1.msra.mxu0 0.0
    %1332 = vmatprep.subr.mxu0 0.0
    %1333 = vmatpush1.msra.mxu0 0.0
    %1334 = vmatprep.subr.mxu0 0.0
    %1335 = vmatpush1.msra.mxu0 0.0
    %1336 = vmatprep.subr.mxu0 0.0
    %1337 = vmatpush1.msra.mxu0 0.0
    %1338 = vmatprep.subr.mxu0 0.0
    %1339 = vmatpush1.msra.mxu0 0.0
    %1340 = vmatprep.subr.mxu0 0.0
    %1341 = vmatpush1.msra.mxu0 0.0
    %1342 = vmatprep.subr.mxu0 0.0
    %1343 = vmatpush1.msra.mxu0 0.0
    %1344 = vmatprep.subr.mxu0 0.0
    %1345 = vmatpush1.msra.mxu0 0.0
    %1346 = vmatprep.mubr.f32.mxu0 0.0
    %1347 = vmatmul.mubr.f32.gmra.mrb[0].mxu0 %v1280
    %v1348 = vpop.f32.mrb[0].mxu0
    %v1349 = vadd.f32 0.0, %v1348
    %v1350 = vpop.f32.mrb[0].mxu0
    %1351 = vdwg.mxu0
    %1352 = vrot.lane.b32.xlu0 %v525, 112
    %v1353 = vpop.permute.xlu0 %1352
    %1354 = vrot.lane.b32.xlu0 %v605, 112
    %v1355 = vpop.permute.xlu0 %1354
    %v1356 = vsel %vm699, %v1353, 0
    %v1358 = vsel %vm699, %v1355, 0
    %1360 = vmatprep.subr.mxu0 0.0
    %1361 = vmatpush1.xpose.msra.mxu0 %v1358
    %1362 = vmatprep.subr.mxu0 0.0
    %1363 = vmatpush1.xpose.msra.mxu0 0.0
    %1364 = vmatprep.subr.mxu0 0.0
    %1365 = vmatpush1.xpose.msra.mxu0 0.0
    %1366 = vmatprep.subr.mxu0 0.0
    %1367 = vmatpush1.xpose.msra.mxu0 0.0
    %1368 = vmatprep.subr.mxu0 0.0
    %1369 = vmatpush1.xpose.msra.mxu0 0.0
    %1370 = vmatprep.subr.mxu0 0.0
    %1371 = vmatpush1.xpose.msra.mxu0 0.0
    %1372 = vmatprep.subr.mxu0 0.0
    %1373 = vmatpush1.xpose.msra.mxu0 0.0
    %1374 = vmatprep.subr.mxu0 0.0
    %1375 = vmatpush1.xpose.msra.mxu0 0.0
    %1376 = vmatprep.subr.mxu0 0.0
    %1377 = vmatpush1.xpose.msra.mxu0 0.0
    %1378 = vmatprep.subr.mxu0 0.0
    %1379 = vmatpush1.xpose.msra.mxu0 0.0
    %1380 = vmatprep.subr.mxu0 0.0
    %1381 = vmatpush1.xpose.msra.mxu0 0.0
    %1382 = vmatprep.subr.mxu0 0.0
    %1383 = vmatpush1.xpose.msra.mxu0 0.0
    %1384 = vmatprep.subr.mxu0 0.0
    %1385 = vmatpush1.xpose.msra.mxu0 0.0
    %1386 = vmatprep.subr.mxu0 0.0
    %1387 = vmatpush1.xpose.msra.mxu0 0.0
    %1388 = vmatprep.subr.mxu0 0.0
    %1389 = vmatpush1.xpose.msra.mxu0 0.0
    %1390 = vmatprep.subr.mxu0 0.0
    %1391 = vmatpush1.xpose.msra.mxu0 0.0
    %1392 = vmatprep.subr.mxu0 0.0
    %1393 = vmatpush1.xpose.msra.mxu0 0.0
    %1394 = vmatprep.subr.mxu0 0.0
    %1395 = vmatpush1.xpose.msra.mxu0 0.0
    %1396 = vmatprep.subr.mxu0 0.0
    %1397 = vmatpush1.xpose.msra.mxu0 0.0
    %1398 = vmatprep.subr.mxu0 0.0
    %1399 = vmatpush1.xpose.msra.mxu0 0.0
    %1400 = vmatprep.subr.mxu0 0.0
    %1401 = vmatpush1.xpose.msra.mxu0 0.0
    %1402 = vmatprep.subr.mxu0 0.0
    %1403 = vmatpush1.xpose.msra.mxu0 0.0
    %1404 = vmatprep.subr.mxu0 0.0
    %1405 = vmatpush1.xpose.msra.mxu0 0.0
    %1406 = vmatprep.subr.mxu0 0.0
    %1407 = vmatpush1.xpose.msra.mxu0 0.0
    %1408 = vmatprep.subr.mxu0 0.0
    %1409 = vmatpush1.xpose.msra.mxu0 0.0
    %1410 = vmatprep.subr.mxu0 0.0
    %1411 = vmatpush1.xpose.msra.mxu0 0.0
    %1412 = vmatprep.subr.mxu0 0.0
    %1413 = vmatpush1.xpose.msra.mxu0 0.0
    %1414 = vmatprep.subr.mxu0 0.0
    %1415 = vmatpush1.xpose.msra.mxu0 0.0
    %1416 = vmatprep.subr.mxu0 0.0
    %1417 = vmatpush1.xpose.msra.mxu0 0.0
    %1418 = vmatprep.subr.mxu0 0.0
    %1419 = vmatpush1.xpose.msra.mxu0 0.0
    %1420 = vmatprep.subr.mxu0 0.0
    %1421 = vmatpush1.xpose.msra.mxu0 0.0
    %1422 = vmatprep.subr.mxu0 0.0
    %1423 = vmatpush1.xpose.msra.mxu0 0.0
    %1424 = vmatprep.mubr.f32.mxu0 0.0
    %1425 = vmatmul.mubr.f32.gmra.mrb[0].mxu0 %v1356
    %v1426 = vpop.f32.mrb[0].mxu0
    %v1427 = vadd.f32 0.0, %v1426
    %v1428 = vpop.f32.mrb[0].mxu0
    %1429 = vdwg.mxu0
    %1430 = vrot.lane.b32.xlu0 %v526, 112
    %v1431 = vpop.permute.xlu0 %1430
    %1432 = vrot.lane.b32.xlu0 %v610, 112
    %v1433 = vpop.permute.xlu0 %1432
    %v1434 = vsel %vm699, %v1431, 0
    %v1436 = vsel %vm699, %v1433, 0
    %1438 = vmatprep.subr.mxu0 0.0
    %1439 = vmatpush1.xpose.msra.mxu0 %v1436
    %1440 = vmatprep.subr.mxu0 0.0
    %1441 = vmatpush1.xpose.msra.mxu0 0.0
    %1442 = vmatprep.subr.mxu0 0.0
    %1443 = vmatpush1.xpose.msra.mxu0 0.0
    %1444 = vmatprep.subr.mxu0 0.0
    %1445 = vmatpush1.xpose.msra.mxu0 0.0
    %1446 = vmatprep.subr.mxu0 0.0
    %1447 = vmatpush1.xpose.msra.mxu0 0.0
    %1448 = vmatprep.subr.mxu0 0.0
    %1449 = vmatpush1.xpose.msra.mxu0 0.0
    %1450 = vmatprep.subr.mxu0 0.0
    %1451 = vmatpush1.xpose.msra.mxu0 0.0
    %1452 = vmatprep.subr.mxu0 0.0
    %1453 = vmatpush1.xpose.msra.mxu0 0.0
    %1454 = vmatprep.subr.mxu0 0.0
    %1455 = vmatpush1.xpose.msra.mxu0 0.0
    %1456 = vmatprep.subr.mxu0 0.0
    %1457 = vmatpush1.xpose.msra.mxu0 0.0
    %1458 = vmatprep.subr.mxu0 0.0
    %1459 = vmatpush1.xpose.msra.mxu0 0.0
    %1460 = vmatprep.subr.mxu0 0.0
    %1461 = vmatpush1.xpose.msra.mxu0 0.0
    %1462 = vmatprep.subr.mxu0 0.0
    %1463 = vmatpush1.xpose.msra.mxu0 0.0
    %1464 = vmatprep.subr.mxu0 0.0
    %1465 = vmatpush1.xpose.msra.mxu0 0.0
    %1466 = vmatprep.subr.mxu0 0.0
    %1467 = vmatpush1.xpose.msra.mxu0 0.0
    %1468 = vmatprep.subr.mxu0 0.0
    %1469 = vmatpush1.xpose.msra.mxu0 0.0
    %1470 = vmatprep.subr.mxu0 0.0
    %1471 = vmatpush1.xpose.msra.mxu0 0.0
    %1472 = vmatprep.subr.mxu0 0.0
    %1473 = vmatpush1.xpose.msra.mxu0 0.0
    %1474 = vmatprep.subr.mxu0 0.0
    %1475 = vmatpush1.xpose.msra.mxu0 0.0
    %1476 = vmatprep.subr.mxu0 0.0
    %1477 = vmatpush1.xpose.msra.mxu0 0.0
    %1478 = vmatprep.subr.mxu0 0.0
    %1479 = vmatpush1.xpose.msra.mxu0 0.0
    %1480 = vmatprep.subr.mxu0 0.0
    %1481 = vmatpush1.xpose.msra.mxu0 0.0
    %1482 = vmatprep.subr.mxu0 0.0
    %1483 = vmatpush1.xpose.msra.mxu0 0.0
    %1484 = vmatprep.subr.mxu0 0.0
    %1485 = vmatpush1.xpose.msra.mxu0 0.0
    %1486 = vmatprep.subr.mxu0 0.0
    %1487 = vmatpush1.xpose.msra.mxu0 0.0
    %1488 = vmatprep.subr.mxu0 0.0
    %1489 = vmatpush1.xpose.msra.mxu0 0.0
    %1490 = vmatprep.subr.mxu0 0.0
    %1491 = vmatpush1.xpose.msra.mxu0 0.0
    %1492 = vmatprep.subr.mxu0 0.0
    %1493 = vmatpush1.xpose.msra.mxu0 0.0
    %1494 = vmatprep.subr.mxu0 0.0
    %1495 = vmatpush1.xpose.msra.mxu0 0.0
    %1496 = vmatprep.subr.mxu0 0.0
    %1497 = vmatpush1.xpose.msra.mxu0 0.0
    %1498 = vmatprep.subr.mxu0 0.0
    %1499 = vmatpush1.xpose.msra.mxu0 0.0
    %1500 = vmatprep.subr.mxu0 0.0
    %1501 = vmatpush1.xpose.msra.mxu0 0.0
    %1502 = vmatprep.mubr.f32.mxu0 0.0
    %1503 = vmatmul.mubr.f32.gmra.mrb[0].mxu0 %v1434
    %v1504 = vpop.f32.mrb[0].mxu0
    %v1505 = vadd.f32 0.0, %v1504
    %v1506 = vpop.f32.mrb[0].mxu0
    %1507 = vdwg.mxu0
    %v1508 = vsel %vm699, %v1427, -inf
    %1509 = vmax.xlane.f32.xlu0 %v1508
    %v1510 = vpop.xlane.xlu0 %1509
    %v1511 = vsel %vm699, %v1505, -inf
    %1512 = vmax.xlane.f32.xlu0 %v1511
    %v1513 = vpop.xlane.xlu0 %1512
    %v1514 = vsub.f32 %v1427, %v1510
    %v1515 = vsub.f32 %v1505, %v1513
    %v1516 = vmul.f32 %v1514, 1.442695
    %v1517 = vpow.pop %v1516
    %v1518 = vmul.f32 %v1515, 1.442695
    %v1519 = vpow.pop %v1518
    %v1520 = vsel %vm699, %v1517, 0.0
    %1521 = vadd.xlane.f32.xlu0 %v1520
    %v1522 = vpop.xlane.xlu0 %1521
    %v1523 = vsel %vm699, %v1519, 0.0
    %1524 = vadd.xlane.f32.xlu0 %v1523
    %v1525 = vpop.xlane.xlu0 %1524
    %v1526 = vrcp.pop %v1522
    %v1527 = vrcp.pop %v1525
    %v1528 = vmul.f32 %v1517, %v1526
    %v1529 = vmul.f32 %v1519, %v1527
    %1530 = vrot.lane.b32.xlu0 %v691, 112
    %v1531 = vpop.permute.xlu0 %1530
    %v1534 = vsel %vm699, %v1528, 0
    %1536 = vmatprep.subr.mxu0 0.0
    %1537 = vmatpush1.msra.mxu0 %v1531
    %1538 = vmatprep.subr.mxu0 0.0
    %1539 = vmatpush1.msra.mxu0 0.0
    %1540 = vmatprep.subr.mxu0 0.0
    %1541 = vmatpush1.msra.mxu0 0.0
    %1542 = vmatprep.subr.mxu0 0.0
    %1543 = vmatpush1.msra.mxu0 0.0
    %1544 = vmatprep.subr.mxu0 0.0
    %1545 = vmatpush1.msra.mxu0 0.0
    %1546 = vmatprep.subr.mxu0 0.0
    %1547 = vmatpush1.msra.mxu0 0.0
    %1548 = vmatprep.subr.mxu0 0.0
    %1549 = vmatpush1.msra.mxu0 0.0
    %1550 = vmatprep.subr.mxu0 0.0
    %1551 = vmatpush1.msra.mxu0 0.0
    %1552 = vmatprep.subr.mxu0 0.0
    %1553 = vmatpush1.msra.mxu0 0.0
    %1554 = vmatprep.subr.mxu0 0.0
    %1555 = vmatpush1.msra.mxu0 0.0
    %1556 = vmatprep.subr.mxu0 0.0
    %1557 = vmatpush1.msra.mxu0 0.0
    %1558 = vmatprep.subr.mxu0 0.0
    %1559 = vmatpush1.msra.mxu0 0.0
    %1560 = vmatprep.subr.mxu0 0.0
    %1561 = vmatpush1.msra.mxu0 0.0
    %1562 = vmatprep.subr.mxu0 0.0
    %1563 = vmatpush1.msra.mxu0 0.0
    %1564 = vmatprep.subr.mxu0 0.0
    %1565 = vmatpush1.msra.mxu0 0.0
    %1566 = vmatprep.subr.mxu0 0.0
    %1567 = vmatpush1.msra.mxu0 0.0
    %1568 = vmatprep.subr.mxu0 0.0
    %1569 = vmatpush1.msra.mxu0 0.0
    %1570 = vmatprep.subr.mxu0 0.0
    %1571 = vmatpush1.msra.mxu0 0.0
    %1572 = vmatprep.subr.mxu0 0.0
    %1573 = vmatpush1.msra.mxu0 0.0
    %1574 = vmatprep.subr.mxu0 0.0
    %1575 = vmatpush1.msra.mxu0 0.0
    %1576 = vmatprep.subr.mxu0 0.0
    %1577 = vmatpush1.msra.mxu0 0.0
    %1578 = vmatprep.subr.mxu0 0.0
    %1579 = vmatpush1.msra.mxu0 0.0
    %1580 = vmatprep.subr.mxu0 0.0
    %1581 = vmatpush1.msra.mxu0 0.0
    %1582 = vmatprep.subr.mxu0 0.0
    %1583 = vmatpush1.msra.mxu0 0.0
    %1584 = vmatprep.subr.mxu0 0.0
    %1585 = vmatpush1.msra.mxu0 0.0
    %1586 = vmatprep.subr.mxu0 0.0
    %1587 = vmatpush1.msra.mxu0 0.0
    %1588 = vmatprep.subr.mxu0 0.0
    %1589 = vmatpush1.msra.mxu0 0.0
    %1590 = vmatprep.subr.mxu0 0.0
    %1591 = vmatpush1.msra.mxu0 0.0
    %1592 = vmatprep.subr.mxu0 0.0
    %1593 = vmatpush1.msra.mxu0 0.0
    %1594 = vmatprep.subr.mxu0 0.0
    %1595 = vmatpush1.msra.mxu0 0.0
    %1596 = vmatprep.subr.mxu0 0.0
    %1597 = vmatpush1.msra.mxu0 0.0
    %1598 = vmatprep.subr.mxu0 0.0
    %1599 = vmatpush1.msra.mxu0 0.0
    %1600 = vmatprep.mubr.f32.mxu0 0.0
    %1601 = vmatmul.mubr.f32.gmra.mrb[0].mxu0 %v1534
    %v1602 = vpop.f32.mrb[0].mxu0
    %v1603 = vadd.f32 0.0, %v1602
    %v1604 = vpop.f32.mrb[0].mxu0
    %1605 = vdwg.mxu0
    %1606 = vrot.lane.b32.xlu0 %v696, 112
    %v1607 = vpop.permute.xlu0 %1606
    %v1610 = vsel %vm699, %v1529, 0
    %1612 = vmatprep.subr.mxu0 0.0
    %1613 = vmatpush1.msra.mxu0 %v1607
    %1614 = vmatprep.subr.mxu0 0.0
    %1615 = vmatpush1.msra.mxu0 0.0
    %1616 = vmatprep.subr.mxu0 0.0
    %1617 = vmatpush1.msra.mxu0 0.0
    %1618 = vmatprep.subr.mxu0 0.0
    %1619 = vmatpush1.msra.mxu0 0.0
    %1620 = vmatprep.subr.mxu0 0.0
    %1621 = vmatpush1.msra.mxu0 0.0
    %1622 = vmatprep.subr.mxu0 0.0
    %1623 = vmatpush1.msra.mxu0 0.0
    %1624 = vmatprep.subr.mxu0 0.0
    %1625 = vmatpush1.msra.mxu0 0.0
    %1626 = vmatprep.subr.mxu0 0.0
    %1627 = vmatpush1.msra.mxu0 0.0
    %1628 = vmatprep.subr.mxu0 0.0
    %1629 = vmatpush1.msra.mxu0 0.0
    %1630 = vmatprep.subr.mxu0 0.0
    %1631 = vmatpush1.msra.mxu0 0.0
    %1632 = vmatprep.subr.mxu0 0.0
    %1633 = vmatpush1.msra.mxu0 0.0
    %1634 = vmatprep.subr.mxu0 0.0
    %1635 = vmatpush1.msra.mxu0 0.0
    %1636 = vmatprep.subr.mxu0 0.0
    %1637 = vmatpush1.msra.mxu0 0.0
    %1638 = vmatprep.subr.mxu0 0.0
    %1639 = vmatpush1.msra.mxu0 0.0
    %1640 = vmatprep.subr.mxu0 0.0
    %1641 = vmatpush1.msra.mxu0 0.0
    %1642 = vmatprep.subr.mxu0 0.0
    %1643 = vmatpush1.msra.mxu0 0.0
    %1644 = vmatprep.subr.mxu0 0.0
    %1645 = vmatpush1.msra.mxu0 0.0
    %1646 = vmatprep.subr.mxu0 0.0
    %1647 = vmatpush1.msra.mxu0 0.0
    %1648 = vmatprep.subr.mxu0 0.0
    %1649 = vmatpush1.msra.mxu0 0.0
    %1650 = vmatprep.subr.mxu0 0.0
    %1651 = vmatpush1.msra.mxu0 0.0
    %1652 = vmatprep.subr.mxu0 0.0
    %1653 = vmatpush1.msra.mxu0 0.0
    %1654 = vmatprep.subr.mxu0 0.0
    %1655 = vmatpush1.msra.mxu0 0.0
    %1656 = vmatprep.subr.mxu0 0.0
    %1657 = vmatpush1.msra.mxu0 0.0
    %1658 = vmatprep.subr.mxu0 0.0
    %1659 = vmatpush1.msra.mxu0 0.0
    %1660 = vmatprep.subr.mxu0 0.0
    %1661 = vmatpush1.msra.mxu0 0.0
    %1662 = vmatprep.subr.mxu0 0.0
    %1663 = vmatpush1.msra.mxu0 0.0
    %1664 = vmatprep.subr.mxu0 0.0
    %1665 = vmatpush1.msra.mxu0 0.0
    %1666 = vmatprep.subr.mxu0 0.0
    %1667 = vmatpush1.msra.mxu0 0.0
    %1668 = vmatprep.subr.mxu0 0.0
    %1669 = vmatpush1.msra.mxu0 0.0
    %1670 = vmatprep.subr.mxu0 0.0
    %1671 = vmatpush1.msra.mxu0 0.0
    %1672 = vmatprep.subr.mxu0 0.0
    %1673 = vmatpush1.msra.mxu0 0.0
    %1674 = vmatprep.subr.mxu0 0.0
    %1675 = vmatpush1.msra.mxu0 0.0
    %1676 = vmatprep.mubr.f32.mxu0 0.0
    %1677 = vmatmul.mubr.f32.gmra.mrb[0].mxu0 %v1610
    %v1678 = vpop.f32.mrb[0].mxu0
    %v1679 = vadd.f32 0.0, %v1678
    %v1680 = vpop.f32.mrb[0].mxu0
    %1681 = vdwg.mxu0
    %1682 = vrot.lane.b32.xlu0 %v525, 104
    %v1683 = vpop.permute.xlu0 %1682
    %1684 = vrot.lane.b32.xlu0 %v605, 104
    %v1685 = vpop.permute.xlu0 %1684
    %v1686 = vsel %vm699, %v1683, 0
    %v1688 = vsel %vm699, %v1685, 0
    %1690 = vmatprep.subr.mxu0 0.0
    %1691 = vmatpush1.xpose.msra.mxu0 %v1688
    %1692 = vmatprep.subr.mxu0 0.0
    %1693 = vmatpush1.xpose.msra.mxu0 0.0
    %1694 = vmatprep.subr.mxu0 0.0
    %1695 = vmatpush1.xpose.msra.mxu0 0.0
    %1696 = vmatprep.subr.mxu0 0.0
    %1697 = vmatpush1.xpose.msra.mxu0 0.0
    %1698 = vmatprep.subr.mxu0 0.0
    %1699 = vmatpush1.xpose.msra.mxu0 0.0
    %1700 = vmatprep.subr.mxu0 0.0
    %1701 = vmatpush1.xpose.msra.mxu0 0.0
    %1702 = vmatprep.subr.mxu0 0.0
    %1703 = vmatpush1.xpose.msra.mxu0 0.0
    %1704 = vmatprep.subr.mxu0 0.0
    %1705 = vmatpush1.xpose.msra.mxu0 0.0
    %1706 = vmatprep.subr.mxu0 0.0
    %1707 = vmatpush1.xpose.msra.mxu0 0.0
    %1708 = vmatprep.subr.mxu0 0.0
    %1709 = vmatpush1.xpose.msra.mxu0 0.0
    %1710 = vmatprep.subr.mxu0 0.0
    %1711 = vmatpush1.xpose.msra.mxu0 0.0
    %1712 = vmatprep.subr.mxu0 0.0
    %1713 = vmatpush1.xpose.msra.mxu0 0.0
    %1714 = vmatprep.subr.mxu0 0.0
    %1715 = vmatpush1.xpose.msra.mxu0 0.0
    %1716 = vmatprep.subr.mxu0 0.0
    %1717 = vmatpush1.xpose.msra.mxu0 0.0
    %1718 = vmatprep.subr.mxu0 0.0
    %1719 = vmatpush1.xpose.msra.mxu0 0.0
    %1720 = vmatprep.subr.mxu0 0.0
    %1721 = vmatpush1.xpose.msra.mxu0 0.0
    %1722 = vmatprep.subr.mxu0 0.0
    %1723 = vmatpush1.xpose.msra.mxu0 0.0
    %1724 = vmatprep.subr.mxu0 0.0
    %1725 = vmatpush1.xpose.msra.mxu0 0.0
    %1726 = vmatprep.subr.mxu0 0.0
    %1727 = vmatpush1.xpose.msra.mxu0 0.0
    %1728 = vmatprep.subr.mxu0 0.0
    %1729 = vmatpush1.xpose.msra.mxu0 0.0
    %1730 = vmatprep.subr.mxu0 0.0
    %1731 = vmatpush1.xpose.msra.mxu0 0.0
    %1732 = vmatprep.subr.mxu0 0.0
    %1733 = vmatpush1.xpose.msra.mxu0 0.0
    %1734 = vmatprep.subr.mxu0 0.0
    %1735 = vmatpush1.xpose.msra.mxu0 0.0
    %1736 = vmatprep.subr.mxu0 0.0
    %1737 = vmatpush1.xpose.msra.mxu0 0.0
    %1738 = vmatprep.subr.mxu0 0.0
    %1739 = vmatpush1.xpose.msra.mxu0 0.0
    %1740 = vmatprep.subr.mxu0 0.0
    %1741 = vmatpush1.xpose.msra.mxu0 0.0
    %1742 = vmatprep.subr.mxu0 0.0
    %1743 = vmatpush1.xpose.msra.mxu0 0.0
    %1744 = vmatprep.subr.mxu0 0.0
    %1745 = vmatpush1.xpose.msra.mxu0 0.0
    %1746 = vmatprep.subr.mxu0 0.0
    %1747 = vmatpush1.xpose.msra.mxu0 0.0
    %1748 = vmatprep.subr.mxu0 0.0
    %1749 = vmatpush1.xpose.msra.mxu0 0.0
    %1750 = vmatprep.subr.mxu0 0.0
    %1751 = vmatpush1.xpose.msra.mxu0 0.0
    %1752 = vmatprep.subr.mxu0 0.0
    %1753 = vmatpush1.xpose.msra.mxu0 0.0
    %1754 = vmatprep.mubr.f32.mxu0 0.0
    %1755 = vmatmul.mubr.f32.gmra.mrb[0].mxu0 %v1686
    %v1756 = vpop.f32.mrb[0].mxu0
    %v1757 = vadd.f32 0.0, %v1756
    %v1758 = vpop.f32.mrb[0].mxu0
    %1759 = vdwg.mxu0
    %1760 = vrot.lane.b32.xlu0 %v526, 104
    %v1761 = vpop.permute.xlu0 %1760
    %1762 = vrot.lane.b32.xlu0 %v610, 104
    %v1763 = vpop.permute.xlu0 %1762
    %v1764 = vsel %vm699, %v1761, 0
    %v1766 = vsel %vm699, %v1763, 0
    %1768 = vmatprep.subr.mxu0 0.0
    %1769 = vmatpush1.xpose.msra.mxu0 %v1766
    %1770 = vmatprep.subr.mxu0 0.0
    %1771 = vmatpush1.xpose.msra.mxu0 0.0
    %1772 = vmatprep.subr.mxu0 0.0
    %1773 = vmatpush1.xpose.msra.mxu0 0.0
    %1774 = vmatprep.subr.mxu0 0.0
    %1775 = vmatpush1.xpose.msra.mxu0 0.0
    %1776 = vmatprep.subr.mxu0 0.0
    %1777 = vmatpush1.xpose.msra.mxu0 0.0
    %1778 = vmatprep.subr.mxu0 0.0
    %1779 = vmatpush1.xpose.msra.mxu0 0.0
    %1780 = vmatprep.subr.mxu0 0.0
    %1781 = vmatpush1.xpose.msra.mxu0 0.0
    %1782 = vmatprep.subr.mxu0 0.0
    %1783 = vmatpush1.xpose.msra.mxu0 0.0
    %1784 = vmatprep.subr.mxu0 0.0
    %1785 = vmatpush1.xpose.msra.mxu0 0.0
    %1786 = vmatprep.subr.mxu0 0.0
    %1787 = vmatpush1.xpose.msra.mxu0 0.0
    %1788 = vmatprep.subr.mxu0 0.0
    %1789 = vmatpush1.xpose.msra.mxu0 0.0
    %1790 = vmatprep.subr.mxu0 0.0
    %1791 = vmatpush1.xpose.msra.mxu0 0.0
    %1792 = vmatprep.subr.mxu0 0.0
    %1793 = vmatpush1.xpose.msra.mxu0 0.0
    %1794 = vmatprep.subr.mxu0 0.0
    %1795 = vmatpush1.xpose.msra.mxu0 0.0
    %1796 = vmatprep.subr.mxu0 0.0
    %1797 = vmatpush1.xpose.msra.mxu0 0.0
    %1798 = vmatprep.subr.mxu0 0.0
    %1799 = vmatpush1.xpose.msra.mxu0 0.0
    %1800 = vmatprep.subr.mxu0 0.0
    %1801 = vmatpush1.xpose.msra.mxu0 0.0
    %1802 = vmatprep.subr.mxu0 0.0
    %1803 = vmatpush1.xpose.msra.mxu0 0.0
    %1804 = vmatprep.subr.mxu0 0.0
    %1805 = vmatpush1.xpose.msra.mxu0 0.0
    %1806 = vmatprep.subr.mxu0 0.0
    %1807 = vmatpush1.xpose.msra.mxu0 0.0
    %1808 = vmatprep.subr.mxu0 0.0
    %1809 = vmatpush1.xpose.msra.mxu0 0.0
    %1810 = vmatprep.subr.mxu0 0.0
    %1811 = vmatpush1.xpose.msra.mxu0 0.0
    %1812 = vmatprep.subr.mxu0 0.0
    %1813 = vmatpush1.xpose.msra.mxu0 0.0
    %1814 = vmatprep.subr.mxu0 0.0
    %1815 = vmatpush1.xpose.msra.mxu0 0.0
    %1816 = vmatprep.subr.mxu0 0.0
    %1817 = vmatpush1.xpose.msra.mxu0 0.0
    %1818 = vmatprep.subr.mxu0 0.0
    %1819 = vmatpush1.xpose.msra.mxu0 0.0
    %1820 = vmatprep.subr.mxu0 0.0
    %1821 = vmatpush1.xpose.msra.mxu0 0.0
    %1822 = vmatprep.subr.mxu0 0.0
    %1823 = vmatpush1.xpose.msra.mxu0 0.0
    %1824 = vmatprep.subr.mxu0 0.0
    %1825 = vmatpush1.xpose.msra.mxu0 0.0
    %1826 = vmatprep.subr.mxu0 0.0
    %1827 = vmatpush1.xpose.msra.mxu0 0.0
    %1828 = vmatprep.subr.mxu0 0.0
    %1829 = vmatpush1.xpose.msra.mxu0 0.0
    %1830 = vmatprep.subr.mxu0 0.0
    %1831 = vmatpush1.xpose.msra.mxu0 0.0
    %1832 = vmatprep.mubr.f32.mxu0 0.0
    %1833 = vmatmul.mubr.f32.gmra.mrb[0].mxu0 %v1764
    %v1834 = vpop.f32.mrb[0].mxu0
    %v1835 = vadd.f32 0.0, %v1834
    %v1836 = vpop.f32.mrb[0].mxu0
    %1837 = vdwg.mxu0
    %v1838 = vsel %vm699, %v1757, -inf
    %1839 = vmax.xlane.f32.xlu0 %v1838
    %v1840 = vpop.xlane.xlu0 %1839
    %v1841 = vsel %vm699, %v1835, -inf
    %1842 = vmax.xlane.f32.xlu0 %v1841
    %v1843 = vpop.xlane.xlu0 %1842
    %v1844 = vsub.f32 %v1757, %v1840
    %v1845 = vsub.f32 %v1835, %v1843
    %v1846 = vmul.f32 %v1844, 1.442695
    %v1847 = vpow.pop %v1846
    %v1848 = vmul.f32 %v1845, 1.442695
    %v1849 = vpow.pop %v1848
    %v1850 = vsel %vm699, %v1847, 0.0
    %1851 = vadd.xlane.f32.xlu0 %v1850
    %v1852 = vpop.xlane.xlu0 %1851
    %v1853 = vsel %vm699, %v1849, 0.0
    %1854 = vadd.xlane.f32.xlu0 %v1853
    %v1855 = vpop.xlane.xlu0 %1854
    %v1856 = vrcp.pop %v1852
    %v1857 = vrcp.pop %v1855
    %v1858 = vmul.f32 %v1847, %v1856
    %v1859 = vmul.f32 %v1849, %v1857
    %1860 = vrot.lane.b32.xlu0 %v691, 104
    %v1861 = vpop.permute.xlu0 %1860
    %v1864 = vsel %vm699, %v1858, 0
    %1866 = vmatprep.subr.mxu0 0.0
    %1867 = vmatpush1.msra.mxu0 %v1861
    %1868 = vmatprep.subr.mxu0 0.0
    %1869 = vmatpush1.msra.mxu0 0.0
    %1870 = vmatprep.subr.mxu0 0.0
    %1871 = vmatpush1.msra.mxu0 0.0
    %1872 = vmatprep.subr.mxu0 0.0
    %1873 = vmatpush1.msra.mxu0 0.0
    %1874 = vmatprep.subr.mxu0 0.0
    %1875 = vmatpush1.msra.mxu0 0.0
    %1876 = vmatprep.subr.mxu0 0.0
    %1877 = vmatpush1.msra.mxu0 0.0
    %1878 = vmatprep.subr.mxu0 0.0
    %1879 = vmatpush1.msra.mxu0 0.0
    %1880 = vmatprep.subr.mxu0 0.0
    %1881 = vmatpush1.msra.mxu0 0.0
    %1882 = vmatprep.subr.mxu0 0.0
    %1883 = vmatpush1.msra.mxu0 0.0
    %1884 = vmatprep.subr.mxu0 0.0
    %1885 = vmatpush1.msra.mxu0 0.0
    %1886 = vmatprep.subr.mxu0 0.0
    %1887 = vmatpush1.msra.mxu0 0.0
    %1888 = vmatprep.subr.mxu0 0.0
    %1889 = vmatpush1.msra.mxu0 0.0
    %1890 = vmatprep.subr.mxu0 0.0
    %1891 = vmatpush1.msra.mxu0 0.0
    %1892 = vmatprep.subr.mxu0 0.0
    %1893 = vmatpush1.msra.mxu0 0.0
    %1894 = vmatprep.subr.mxu0 0.0
    %1895 = vmatpush1.msra.mxu0 0.0
    %1896 = vmatprep.subr.mxu0 0.0
    %1897 = vmatpush1.msra.mxu0 0.0
    %1898 = vmatprep.subr.mxu0 0.0
    %1899 = vmatpush1.msra.mxu0 0.0
    %1900 = vmatprep.subr.mxu0 0.0
    %1901 = vmatpush1.msra.mxu0 0.0
    %1902 = vmatprep.subr.mxu0 0.0
    %1903 = vmatpush1.msra.mxu0 0.0
    %1904 = vmatprep.subr.mxu0 0.0
    %1905 = vmatpush1.msra.mxu0 0.0
    %1906 = vmatprep.subr.mxu0 0.0
    %1907 = vmatpush1.msra.mxu0 0.0
    %1908 = vmatprep.subr.mxu0 0.0
    %1909 = vmatpush1.msra.mxu0 0.0
    %1910 = vmatprep.subr.mxu0 0.0
    %1911 = vmatpush1.msra.mxu0 0.0
    %1912 = vmatprep.subr.mxu0 0.0
    %1913 = vmatpush1.msra.mxu0 0.0
    %1914 = vmatprep.subr.mxu0 0.0
    %1915 = vmatpush1.msra.mxu0 0.0
    %1916 = vmatprep.subr.mxu0 0.0
    %1917 = vmatpush1.msra.mxu0 0.0
    %1918 = vmatprep.subr.mxu0 0.0
    %1919 = vmatpush1.msra.mxu0 0.0
    %1920 = vmatprep.subr.mxu0 0.0
    %1921 = vmatpush1.msra.mxu0 0.0
    %1922 = vmatprep.subr.mxu0 0.0
    %1923 = vmatpush1.msra.mxu0 0.0
    %1924 = vmatprep.subr.mxu0 0.0
    %1925 = vmatpush1.msra.mxu0 0.0
    %1926 = vmatprep.subr.mxu0 0.0
    %1927 = vmatpush1.msra.mxu0 0.0
    %1928 = vmatprep.subr.mxu0 0.0
    %1929 = vmatpush1.msra.mxu0 0.0
    %1930 = vmatprep.mubr.f32.mxu0 0.0
    %1931 = vmatmul.mubr.f32.gmra.mrb[0].mxu0 %v1864
    %v1932 = vpop.f32.mrb[0].mxu0
    %v1933 = vadd.f32 0.0, %v1932
    %v1934 = vpop.f32.mrb[0].mxu0
    %1935 = vdwg.mxu0
    %1936 = vrot.lane.b32.xlu0 %v696, 104
    %v1937 = vpop.permute.xlu0 %1936
    %v1940 = vsel %vm699, %v1859, 0
    %1942 = vmatprep.subr.mxu0 0.0
    %1943 = vmatpush1.msra.mxu0 %v1937
    %1944 = vmatprep.subr.mxu0 0.0
    %1945 = vmatpush1.msra.mxu0 0.0
    %1946 = vmatprep.subr.mxu0 0.0
    %1947 = vmatpush1.msra.mxu0 0.0
    %1948 = vmatprep.subr.mxu0 0.0
    %1949 = vmatpush1.msra.mxu0 0.0
    %1950 = vmatprep.subr.mxu0 0.0
    %1951 = vmatpush1.msra.mxu0 0.0
    %1952 = vmatprep.subr.mxu0 0.0
    %1953 = vmatpush1.msra.mxu0 0.0
    %1954 = vmatprep.subr.mxu0 0.0
    %1955 = vmatpush1.msra.mxu0 0.0
    %1956 = vmatprep.subr.mxu0 0.0
    %1957 = vmatpush1.msra.mxu0 0.0
    %1958 = vmatprep.subr.mxu0 0.0
    %1959 = vmatpush1.msra.mxu0 0.0
    %1960 = vmatprep.subr.mxu0 0.0
    %1961 = vmatpush1.msra.mxu0 0.0
    %1962 = vmatprep.subr.mxu0 0.0
    %1963 = vmatpush1.msra.mxu0 0.0
    %1964 = vmatprep.subr.mxu0 0.0
    %1965 = vmatpush1.msra.mxu0 0.0
    %1966 = vmatprep.subr.mxu0 0.0
    %1967 = vmatpush1.msra.mxu0 0.0
    %1968 = vmatprep.subr.mxu0 0.0
    %1969 = vmatpush1.msra.mxu0 0.0
    %1970 = vmatprep.subr.mxu0 0.0
    %1971 = vmatpush1.msra.mxu0 0.0
    %1972 = vmatprep.subr.mxu0 0.0
    %1973 = vmatpush1.msra.mxu0 0.0
    %1974 = vmatprep.subr.mxu0 0.0
    %1975 = vmatpush1.msra.mxu0 0.0
    %1976 = vmatprep.subr.mxu0 0.0
    %1977 = vmatpush1.msra.mxu0 0.0
    %1978 = vmatprep.subr.mxu0 0.0
    %1979 = vmatpush1.msra.mxu0 0.0
    %1980 = vmatprep.subr.mxu0 0.0
    %1981 = vmatpush1.msra.mxu0 0.0
    %1982 = vmatprep.subr.mxu0 0.0
    %1983 = vmatpush1.msra.mxu0 0.0
    %1984 = vmatprep.subr.mxu0 0.0
    %1985 = vmatpush1.msra.mxu0 0.0
    %1986 = vmatprep.subr.mxu0 0.0
    %1987 = vmatpush1.msra.mxu0 0.0
    %1988 = vmatprep.subr.mxu0 0.0
    %1989 = vmatpush1.msra.mxu0 0.0
    %1990 = vmatprep.subr.mxu0 0.0
    %1991 = vmatpush1.msra.mxu0 0.0
    %1992 = vmatprep.subr.mxu0 0.0
    %1993 = vmatpush1.msra.mxu0 0.0
    %1994 = vmatprep.subr.mxu0 0.0
    %1995 = vmatpush1.msra.mxu0 0.0
    %1996 = vmatprep.subr.mxu0 0.0
    %1997 = vmatpush1.msra.mxu0 0.0
    %1998 = vmatprep.subr.mxu0 0.0
    %1999 = vmatpush1.msra.mxu0 0.0
    %2000 = vmatprep.subr.mxu0 0.0
    %2001 = vmatpush1.msra.mxu0 0.0
    %2002 = vmatprep.subr.mxu0 0.0
    %2003 = vmatpush1.msra.mxu0 0.0
    %2004 = vmatprep.subr.mxu0 0.0
    %2005 = vmatpush1.msra.mxu0 0.0
    %2006 = vmatprep.mubr.f32.mxu0 0.0
    %2007 = vmatmul.mubr.f32.gmra.mrb[0].mxu0 %v1940
    %v2008 = vpop.f32.mrb[0].mxu0
    %v2009 = vadd.f32 0.0, %v2008
    %v2010 = vpop.f32.mrb[0].mxu0
    %2011 = vdwg.mxu0
    %2014 = vrot.lane.b32.xlu0 %v1272, 8
    %v2015 = vpop.permute.xlu0 %2014
    %2016 = vrot.lane.b32.xlu0 %v1349, 8
    %v2017 = vpop.permute.xlu0 %2016
    %2022 = vrot.lane.b32.xlu0 %v1603, 16
    %v2023 = vpop.permute.xlu0 %2022
    %2024 = vrot.lane.b32.xlu0 %v1679, 16
    %v2025 = vpop.permute.xlu0 %2024
    %2030 = vrot.lane.b32.xlu0 %v1933, 24
    %v2031 = vpop.permute.xlu0 %2030
    %2032 = vrot.lane.b32.xlu0 %v2009, 24
    %v2033 = vpop.permute.xlu0 %2032
    %v2036 = vsel %vm699, %v944, %v2015
    %v2037 = vsel %vm699, %v1017, %v2017
    %vm2038 = vcmask 130048
    %v2039 = vsel %vm2038, %v2036, %v2023
    %v2040 = vsel %vm2038, %v2037, %v2025
    %vm2041 = vcmask 195584
    %v2042 = vsel %vm2041, %v2039, %v2031
    %v2043 = vsel %vm2041, %v2040, %v2033
    %v2044 = vld [vmem:[%s9] sm:$0xff]
    %v2045 = vld [vmem:[%s9 + $0x8] sm:$0xff]
    %v2046 = vld [vmem:[%s9 + $0x10] sm:$0xff]
    %v2047 = vld [vmem:[%s9 + $0x18] sm:$0xff]
    %v2049 = vsel %vm389, %v2042, 0
    %v2052 = vsel %vm389, %v2043, 0
    %2054 = vmatprep.subr.mxu0 0.0
    %2055 = vmatpush1.msra.mxu0 %v2044
    %2056 = vmatprep.subr.mxu0 0.0
    %2057 = vmatpush1.msra.mxu0 %v2045
    %2058 = vmatprep.subr.mxu0 0.0
    %2059 = vmatpush1.msra.mxu0 %v2046
    %2060 = vmatprep.subr.mxu0 0.0
    %2061 = vmatpush1.msra.mxu0 %v2047
    %2062 = vmatprep.subr.mxu0 0.0
    %2063 = vmatpush1.msra.mxu0 0.0
    %2064 = vmatprep.subr.mxu0 0.0
    %2065 = vmatpush1.msra.mxu0 0.0
    %2066 = vmatprep.subr.mxu0 0.0
    %2067 = vmatpush1.msra.mxu0 0.0
    %2068 = vmatprep.subr.mxu0 0.0
    %2069 = vmatpush1.msra.mxu0 0.0
    %2070 = vmatprep.subr.mxu0 0.0
    %2071 = vmatpush1.msra.mxu0 0.0
    %2072 = vmatprep.subr.mxu0 0.0
    %2073 = vmatpush1.msra.mxu0 0.0
    %2074 = vmatprep.subr.mxu0 0.0
    %2075 = vmatpush1.msra.mxu0 0.0
    %2076 = vmatprep.subr.mxu0 0.0
    %2077 = vmatpush1.msra.mxu0 0.0
    %2078 = vmatprep.subr.mxu0 0.0
    %2079 = vmatpush1.msra.mxu0 0.0
    %2080 = vmatprep.subr.mxu0 0.0
    %2081 = vmatpush1.msra.mxu0 0.0
    %2082 = vmatprep.subr.mxu0 0.0
    %2083 = vmatpush1.msra.mxu0 0.0
    %2084 = vmatprep.subr.mxu0 0.0
    %2085 = vmatpush1.msra.mxu0 0.0
    %2086 = vmatprep.subr.mxu0 0.0
    %2087 = vmatpush1.msra.mxu0 0.0
    %2088 = vmatprep.subr.mxu0 0.0
    %2089 = vmatpush1.msra.mxu0 0.0
    %2090 = vmatprep.subr.mxu0 0.0
    %2091 = vmatpush1.msra.mxu0 0.0
    %2092 = vmatprep.subr.mxu0 0.0
    %2093 = vmatpush1.msra.mxu0 0.0
    %2094 = vmatprep.subr.mxu0 0.0
    %2095 = vmatpush1.msra.mxu0 0.0
    %2096 = vmatprep.subr.mxu0 0.0
    %2097 = vmatpush1.msra.mxu0 0.0
    %2098 = vmatprep.subr.mxu0 0.0
    %2099 = vmatpush1.msra.mxu0 0.0
    %2100 = vmatprep.subr.mxu0 0.0
    %2101 = vmatpush1.msra.mxu0 0.0
    %2102 = vmatprep.subr.mxu0 0.0
    %2103 = vmatpush1.msra.mxu0 0.0
    %2104 = vmatprep.subr.mxu0 0.0
    %2105 = vmatpush1.msra.mxu0 0.0
    %2106 = vmatprep.subr.mxu0 0.0
    %2107 = vmatpush1.msra.mxu0 0.0
    %2108 = vmatprep.subr.mxu0 0.0
    %2109 = vmatpush1.msra.mxu0 0.0
    %2110 = vmatprep.subr.mxu0 0.0
    %2111 = vmatpush1.msra.mxu0 0.0
    %2112 = vmatprep.subr.mxu0 0.0
    %2113 = vmatpush1.msra.mxu0 0.0
    %2114 = vmatprep.subr.mxu0 0.0
    %2115 = vmatpush1.msra.mxu0 0.0
    %2116 = vmatprep.subr.mxu0 0.0
    %2117 = vmatpush1.msra.mxu0 0.0
    %2118 = vmatprep.mubr.f32.mxu0 0.0
    %2119 = vmatmul.mubr.f32.gmra.mrb[0].mxu0 %v2049
    %v2120 = vpop.f32.mrb[0].mxu0
    %v2121 = vadd.f32 0.0, %v2120
    %v2122 = vpop.f32.mrb[0].mxu0
    %2123 = vmatprep.mubr.f32.mxu0 0.0
    %2124 = vmatmul.mubr.f32.gmra.mrb[0].mxu0 %v2052
    %v2125 = vpop.f32.mrb[0].mxu0
    %v2126 = vadd.f32 0.0, %v2125
    %v2127 = vpop.f32.mrb[0].mxu0
    %2128 = vdwg.mxu0
    %v2129 = vadd.f32 %v385, %v2121
    %v2130 = vadd.f32 %v386, %v2126
    %v2131 = vld [vmem:[%s10] sm:$0x1]
    %v2133 = vlaneseq
    %v2134 = vshrl.u32 %v2133, 7
    %v2135 = vsub.s32 0, %v2134
    %v2136 = vrot.slane %v2131, %v2135
    %v2138 = vadd.f32 %v2129, %v2136
    %v2139 = vadd.f32 %v2130, %v2136
    %v2140 = vld [vmem:[%s17] sm:$0x1]
    %v2141 = vld [vmem:[%s18] sm:$0x1]
    %v2142 = vsel %vm389, %v2138, 0.0
    %2143 = vadd.xlane.f32.xlu0 %v2142
    %v2144 = vpop.xlane.xlu0 %2143
    %v2145 = vsel %vm389, %v2139, 0.0
    %2146 = vadd.xlane.f32.xlu0 %v2145
    %v2147 = vpop.xlane.xlu0 %2146
    %v2148 = vmul.f32 %v2144, %v396
    %v2149 = vmul.f32 %v2147, %v396
    %v2150 = vsub.f32 %v2138, %v2148
    %v2151 = vsub.f32 %v2139, %v2149
    %v2152 = vmul.f32 %v2150, %v2150
    %v2153 = vmul.f32 %v2151, %v2151
    %v2154 = vsel %vm389, %v2152, 0.0
    %2155 = vadd.xlane.f32.xlu0 %v2154
    %v2156 = vpop.xlane.xlu0 %2155
    %v2157 = vsel %vm389, %v2153, 0.0
    %2158 = vadd.xlane.f32.xlu0 %v2157
    %v2159 = vpop.xlane.xlu0 %2158
    %v2160 = vmul.f32 %v2156, %v396
    %v2161 = vmul.f32 %v2159, %v396
    %v2162 = vadd.f32 %v2160, 1e-05
    %v2163 = vadd.f32 %v2161, 1e-05
    %v2164 = vrsqrt.pop %v2162
    %v2165 = vrsqrt.pop %v2163
    %v2166 = vmul.f32 %v2150, %v2164
    %v2167 = vmul.f32 %v2151, %v2165
    %v2169 = vlaneseq
    %v2170 = vshrl.u32 %v2169, 7
    %v2171 = vsub.s32 0, %v2170
    %v2172 = vrot.slane %v2140, %v2171
    %v2174 = vmul.f32 %v2166, %v2172
    %v2175 = vmul.f32 %v2167, %v2172
    %v2177 = vlaneseq
    %v2178 = vshrl.u32 %v2177, 7
    %v2179 = vsub.s32 0, %v2178
    %v2180 = vrot.slane %v2141, %v2179
    %v2182 = vadd.f32 %v2174, %v2180
    %v2183 = vadd.f32 %v2175, %v2180
    %v2184 = vld [vmem:[#allocation6] sm:$0xff]
    %v2185 = vld [vmem:[#allocation6 + $0x8] sm:$0xff]
    %v2186 = vld [vmem:[#allocation6 + $0x10] sm:$0xff]
    %v2187 = vld [vmem:[#allocation6 + $0x18] sm:$0xff]
    %v2188 = vld [vmem:[%s14] sm:$0x1]
    %v2190 = vlaneseq
    %v2191 = vshrl.u32 %v2190, 7
    %v2192 = vsub.s32 0, %v2191
    %v2193 = vrot.slane %v2188, %v2192
    %v2196 = vsel %vm389, %v2182, 0
    %v2199 = vsel %vm389, %v2183, 0
    %2201 = vmatprep.subr.mxu0 0.0
    %2202 = vmatpush1.msra.mxu0 %v2184
    %2203 = vmatprep.subr.mxu0 0.0
    %2204 = vmatpush1.msra.mxu0 %v2185
    %2205 = vmatprep.subr.mxu0 0.0
    %2206 = vmatpush1.msra.mxu0 %v2186
    %2207 = vmatprep.subr.mxu0 0.0
    %2208 = vmatpush1.msra.mxu0 %v2187
    %2209 = vmatprep.subr.mxu0 0.0
    %2210 = vmatpush1.msra.mxu0 0.0
    %2211 = vmatprep.subr.mxu0 0.0
    %2212 = vmatpush1.msra.mxu0 0.0
    %2213 = vmatprep.subr.mxu0 0.0
    %2214 = vmatpush1.msra.mxu0 0.0
    %2215 = vmatprep.subr.mxu0 0.0
    %2216 = vmatpush1.msra.mxu0 0.0
    %2217 = vmatprep.subr.mxu0 0.0
    %2218 = vmatpush1.msra.mxu0 0.0
    %2219 = vmatprep.subr.mxu0 0.0
    %2220 = vmatpush1.msra.mxu0 0.0
    %2221 = vmatprep.subr.mxu0 0.0
    %2222 = vmatpush1.msra.mxu0 0.0
    %2223 = vmatprep.subr.mxu0 0.0
    %2224 = vmatpush1.msra.mxu0 0.0
    %2225 = vmatprep.subr.mxu0 0.0
    %2226 = vmatpush1.msra.mxu0 0.0
    %2227 = vmatprep.subr.mxu0 0.0
    %2228 = vmatpush1.msra.mxu0 0.0
    %2229 = vmatprep.subr.mxu0 0.0
    %2230 = vmatpush1.msra.mxu0 0.0
    %2231 = vmatprep.subr.mxu0 0.0
    %2232 = vmatpush1.msra.mxu0 0.0
    %2233 = vmatprep.subr.mxu0 0.0
    %2234 = vmatpush1.msra.mxu0 0.0
    %2235 = vmatprep.subr.mxu0 0.0
    %2236 = vmatpush1.msra.mxu0 0.0
    %2237 = vmatprep.subr.mxu0 0.0
    %2238 = vmatpush1.msra.mxu0 0.0
    %2239 = vmatprep.subr.mxu0 0.0
    %2240 = vmatpush1.msra.mxu0 0.0
    %2241 = vmatprep.subr.mxu0 0.0
    %2242 = vmatpush1.msra.mxu0 0.0
    %2243 = vmatprep.subr.mxu0 0.0
    %2244 = vmatpush1.msra.mxu0 0.0
    %2245 = vmatprep.subr.mxu0 0.0
    %2246 = vmatpush1.msra.mxu0 0.0
    %2247 = vmatprep.subr.mxu0 0.0
    %2248 = vmatpush1.msra.mxu0 0.0
    %2249 = vmatprep.subr.mxu0 0.0
    %2250 = vmatpush1.msra.mxu0 0.0
    %2251 = vmatprep.subr.mxu0 0.0
    %2252 = vmatpush1.msra.mxu0 0.0
    %2253 = vmatprep.subr.mxu0 0.0
    %2254 = vmatpush1.msra.mxu0 0.0
    %2255 = vmatprep.subr.mxu0 0.0
    %2256 = vmatpush1.msra.mxu0 0.0
    %2257 = vmatprep.subr.mxu0 0.0
    %2258 = vmatpush1.msra.mxu0 0.0
    %2259 = vmatprep.subr.mxu0 0.0
    %2260 = vmatpush1.msra.mxu0 0.0
    %2261 = vmatprep.subr.mxu0 0.0
    %2262 = vmatpush1.msra.mxu0 0.0
    %2263 = vmatprep.subr.mxu0 0.0
    %2264 = vmatpush1.msra.mxu0 0.0
    %2265 = vmatprep.mubr.f32.mxu0 0.0
    %2266 = vmatmul.mubr.f32.gmra.mrb[0].mxu0 %v2196
    %v2267 = vpop.f32.mrb[0].mxu0
    %v2268 = vadd.f32 %v2193, %v2267
    %v2269 = vpop.f32.mrb[0].mxu0
    %2270 = vmatprep.mubr.f32.mxu0 0.0
    %2271 = vmatmul.mubr.f32.gmra.mrb[0].mxu0 %v2199
    %v2272 = vpop.f32.mrb[0].mxu0
    %v2273 = vadd.f32 %v2193, %v2272
    %v2274 = vpop.f32.mrb[0].mxu0
    %2275 = vdwg.mxu0
    %v2276 = vmax.f32 %v2268, 0.0
    %v2277 = vmax.f32 %v2273, 0.0
    %v2278 = vld [vmem:[%s15] sm:$0xff]
    %v2279 = vld [vmem:[%s15 + $0x8] sm:$0xff]
    %v2280 = vld [vmem:[%s15 + $0x10] sm:$0xff]
    %v2281 = vld [vmem:[%s15 + $0x18] sm:$0xff]
    %v2282 = vld [vmem:[%s15 + $0x20] sm:$0xff]
    %v2283 = vld [vmem:[%s15 + $0x28] sm:$0xff]
    %v2284 = vld [vmem:[%s15 + $0x30] sm:$0xff]
    %v2285 = vld [vmem:[%s15 + $0x38] sm:$0xff]
    %v2286 = vld [vmem:[%s15 + $0x40] sm:$0xff]
    %v2287 = vld [vmem:[%s15 + $0x48] sm:$0xff]
    %v2288 = vld [vmem:[%s15 + $0x50] sm:$0xff]
    %v2289 = vld [vmem:[%s15 + $0x58] sm:$0xff]
    %v2290 = vld [vmem:[%s15 + $0x60] sm:$0xff]
    %v2291 = vld [vmem:[%s15 + $0x68] sm:$0xff]
    %v2292 = vld [vmem:[%s15 + $0x70] sm:$0xff]
    %v2293 = vld [vmem:[%s15 + $0x78] sm:$0xff]
    %2294 = vmatprep.subr.mxu0 0.0
    %2295 = vmatpush1.msra.mxu0 %v2278
    %2296 = vmatprep.subr.mxu0 0.0
    %2297 = vmatpush1.msra.mxu0 %v2279
    %2298 = vmatprep.subr.mxu0 0.0
    %2299 = vmatpush1.msra.mxu0 %v2280
    %2300 = vmatprep.subr.mxu0 0.0
    %2301 = vmatpush1.msra.mxu0 %v2281
    %2302 = vmatprep.subr.mxu0 0.0
    %2303 = vmatpush1.msra.mxu0 %v2282
    %2304 = vmatprep.subr.mxu0 0.0
    %2305 = vmatpush1.msra.mxu0 %v2283
    %2306 = vmatprep.subr.mxu0 0.0
    %2307 = vmatpush1.msra.mxu0 %v2284
    %2308 = vmatprep.subr.mxu0 0.0
    %2309 = vmatpush1.msra.mxu0 %v2285
    %2310 = vmatprep.subr.mxu0 0.0
    %2311 = vmatpush1.msra.mxu0 %v2286
    %2312 = vmatprep.subr.mxu0 0.0
    %2313 = vmatpush1.msra.mxu0 %v2287
    %2314 = vmatprep.subr.mxu0 0.0
    %2315 = vmatpush1.msra.mxu0 %v2288
    %2316 = vmatprep.subr.mxu0 0.0
    %2317 = vmatpush1.msra.mxu0 %v2289
    %2318 = vmatprep.subr.mxu0 0.0
    %2319 = vmatpush1.msra.mxu0 %v2290
    %2320 = vmatprep.subr.mxu0 0.0
    %2321 = vmatpush1.msra.mxu0 %v2291
    %2322 = vmatprep.subr.mxu0 0.0
    %2323 = vmatpush1.msra.mxu0 %v2292
    %2324 = vmatprep.subr.mxu0 0.0
    %2325 = vmatpush1.msra.mxu0 %v2293
    %2326 = vmatprep.subr.mxu0 0.0
    %2327 = vmatpush1.msra.mxu0 0.0
    %2328 = vmatprep.subr.mxu0 0.0
    %2329 = vmatpush1.msra.mxu0 0.0
    %2330 = vmatprep.subr.mxu0 0.0
    %2331 = vmatpush1.msra.mxu0 0.0
    %2332 = vmatprep.subr.mxu0 0.0
    %2333 = vmatpush1.msra.mxu0 0.0
    %2334 = vmatprep.subr.mxu0 0.0
    %2335 = vmatpush1.msra.mxu0 0.0
    %2336 = vmatprep.subr.mxu0 0.0
    %2337 = vmatpush1.msra.mxu0 0.0
    %2338 = vmatprep.subr.mxu0 0.0
    %2339 = vmatpush1.msra.mxu0 0.0
    %2340 = vmatprep.subr.mxu0 0.0
    %2341 = vmatpush1.msra.mxu0 0.0
    %2342 = vmatprep.subr.mxu0 0.0
    %2343 = vmatpush1.msra.mxu0 0.0
    %2344 = vmatprep.subr.mxu0 0.0
    %2345 = vmatpush1.msra.mxu0 0.0
    %2346 = vmatprep.subr.mxu0 0.0
    %2347 = vmatpush1.msra.mxu0 0.0
    %2348 = vmatprep.subr.mxu0 0.0
    %2349 = vmatpush1.msra.mxu0 0.0
    %2350 = vmatprep.subr.mxu0 0.0
    %2351 = vmatpush1.msra.mxu0 0.0
    %2352 = vmatprep.subr.mxu0 0.0
    %2353 = vmatpush1.msra.mxu0 0.0
    %2354 = vmatprep.subr.mxu0 0.0
    %2355 = vmatpush1.msra.mxu0 0.0
    %2356 = vmatprep.subr.mxu0 0.0
    %2357 = vmatpush1.msra.mxu0 0.0
    %2358 = vmatprep.mubr.f32.mxu0 0.0
    %2359 = vmatmul.mubr.f32.gmra.mrb[0].mxu0 %v2276
    %v2360 = vpop.f32.mrb[0].mxu0
    %v2361 = vadd.f32 0.0, %v2360
    %v2362 = vpop.f32.mrb[0].mxu0
    %2363 = vmatprep.mubr.f32.mxu0 0.0
    %2364 = vmatmul.mubr.f32.gmra.mrb[0].mxu0 %v2277
    %v2365 = vpop.f32.mrb[0].mxu0
    %v2366 = vadd.f32 0.0, %v2365
    %v2367 = vpop.f32.mrb[0].mxu0
    %2368 = vdwg.mxu0
    %v2369 = vadd.f32 %v2138, %v2361
    %v2370 = vadd.f32 %v2139, %v2366
    %v2371 = vld [vmem:[%s16] sm:$0x1]
    %v2373 = vlaneseq
    %v2374 = vshrl.u32 %v2373, 7
    %v2375 = vsub.s32 0, %v2374
    %v2376 = vrot.slane %v2371, %v2375
    %v2378 = vadd.f32 %v2369, %v2376
    %v2379 = vadd.f32 %v2370, %v2376
    %s2380 = scalar_lea.vmem %s11, 1
    %v2381 = vld [vmem:[%s2380] sm:$0x1]
    %s2382 = scalar_lea.vmem %s12, 1
    %v2383 = vld [vmem:[%s2382] sm:$0x1]
    %v2384 = vsel %vm389, %v2378, 0.0
    %2385 = vadd.xlane.f32.xlu0 %v2384
    %v2386 = vpop.xlane.xlu0 %2385
    %v2387 = vsel %vm389, %v2379, 0.0
    %2388 = vadd.xlane.f32.xlu0 %v2387
    %v2389 = vpop.xlane.xlu0 %2388
    %v2390 = vmul.f32 %v2386, %v396
    %v2391 = vmul.f32 %v2389, %v396
    %v2392 = vsub.f32 %v2378, %v2390
    %v2393 = vsub.f32 %v2379, %v2391
    %v2394 = vmul.f32 %v2392, %v2392
    %v2395 = vmul.f32 %v2393, %v2393
    %v2396 = vsel %vm389, %v2394, 0.0
    %2397 = vadd.xlane.f32.xlu0 %v2396
    %v2398 = vpop.xlane.xlu0 %2397
    %v2399 = vsel %vm389, %v2395, 0.0
    %2400 = vadd.xlane.f32.xlu0 %v2399
    %v2401 = vpop.xlane.xlu0 %2400
    %v2402 = vmul.f32 %v2398, %v396
    %v2403 = vmul.f32 %v2401, %v396
    %v2404 = vadd.f32 %v2402, 1e-05
    %v2405 = vadd.f32 %v2403, 1e-05
    %v2406 = vrsqrt.pop %v2404
    %v2407 = vrsqrt.pop %v2405
    %v2408 = vmul.f32 %v2392, %v2406
    %v2409 = vmul.f32 %v2393, %v2407
    %v2411 = vlaneseq
    %v2412 = vshrl.u32 %v2411, 7
    %v2413 = vsub.s32 0, %v2412
    %v2414 = vrot.slane %v2381, %v2413
    %v2416 = vmul.f32 %v2408, %v2414
    %v2417 = vmul.f32 %v2409, %v2414
    %v2419 = vlaneseq
    %v2420 = vshrl.u32 %v2419, 7
    %v2421 = vsub.s32 0, %v2420
    %v2422 = vrot.slane %v2383, %v2421
    %v2424 = vadd.f32 %v2416, %v2422
    %v2425 = vadd.f32 %v2417, %v2422
    %s2426 = scalar_lea.vmem %s3, 32
    %v2427 = vld [vmem:[%s2426] sm:$0xff]
    %v2428 = vld [vmem:[%s2426 + $0x8] sm:$0xff]
    %v2429 = vld [vmem:[%s2426 + $0x10] sm:$0xff]
    %v2430 = vld [vmem:[%s2426 + $0x18] sm:$0xff]
    %s2431 = scalar_lea.vmem %s4, 1
    %v2432 = vld [vmem:[%s2431] sm:$0x1]
    %v2434 = vlaneseq
    %v2435 = vshrl.u32 %v2434, 7
    %v2436 = vsub.s32 0, %v2435
    %v2437 = vrot.slane %v2432, %v2436
    %v2440 = vsel %vm389, %v2424, 0
    %v2443 = vsel %vm389, %v2425, 0
    %2445 = vmatprep.subr.mxu0 0.0
    %2446 = vmatpush1.msra.mxu0 %v2427
    %2447 = vmatprep.subr.mxu0 0.0
    %2448 = vmatpush1.msra.mxu0 %v2428
    %2449 = vmatprep.subr.mxu0 0.0
    %2450 = vmatpush1.msra.mxu0 %v2429
    %2451 = vmatprep.subr.mxu0 0.0
    %2452 = vmatpush1.msra.mxu0 %v2430
    %2453 = vmatprep.subr.mxu0 0.0
    %2454 = vmatpush1.msra.mxu0 0.0
    %2455 = vmatprep.subr.mxu0 0.0
    %2456 = vmatpush1.msra.mxu0 0.0
    %2457 = vmatprep.subr.mxu0 0.0
    %2458 = vmatpush1.msra.mxu0 0.0
    %2459 = vmatprep.subr.mxu0 0.0
    %2460 = vmatpush1.msra.mxu0 0.0
    %2461 = vmatprep.subr.mxu0 0.0
    %2462 = vmatpush1.msra.mxu0 0.0
    %2463 = vmatprep.subr.mxu0 0.0
    %2464 = vmatpush1.msra.mxu0 0.0
    %2465 = vmatprep.subr.mxu0 0.0
    %2466 = vmatpush1.msra.mxu0 0.0
    %2467 = vmatprep.subr.mxu0 0.0
    %2468 = vmatpush1.msra.mxu0 0.0
    %2469 = vmatprep.subr.mxu0 0.0
    %2470 = vmatpush1.msra.mxu0 0.0
    %2471 = vmatprep.subr.mxu0 0.0
    %2472 = vmatpush1.msra.mxu0 0.0
    %2473 = vmatprep.subr.mxu0 0.0
    %2474 = vmatpush1.msra.mxu0 0.0
    %2475 = vmatprep.subr.mxu0 0.0
    %2476 = vmatpush1.msra.mxu0 0.0
    %2477 = vmatprep.subr.mxu0 0.0
    %2478 = vmatpush1.msra.mxu0 0.0
    %2479 = vmatprep.subr.mxu0 0.0
    %2480 = vmatpush1.msra.mxu0 0.0
    %2481 = vmatprep.subr.mxu0 0.0
    %2482 = vmatpush1.msra.mxu0 0.0
    %2483 = vmatprep.subr.mxu0 0.0
    %2484 = vmatpush1.msra.mxu0 0.0
    %2485 = vmatprep.subr.mxu0 0.0
    %2486 = vmatpush1.msra.mxu0 0.0
    %2487 = vmatprep.subr.mxu0 0.0
    %2488 = vmatpush1.msra.mxu0 0.0
    %2489 = vmatprep.subr.mxu0 0.0
    %2490 = vmatpush1.msra.mxu0 0.0
    %2491 = vmatprep.subr.mxu0 0.0
    %2492 = vmatpush1.msra.mxu0 0.0
    %2493 = vmatprep.subr.mxu0 0.0
    %2494 = vmatpush1.msra.mxu0 0.0
    %2495 = vmatprep.subr.mxu0 0.0
    %2496 = vmatpush1.msra.mxu0 0.0
    %2497 = vmatprep.subr.mxu0 0.0
    %2498 = vmatpush1.msra.mxu0 0.0
    %2499 = vmatprep.subr.mxu0 0.0
    %2500 = vmatpush1.msra.mxu0 0.0
    %2501 = vmatprep.subr.mxu0 0.0
    %2502 = vmatpush1.msra.mxu0 0.0
    %2503 = vmatprep.subr.mxu0 0.0
    %2504 = vmatpush1.msra.mxu0 0.0
    %2505 = vmatprep.subr.mxu0 0.0
    %2506 = vmatpush1.msra.mxu0 0.0
    %2507 = vmatprep.subr.mxu0 0.0
    %2508 = vmatpush1.msra.mxu0 0.0
    %2509 = vmatprep.mubr.f32.mxu0 0.0
    %2510 = vmatmul.mubr.f32.gmra.mrb[0].mxu0 %v2440
    %v2511 = vpop.f32.mrb[0].mxu0
    %v2512 = vadd.f32 %v2437, %v2511
    %v2513 = vpop.f32.mrb[0].mxu0
    %2514 = vmatprep.mubr.f32.mxu0 0.0
    %2515 = vmatmul.mubr.f32.gmra.mrb[0].mxu0 %v2443
    %v2516 = vpop.f32.mrb[0].mxu0
    %v2517 = vadd.f32 %v2437, %v2516
    %v2518 = vpop.f32.mrb[0].mxu0
    %2519 = vdwg.mxu0
    %v2520 = vmul.f32 %v2512, 0.35355338
    %v2521 = vmul.f32 %v2517, 0.35355338
    %s2522 = scalar_lea.vmem %s5, 32
    %v2523 = vld [vmem:[%s2522] sm:$0xff]
    %v2524 = vld [vmem:[%s2522 + $0x8] sm:$0xff]
    %v2525 = vld [vmem:[%s2522 + $0x10] sm:$0xff]
    %v2526 = vld [vmem:[%s2522 + $0x18] sm:$0xff]
    %s2527 = scalar_lea.vmem %s6, 1
    %v2528 = vld [vmem:[%s2527] sm:$0x1]
    %v2530 = vlaneseq
    %v2531 = vshrl.u32 %v2530, 7
    %v2532 = vsub.s32 0, %v2531
    %v2533 = vrot.slane %v2528, %v2532
    %2535 = vmatprep.subr.mxu0 0.0
    %2536 = vmatpush1.msra.mxu0 %v2523
    %2537 = vmatprep.subr.mxu0 0.0
    %2538 = vmatpush1.msra.mxu0 %v2524
    %2539 = vmatprep.subr.mxu0 0.0
    %2540 = vmatpush1.msra.mxu0 %v2525
    %2541 = vmatprep.subr.mxu0 0.0
    %2542 = vmatpush1.msra.mxu0 %v2526
    %2543 = vmatprep.subr.mxu0 0.0
    %2544 = vmatpush1.msra.mxu0 0.0
    %2545 = vmatprep.subr.mxu0 0.0
    %2546 = vmatpush1.msra.mxu0 0.0
    %2547 = vmatprep.subr.mxu0 0.0
    %2548 = vmatpush1.msra.mxu0 0.0
    %2549 = vmatprep.subr.mxu0 0.0
    %2550 = vmatpush1.msra.mxu0 0.0
    %2551 = vmatprep.subr.mxu0 0.0
    %2552 = vmatpush1.msra.mxu0 0.0
    %2553 = vmatprep.subr.mxu0 0.0
    %2554 = vmatpush1.msra.mxu0 0.0
    %2555 = vmatprep.subr.mxu0 0.0
    %2556 = vmatpush1.msra.mxu0 0.0
    %2557 = vmatprep.subr.mxu0 0.0
    %2558 = vmatpush1.msra.mxu0 0.0
    %2559 = vmatprep.subr.mxu0 0.0
    %2560 = vmatpush1.msra.mxu0 0.0
    %2561 = vmatprep.subr.mxu0 0.0
    %2562 = vmatpush1.msra.mxu0 0.0
    %2563 = vmatprep.subr.mxu0 0.0
    %2564 = vmatpush1.msra.mxu0 0.0
    %2565 = vmatprep.subr.mxu0 0.0
    %2566 = vmatpush1.msra.mxu0 0.0
    %2567 = vmatprep.subr.mxu0 0.0
    %2568 = vmatpush1.msra.mxu0 0.0
    %2569 = vmatprep.subr.mxu0 0.0
    %2570 = vmatpush1.msra.mxu0 0.0
    %2571 = vmatprep.subr.mxu0 0.0
    %2572 = vmatpush1.msra.mxu0 0.0
    %2573 = vmatprep.subr.mxu0 0.0
    %2574 = vmatpush1.msra.mxu0 0.0
    %2575 = vmatprep.subr.mxu0 0.0
    %2576 = vmatpush1.msra.mxu0 0.0
    %2577 = vmatprep.subr.mxu0 0.0
    %2578 = vmatpush1.msra.mxu0 0.0
    %2579 = vmatprep.subr.mxu0 0.0
    %2580 = vmatpush1.msra.mxu0 0.0
    %2581 = vmatprep.subr.mxu0 0.0
    %2582 = vmatpush1.msra.mxu0 0.0
    %2583 = vmatprep.subr.mxu0 0.0
    %2584 = vmatpush1.msra.mxu0 0.0
    %2585 = vmatprep.subr.mxu0 0.0
    %2586 = vmatpush1.msra.mxu0 0.0
    %2587 = vmatprep.subr.mxu0 0.0
    %2588 = vmatpush1.msra.mxu0 0.0
    %2589 = vmatprep.subr.mxu0 0.0
    %2590 = vmatpush1.msra.mxu0 0.0
    %2591 = vmatprep.subr.mxu0 0.0
    %2592 = vmatpush1.msra.mxu0 0.0
    %2593 = vmatprep.subr.mxu0 0.0
    %2594 = vmatpush1.msra.mxu0 0.0
    %2595 = vmatprep.subr.mxu0 0.0
    %2596 = vmatpush1.msra.mxu0 0.0
    %2597 = vmatprep.subr.mxu0 0.0
    %2598 = vmatpush1.msra.mxu0 0.0
    %2599 = vmatprep.mubr.f32.mxu0 0.0
    %2600 = vmatmul.mubr.f32.gmra.mrb[0].mxu0 %v2440
    %v2601 = vpop.f32.mrb[0].mxu0
    %v2602 = vadd.f32 %v2533, %v2601
    %v2603 = vpop.f32.mrb[0].mxu0
    %2604 = vmatprep.mubr.f32.mxu0 0.0
    %2605 = vmatmul.mubr.f32.gmra.mrb[0].mxu0 %v2443
    %v2606 = vpop.f32.mrb[0].mxu0
    %v2607 = vadd.f32 %v2533, %v2606
    %v2608 = vpop.f32.mrb[0].mxu0
    %2609 = vdwg.mxu0
    %s2610 = scalar_lea.vmem %s7, 32
    %v2611 = vld [vmem:[%s2610] sm:$0xff]
    %v2612 = vld [vmem:[%s2610 + $0x8] sm:$0xff]
    %v2613 = vld [vmem:[%s2610 + $0x10] sm:$0xff]
    %v2614 = vld [vmem:[%s2610 + $0x18] sm:$0xff]
    %s2615 = scalar_lea.vmem %s8, 1
    %v2616 = vld [vmem:[%s2615] sm:$0x1]
    %v2618 = vlaneseq
    %v2619 = vshrl.u32 %v2618, 7
    %v2620 = vsub.s32 0, %v2619
    %v2621 = vrot.slane %v2616, %v2620
    %2623 = vmatprep.subr.mxu0 0.0
    %2624 = vmatpush1.msra.mxu0 %v2611
    %2625 = vmatprep.subr.mxu0 0.0
    %2626 = vmatpush1.msra.mxu0 %v2612
    %2627 = vmatprep.subr.mxu0 0.0
    %2628 = vmatpush1.msra.mxu0 %v2613
    %2629 = vmatprep.subr.mxu0 0.0
    %2630 = vmatpush1.msra.mxu0 %v2614
    %2631 = vmatprep.subr.mxu0 0.0
    %2632 = vmatpush1.msra.mxu0 0.0
    %2633 = vmatprep.subr.mxu0 0.0
    %2634 = vmatpush1.msra.mxu0 0.0
    %2635 = vmatprep.subr.mxu0 0.0
    %2636 = vmatpush1.msra.mxu0 0.0
    %2637 = vmatprep.subr.mxu0 0.0
    %2638 = vmatpush1.msra.mxu0 0.0
    %2639 = vmatprep.subr.mxu0 0.0
    %2640 = vmatpush1.msra.mxu0 0.0
    %2641 = vmatprep.subr.mxu0 0.0
    %2642 = vmatpush1.msra.mxu0 0.0
    %2643 = vmatprep.subr.mxu0 0.0
    %2644 = vmatpush1.msra.mxu0 0.0
    %2645 = vmatprep.subr.mxu0 0.0
    %2646 = vmatpush1.msra.mxu0 0.0
    %2647 = vmatprep.subr.mxu0 0.0
    %2648 = vmatpush1.msra.mxu0 0.0
    %2649 = vmatprep.subr.mxu0 0.0
    %2650 = vmatpush1.msra.mxu0 0.0
    %2651 = vmatprep.subr.mxu0 0.0
    %2652 = vmatpush1.msra.mxu0 0.0
    %2653 = vmatprep.subr.mxu0 0.0
    %2654 = vmatpush1.msra.mxu0 0.0
    %2655 = vmatprep.subr.mxu0 0.0
    %2656 = vmatpush1.msra.mxu0 0.0
    %2657 = vmatprep.subr.mxu0 0.0
    %2658 = vmatpush1.msra.mxu0 0.0
    %2659 = vmatprep.subr.mxu0 0.0
    %2660 = vmatpush1.msra.mxu0 0.0
    %2661 = vmatprep.subr.mxu0 0.0
    %2662 = vmatpush1.msra.mxu0 0.0
    %2663 = vmatprep.subr.mxu0 0.0
    %2664 = vmatpush1.msra.mxu0 0.0
    %2665 = vmatprep.subr.mxu0 0.0
    %2666 = vmatpush1.msra.mxu0 0.0
    %2667 = vmatprep.subr.mxu0 0.0
    %2668 = vmatpush1.msra.mxu0 0.0
    %2669 = vmatprep.subr.mxu0 0.0
    %2670 = vmatpush1.msra.mxu0 0.0
    %2671 = vmatprep.subr.mxu0 0.0
    %2672 = vmatpush1.msra.mxu0 0.0
    %2673 = vmatprep.subr.mxu0 0.0
    %2674 = vmatpush1.msra.mxu0 0.0
    %2675 = vmatprep.subr.mxu0 0.0
    %2676 = vmatpush1.msra.mxu0 0.0
    %2677 = vmatprep.subr.mxu0 0.0
    %2678 = vmatpush1.msra.mxu0 0.0
    %2679 = vmatprep.subr.mxu0 0.0
    %2680 = vmatpush1.msra.mxu0 0.0
    %2681 = vmatprep.subr.mxu0 0.0
    %2682 = vmatpush1.msra.mxu0 0.0
    %2683 = vmatprep.subr.mxu0 0.0
    %2684 = vmatpush1.msra.mxu0 0.0
    %2685 = vmatprep.subr.mxu0 0.0
    %2686 = vmatpush1.msra.mxu0 0.0
    %2687 = vmatprep.mubr.f32.mxu0 0.0
    %2688 = vmatmul.mubr.f32.gmra.mrb[0].mxu0 %v2440
    %v2689 = vpop.f32.mrb[0].mxu0
    %v2690 = vadd.f32 %v2621, %v2689
    %v2691 = vpop.f32.mrb[0].mxu0
    %2692 = vmatprep.mubr.f32.mxu0 0.0
    %2693 = vmatmul.mubr.f32.gmra.mrb[0].mxu0 %v2443
    %v2694 = vpop.f32.mrb[0].mxu0
    %v2695 = vadd.f32 %v2621, %v2694
    %v2696 = vpop.f32.mrb[0].mxu0
    %2697 = vdwg.mxu0
    %v2699 = vsel %vm699, %v2520, 0
    %v2702 = vsel %vm699, %v2602, 0
    %2704 = vmatprep.subr.mxu0 0.0
    %2705 = vmatpush1.xpose.msra.mxu0 %v2702
    %2706 = vmatprep.subr.mxu0 0.0
    %2707 = vmatpush1.xpose.msra.mxu0 0.0
    %2708 = vmatprep.subr.mxu0 0.0
    %2709 = vmatpush1.xpose.msra.mxu0 0.0
    %2710 = vmatprep.subr.mxu0 0.0
    %2711 = vmatpush1.xpose.msra.mxu0 0.0
    %2712 = vmatprep.subr.mxu0 0.0
    %2713 = vmatpush1.xpose.msra.mxu0 0.0
    %2714 = vmatprep.subr.mxu0 0.0
    %2715 = vmatpush1.xpose.msra.mxu0 0.0
    %2716 = vmatprep.subr.mxu0 0.0
    %2717 = vmatpush1.xpose.msra.mxu0 0.0
    %2718 = vmatprep.subr.mxu0 0.0
    %2719 = vmatpush1.xpose.msra.mxu0 0.0
    %2720 = vmatprep.subr.mxu0 0.0
    %2721 = vmatpush1.xpose.msra.mxu0 0.0
    %2722 = vmatprep.subr.mxu0 0.0
    %2723 = vmatpush1.xpose.msra.mxu0 0.0
    %2724 = vmatprep.subr.mxu0 0.0
    %2725 = vmatpush1.xpose.msra.mxu0 0.0
    %2726 = vmatprep.subr.mxu0 0.0
    %2727 = vmatpush1.xpose.msra.mxu0 0.0
    %2728 = vmatprep.subr.mxu0 0.0
    %2729 = vmatpush1.xpose.msra.mxu0 0.0
    %2730 = vmatprep.subr.mxu0 0.0
    %2731 = vmatpush1.xpose.msra.mxu0 0.0
    %2732 = vmatprep.subr.mxu0 0.0
    %2733 = vmatpush1.xpose.msra.mxu0 0.0
    %2734 = vmatprep.subr.mxu0 0.0
    %2735 = vmatpush1.xpose.msra.mxu0 0.0
    %2736 = vmatprep.subr.mxu0 0.0
    %2737 = vmatpush1.xpose.msra.mxu0 0.0
    %2738 = vmatprep.subr.mxu0 0.0
    %2739 = vmatpush1.xpose.msra.mxu0 0.0
    %2740 = vmatprep.subr.mxu0 0.0
    %2741 = vmatpush1.xpose.msra.mxu0 0.0
    %2742 = vmatprep.subr.mxu0 0.0
    %2743 = vmatpush1.xpose.msra.mxu0 0.0
    %2744 = vmatprep.subr.mxu0 0.0
    %2745 = vmatpush1.xpose.msra.mxu0 0.0
    %2746 = vmatprep.subr.mxu0 0.0
    %2747 = vmatpush1.xpose.msra.mxu0 0.0
    %2748 = vmatprep.subr.mxu0 0.0
    %2749 = vmatpush1.xpose.msra.mxu0 0.0
    %2750 = vmatprep.subr.mxu0 0.0
    %2751 = vmatpush1.xpose.msra.mxu0 0.0
    %2752 = vmatprep.subr.mxu0 0.0
    %2753 = vmatpush1.xpose.msra.mxu0 0.0
    %2754 = vmatprep.subr.mxu0 0.0
    %2755 = vmatpush1.xpose.msra.mxu0 0.0
    %2756 = vmatprep.subr.mxu0 0.0
    %2757 = vmatpush1.xpose.msra.mxu0 0.0
    %2758 = vmatprep.subr.mxu0 0.0
    %2759 = vmatpush1.xpose.msra.mxu0 0.0
    %2760 = vmatprep.subr.mxu0 0.0
    %2761 = vmatpush1.xpose.msra.mxu0 0.0
    %2762 = vmatprep.subr.mxu0 0.0
    %2763 = vmatpush1.xpose.msra.mxu0 0.0
    %2764 = vmatprep.subr.mxu0 0.0
    %2765 = vmatpush1.xpose.msra.mxu0 0.0
    %2766 = vmatprep.subr.mxu0 0.0
    %2767 = vmatpush1.xpose.msra.mxu0 0.0
    %2768 = vmatprep.mubr.f32.mxu0 0.0
    %2769 = vmatmul.mubr.f32.gmra.mrb[0].mxu0 %v2699
    %v2770 = vpop.f32.mrb[0].mxu0
    %v2771 = vadd.f32 0.0, %v2770
    %v2772 = vpop.f32.mrb[0].mxu0
    %2773 = vdwg.mxu0
    %v2775 = vsel %vm699, %v2521, 0
    %v2778 = vsel %vm699, %v2607, 0
    %2780 = vmatprep.subr.mxu0 0.0
    %2781 = vmatpush1.xpose.msra.mxu0 %v2778
    %2782 = vmatprep.subr.mxu0 0.0
    %2783 = vmatpush1.xpose.msra.mxu0 0.0
    %2784 = vmatprep.subr.mxu0 0.0
    %2785 = vmatpush1.xpose.msra.mxu0 0.0
    %2786 = vmatprep.subr.mxu0 0.0
    %2787 = vmatpush1.xpose.msra.mxu0 0.0
    %2788 = vmatprep.subr.mxu0 0.0
    %2789 = vmatpush1.xpose.msra.mxu0 0.0
    %2790 = vmatprep.subr.mxu0 0.0
    %2791 = vmatpush1.xpose.msra.mxu0 0.0
    %2792 = vmatprep.subr.mxu0 0.0
    %2793 = vmatpush1.xpose.msra.mxu0 0.0
    %2794 = vmatprep.subr.mxu0 0.0
    %2795 = vmatpush1.xpose.msra.mxu0 0.0
    %2796 = vmatprep.subr.mxu0 0.0
    %2797 = vmatpush1.xpose.msra.mxu0 0.0
    %2798 = vmatprep.subr.mxu0 0.0
    %2799 = vmatpush1.xpose.msra.mxu0 0.0
    %2800 = vmatprep.subr.mxu0 0.0
    %2801 = vmatpush1.xpose.msra.mxu0 0.0
    %2802 = vmatprep.subr.mxu0 0.0
    %2803 = vmatpush1.xpose.msra.mxu0 0.0
    %2804 = vmatprep.subr.mxu0 0.0
    %2805 = vmatpush1.xpose.msra.mxu0 0.0
    %2806 = vmatprep.subr.mxu0 0.0
    %2807 = vmatpush1.xpose.msra.mxu0 0.0
    %2808 = vmatprep.subr.mxu0 0.0
    %2809 = vmatpush1.xpose.msra.mxu0 0.0
    %2810 = vmatprep.subr.mxu0 0.0
    %2811 = vmatpush1.xpose.msra.mxu0 0.0
    %2812 = vmatprep.subr.mxu0 0.0
    %2813 = vmatpush1.xpose.msra.mxu0 0.0
    %2814 = vmatprep.subr.mxu0 0.0
    %2815 = vmatpush1.xpose.msra.mxu0 0.0
    %2816 = vmatprep.subr.mxu0 0.0
    %2817 = vmatpush1.xpose.msra.mxu0 0.0
    %2818 = vmatprep.subr.mxu0 0.0
    %2819 = vmatpush1.xpose.msra.mxu0 0.0
    %2820 = vmatprep.subr.mxu0 0.0
    %2821 = vmatpush1.xpose.msra.mxu0 0.0
    %2822 = vmatprep.subr.mxu0 0.0
    %2823 = vmatpush1.xpose.msra.mxu0 0.0
    %2824 = vmatprep.subr.mxu0 0.0
    %2825 = vmatpush1.xpose.msra.mxu0 0.0
    %2826 = vmatprep.subr.mxu0 0.0
    %2827 = vmatpush1.xpose.msra.mxu0 0.0
    %2828 = vmatprep.subr.mxu0 0.0
    %2829 = vmatpush1.xpose.msra.mxu0 0.0
    %2830 = vmatprep.subr.mxu0 0.0
    %2831 = vmatpush1.xpose.msra.mxu0 0.0
    %2832 = vmatprep.subr.mxu0 0.0
    %2833 = vmatpush1.xpose.msra.mxu0 0.0
    %2834 = vmatprep.subr.mxu0 0.0
    %2835 = vmatpush1.xpose.msra.mxu0 0.0
    %2836 = vmatprep.subr.mxu0 0.0
    %2837 = vmatpush1.xpose.msra.mxu0 0.0
    %2838 = vmatprep.subr.mxu0 0.0
    %2839 = vmatpush1.xpose.msra.mxu0 0.0
    %2840 = vmatprep.subr.mxu0 0.0
    %2841 = vmatpush1.xpose.msra.mxu0 0.0
    %2842 = vmatprep.subr.mxu0 0.0
    %2843 = vmatpush1.xpose.msra.mxu0 0.0
    %2844 = vmatprep.mubr.f32.mxu0 0.0
    %2845 = vmatmul.mubr.f32.gmra.mrb[0].mxu0 %v2775
    %v2846 = vpop.f32.mrb[0].mxu0
    %v2847 = vadd.f32 0.0, %v2846
    %v2848 = vpop.f32.mrb[0].mxu0
    %2849 = vdwg.mxu0
    %v2850 = vsel %vm699, %v2771, -inf
    %2851 = vmax.xlane.f32.xlu0 %v2850
    %v2852 = vpop.xlane.xlu0 %2851
    %v2853 = vsel %vm699, %v2847, -inf
    %2854 = vmax.xlane.f32.xlu0 %v2853
    %v2855 = vpop.xlane.xlu0 %2854
    %v2856 = vsub.f32 %v2771, %v2852
    %v2857 = vsub.f32 %v2847, %v2855
    %v2858 = vmul.f32 %v2856, 1.442695
    %v2859 = vpow.pop %v2858
    %v2860 = vmul.f32 %v2857, 1.442695
    %v2861 = vpow.pop %v2860
    %v2862 = vsel %vm699, %v2859, 0.0
    %2863 = vadd.xlane.f32.xlu0 %v2862
    %v2864 = vpop.xlane.xlu0 %2863
    %v2865 = vsel %vm699, %v2861, 0.0
    %2866 = vadd.xlane.f32.xlu0 %v2865
    %v2867 = vpop.xlane.xlu0 %2866
    %v2868 = vrcp.pop %v2864
    %v2869 = vrcp.pop %v2867
    %v2870 = vmul.f32 %v2859, %v2868
    %v2871 = vmul.f32 %v2861, %v2869
    %v2873 = vsel %vm699, %v2870, 0
    %2875 = vmatprep.subr.mxu0 0.0
    %2876 = vmatpush1.msra.mxu0 %v2690
    %2877 = vmatprep.subr.mxu0 0.0
    %2878 = vmatpush1.msra.mxu0 0.0
    %2879 = vmatprep.subr.mxu0 0.0
    %2880 = vmatpush1.msra.mxu0 0.0
    %2881 = vmatprep.subr.mxu0 0.0
    %2882 = vmatpush1.msra.mxu0 0.0
    %2883 = vmatprep.subr.mxu0 0.0
    %2884 = vmatpush1.msra.mxu0 0.0
    %2885 = vmatprep.subr.mxu0 0.0
    %2886 = vmatpush1.msra.mxu0 0.0
    %2887 = vmatprep.subr.mxu0 0.0
    %2888 = vmatpush1.msra.mxu0 0.0
    %2889 = vmatprep.subr.mxu0 0.0
    %2890 = vmatpush1.msra.mxu0 0.0
    %2891 = vmatprep.subr.mxu0 0.0
    %2892 = vmatpush1.msra.mxu0 0.0
    %2893 = vmatprep.subr.mxu0 0.0
    %2894 = vmatpush1.msra.mxu0 0.0
    %2895 = vmatprep.subr.mxu0 0.0
    %2896 = vmatpush1.msra.mxu0 0.0
    %2897 = vmatprep.subr.mxu0 0.0
    %2898 = vmatpush1.msra.mxu0 0.0
    %2899 = vmatprep.subr.mxu0 0.0
    %2900 = vmatpush1.msra.mxu0 0.0
    %2901 = vmatprep.subr.mxu0 0.0
    %2902 = vmatpush1.msra.mxu0 0.0
    %2903 = vmatprep.subr.mxu0 0.0
    %2904 = vmatpush1.msra.mxu0 0.0
    %2905 = vmatprep.subr.mxu0 0.0
    %2906 = vmatpush1.msra.mxu0 0.0
    %2907 = vmatprep.subr.mxu0 0.0
    %2908 = vmatpush1.msra.mxu0 0.0
    %2909 = vmatprep.subr.mxu0 0.0
    %2910 = vmatpush1.msra.mxu0 0.0
    %2911 = vmatprep.subr.mxu0 0.0
    %2912 = vmatpush1.msra.mxu0 0.0
    %2913 = vmatprep.subr.mxu0 0.0
    %2914 = vmatpush1.msra.mxu0 0.0
    %2915 = vmatprep.subr.mxu0 0.0
    %2916 = vmatpush1.msra.mxu0 0.0
    %2917 = vmatprep.subr.mxu0 0.0
    %2918 = vmatpush1.msra.mxu0 0.0
    %2919 = vmatprep.subr.mxu0 0.0
    %2920 = vmatpush1.msra.mxu0 0.0
    %2921 = vmatprep.subr.mxu0 0.0
    %2922 = vmatpush1.msra.mxu0 0.0
    %2923 = vmatprep.subr.mxu0 0.0
    %2924 = vmatpush1.msra.mxu0 0.0
    %2925 = vmatprep.subr.mxu0 0.0
    %2926 = vmatpush1.msra.mxu0 0.0
    %2927 = vmatprep.subr.mxu0 0.0
    %2928 = vmatpush1.msra.mxu0 0.0
    %2929 = vmatprep.subr.mxu0 0.0
    %2930 = vmatpush1.msra.mxu0 0.0
    %2931 = vmatprep.subr.mxu0 0.0
    %2932 = vmatpush1.msra.mxu0 0.0
    %2933 = vmatprep.subr.mxu0 0.0
    %2934 = vmatpush1.msra.mxu0 0.0
    %2935 = vmatprep.subr.mxu0 0.0
    %2936 = vmatpush1.msra.mxu0 0.0
    %2937 = vmatprep.subr.mxu0 0.0
    %2938 = vmatpush1.msra.mxu0 0.0
    %2939 = vmatprep.mubr.f32.mxu0 0.0
    %2940 = vmatmul.mubr.f32.gmra.mrb[0].mxu0 %v2873
    %v2941 = vpop.f32.mrb[0].mxu0
    %v2942 = vadd.f32 0.0, %v2941
    %v2943 = vpop.f32.mrb[0].mxu0
    %2944 = vdwg.mxu0
    %v2946 = vsel %vm699, %v2871, 0
    %2948 = vmatprep.subr.mxu0 0.0
    %2949 = vmatpush1.msra.mxu0 %v2695
    %2950 = vmatprep.subr.mxu0 0.0
    %2951 = vmatpush1.msra.mxu0 0.0
    %2952 = vmatprep.subr.mxu0 0.0
    %2953 = vmatpush1.msra.mxu0 0.0
    %2954 = vmatprep.subr.mxu0 0.0
    %2955 = vmatpush1.msra.mxu0 0.0
    %2956 = vmatprep.subr.mxu0 0.0
    %2957 = vmatpush1.msra.mxu0 0.0
    %2958 = vmatprep.subr.mxu0 0.0
    %2959 = vmatpush1.msra.mxu0 0.0
    %2960 = vmatprep.subr.mxu0 0.0
    %2961 = vmatpush1.msra.mxu0 0.0
    %2962 = vmatprep.subr.mxu0 0.0
    %2963 = vmatpush1.msra.mxu0 0.0
    %2964 = vmatprep.subr.mxu0 0.0
    %2965 = vmatpush1.msra.mxu0 0.0
    %2966 = vmatprep.subr.mxu0 0.0
    %2967 = vmatpush1.msra.mxu0 0.0
    %2968 = vmatprep.subr.mxu0 0.0
    %2969 = vmatpush1.msra.mxu0 0.0
    %2970 = vmatprep.subr.mxu0 0.0
    %2971 = vmatpush1.msra.mxu0 0.0
    %2972 = vmatprep.subr.mxu0 0.0
    %2973 = vmatpush1.msra.mxu0 0.0
    %2974 = vmatprep.subr.mxu0 0.0
    %2975 = vmatpush1.msra.mxu0 0.0
    %2976 = vmatprep.subr.mxu0 0.0
    %2977 = vmatpush1.msra.mxu0 0.0
    %2978 = vmatprep.subr.mxu0 0.0
    %2979 = vmatpush1.msra.mxu0 0.0
    %2980 = vmatprep.subr.mxu0 0.0
    %2981 = vmatpush1.msra.mxu0 0.0
    %2982 = vmatprep.subr.mxu0 0.0
    %2983 = vmatpush1.msra.mxu0 0.0
    %2984 = vmatprep.subr.mxu0 0.0
    %2985 = vmatpush1.msra.mxu0 0.0
    %2986 = vmatprep.subr.mxu0 0.0
    %2987 = vmatpush1.msra.mxu0 0.0
    %2988 = vmatprep.subr.mxu0 0.0
    %2989 = vmatpush1.msra.mxu0 0.0
    %2990 = vmatprep.subr.mxu0 0.0
    %2991 = vmatpush1.msra.mxu0 0.0
    %2992 = vmatprep.subr.mxu0 0.0
    %2993 = vmatpush1.msra.mxu0 0.0
    %2994 = vmatprep.subr.mxu0 0.0
    %2995 = vmatpush1.msra.mxu0 0.0
    %2996 = vmatprep.subr.mxu0 0.0
    %2997 = vmatpush1.msra.mxu0 0.0
    %2998 = vmatprep.subr.mxu0 0.0
    %2999 = vmatpush1.msra.mxu0 0.0
    %3000 = vmatprep.subr.mxu0 0.0
    %3001 = vmatpush1.msra.mxu0 0.0
    %3002 = vmatprep.subr.mxu0 0.0
    %3003 = vmatpush1.msra.mxu0 0.0
    %3004 = vmatprep.subr.mxu0 0.0
    %3005 = vmatpush1.msra.mxu0 0.0
    %3006 = vmatprep.subr.mxu0 0.0
    %3007 = vmatpush1.msra.mxu0 0.0
    %3008 = vmatprep.subr.mxu0 0.0
    %3009 = vmatpush1.msra.mxu0 0.0
    %3010 = vmatprep.subr.mxu0 0.0
    %3011 = vmatpush1.msra.mxu0 0.0
    %3012 = vmatprep.mubr.f32.mxu0 0.0
    %3013 = vmatmul.mubr.f32.gmra.mrb[0].mxu0 %v2946
    %v3014 = vpop.f32.mrb[0].mxu0
    %v3015 = vadd.f32 0.0, %v3014
    %v3016 = vpop.f32.mrb[0].mxu0
    %3017 = vdwg.mxu0
    %3018 = vrot.lane.b32.xlu0 %v2520, 120
    %v3019 = vpop.permute.xlu0 %3018
    %3020 = vrot.lane.b32.xlu0 %v2602, 120
    %v3021 = vpop.permute.xlu0 %3020
    %v3022 = vsel %vm699, %v3019, 0
    %v3024 = vsel %vm699, %v3021, 0
    %3026 = vmatprep.subr.mxu0 0.0
    %3027 = vmatpush1.xpose.msra.mxu0 %v3024
    %3028 = vmatprep.subr.mxu0 0.0
    %3029 = vmatpush1.xpose.msra.mxu0 0.0
    %3030 = vmatprep.subr.mxu0 0.0
    %3031 = vmatpush1.xpose.msra.mxu0 0.0
    %3032 = vmatprep.subr.mxu0 0.0
    %3033 = vmatpush1.xpose.msra.mxu0 0.0
    %3034 = vmatprep.subr.mxu0 0.0
    %3035 = vmatpush1.xpose.msra.mxu0 0.0
    %3036 = vmatprep.subr.mxu0 0.0
    %3037 = vmatpush1.xpose.msra.mxu0 0.0
    %3038 = vmatprep.subr.mxu0 0.0
    %3039 = vmatpush1.xpose.msra.mxu0 0.0
    %3040 = vmatprep.subr.mxu0 0.0
    %3041 = vmatpush1.xpose.msra.mxu0 0.0
    %3042 = vmatprep.subr.mxu0 0.0
    %3043 = vmatpush1.xpose.msra.mxu0 0.0
    %3044 = vmatprep.subr.mxu0 0.0
    %3045 = vmatpush1.xpose.msra.mxu0 0.0
    %3046 = vmatprep.subr.mxu0 0.0
    %3047 = vmatpush1.xpose.msra.mxu0 0.0
    %3048 = vmatprep.subr.mxu0 0.0
    %3049 = vmatpush1.xpose.msra.mxu0 0.0
    %3050 = vmatprep.subr.mxu0 0.0
    %3051 = vmatpush1.xpose.msra.mxu0 0.0
    %3052 = vmatprep.subr.mxu0 0.0
    %3053 = vmatpush1.xpose.msra.mxu0 0.0
    %3054 = vmatprep.subr.mxu0 0.0
    %3055 = vmatpush1.xpose.msra.mxu0 0.0
    %3056 = vmatprep.subr.mxu0 0.0
    %3057 = vmatpush1.xpose.msra.mxu0 0.0
    %3058 = vmatprep.subr.mxu0 0.0
    %3059 = vmatpush1.xpose.msra.mxu0 0.0
    %3060 = vmatprep.subr.mxu0 0.0
    %3061 = vmatpush1.xpose.msra.mxu0 0.0
    %3062 = vmatprep.subr.mxu0 0.0
    %3063 = vmatpush1.xpose.msra.mxu0 0.0
    %3064 = vmatprep.subr.mxu0 0.0
    %3065 = vmatpush1.xpose.msra.mxu0 0.0
    %3066 = vmatprep.subr.mxu0 0.0
    %3067 = vmatpush1.xpose.msra.mxu0 0.0
    %3068 = vmatprep.subr.mxu0 0.0
    %3069 = vmatpush1.xpose.msra.mxu0 0.0
    %3070 = vmatprep.subr.mxu0 0.0
    %3071 = vmatpush1.xpose.msra.mxu0 0.0
    %3072 = vmatprep.subr.mxu0 0.0
    %3073 = vmatpush1.xpose.msra.mxu0 0.0
    %3074 = vmatprep.subr.mxu0 0.0
    %3075 = vmatpush1.xpose.msra.mxu0 0.0
    %3076 = vmatprep.subr.mxu0 0.0
    %3077 = vmatpush1.xpose.msra.mxu0 0.0
    %3078 = vmatprep.subr.mxu0 0.0
    %3079 = vmatpush1.xpose.msra.mxu0 0.0
    %3080 = vmatprep.subr.mxu0 0.0
    %3081 = vmatpush1.xpose.msra.mxu0 0.0
    %3082 = vmatprep.subr.mxu0 0.0
    %3083 = vmatpush1.xpose.msra.mxu0 0.0
    %3084 = vmatprep.subr.mxu0 0.0
    %3085 = vmatpush1.xpose.msra.mxu0 0.0
    %3086 = vmatprep.subr.mxu0 0.0
    %3087 = vmatpush1.xpose.msra.mxu0 0.0
    %3088 = vmatprep.subr.mxu0 0.0
    %3089 = vmatpush1.xpose.msra.mxu0 0.0
    %3090 = vmatprep.mubr.f32.mxu0 0.0
    %3091 = vmatmul.mubr.f32.gmra.mrb[0].mxu0 %v3022
    %v3092 = vpop.f32.mrb[0].mxu0
    %v3093 = vadd.f32 0.0, %v3092
    %v3094 = vpop.f32.mrb[0].mxu0
    %3095 = vdwg.mxu0
    %3096 = vrot.lane.b32.xlu0 %v2521, 120
    %v3097 = vpop.permute.xlu0 %3096
    %3098 = vrot.lane.b32.xlu0 %v2607, 120
    %v3099 = vpop.permute.xlu0 %3098
    %v3100 = vsel %vm699, %v3097, 0
    %v3102 = vsel %vm699, %v3099, 0
    %3104 = vmatprep.subr.mxu0 0.0
    %3105 = vmatpush1.xpose.msra.mxu0 %v3102
    %3106 = vmatprep.subr.mxu0 0.0
    %3107 = vmatpush1.xpose.msra.mxu0 0.0
    %3108 = vmatprep.subr.mxu0 0.0
    %3109 = vmatpush1.xpose.msra.mxu0 0.0
    %3110 = vmatprep.subr.mxu0 0.0
    %3111 = vmatpush1.xpose.msra.mxu0 0.0
    %3112 = vmatprep.subr.mxu0 0.0
    %3113 = vmatpush1.xpose.msra.mxu0 0.0
    %3114 = vmatprep.subr.mxu0 0.0
    %3115 = vmatpush1.xpose.msra.mxu0 0.0
    %3116 = vmatprep.subr.mxu0 0.0
    %3117 = vmatpush1.xpose.msra.mxu0 0.0
    %3118 = vmatprep.subr.mxu0 0.0
    %3119 = vmatpush1.xpose.msra.mxu0 0.0
    %3120 = vmatprep.subr.mxu0 0.0
    %3121 = vmatpush1.xpose.msra.mxu0 0.0
    %3122 = vmatprep.subr.mxu0 0.0
    %3123 = vmatpush1.xpose.msra.mxu0 0.0
    %3124 = vmatprep.subr.mxu0 0.0
    %3125 = vmatpush1.xpose.msra.mxu0 0.0
    %3126 = vmatprep.subr.mxu0 0.0
    %3127 = vmatpush1.xpose.msra.mxu0 0.0
    %3128 = vmatprep.subr.mxu0 0.0
    %3129 = vmatpush1.xpose.msra.mxu0 0.0
    %3130 = vmatprep.subr.mxu0 0.0
    %3131 = vmatpush1.xpose.msra.mxu0 0.0
    %3132 = vmatprep.subr.mxu0 0.0
    %3133 = vmatpush1.xpose.msra.mxu0 0.0
    %3134 = vmatprep.subr.mxu0 0.0
    %3135 = vmatpush1.xpose.msra.mxu0 0.0
    %3136 = vmatprep.subr.mxu0 0.0
    %3137 = vmatpush1.xpose.msra.mxu0 0.0
    %3138 = vmatprep.subr.mxu0 0.0
    %3139 = vmatpush1.xpose.msra.mxu0 0.0
    %3140 = vmatprep.subr.mxu0 0.0
    %3141 = vmatpush1.xpose.msra.mxu0 0.0
    %3142 = vmatprep.subr.mxu0 0.0
    %3143 = vmatpush1.xpose.msra.mxu0 0.0
    %3144 = vmatprep.subr.mxu0 0.0
    %3145 = vmatpush1.xpose.msra.mxu0 0.0
    %3146 = vmatprep.subr.mxu0 0.0
    %3147 = vmatpush1.xpose.msra.mxu0 0.0
    %3148 = vmatprep.subr.mxu0 0.0
    %3149 = vmatpush1.xpose.msra.mxu0 0.0
    %3150 = vmatprep.subr.mxu0 0.0
    %3151 = vmatpush1.xpose.msra.mxu0 0.0
    %3152 = vmatprep.subr.mxu0 0.0
    %3153 = vmatpush1.xpose.msra.mxu0 0.0
    %3154 = vmatprep.subr.mxu0 0.0
    %3155 = vmatpush1.xpose.msra.mxu0 0.0
    %3156 = vmatprep.subr.mxu0 0.0
    %3157 = vmatpush1.xpose.msra.mxu0 0.0
    %3158 = vmatprep.subr.mxu0 0.0
    %3159 = vmatpush1.xpose.msra.mxu0 0.0
    %3160 = vmatprep.subr.mxu0 0.0
    %3161 = vmatpush1.xpose.msra.mxu0 0.0
    %3162 = vmatprep.subr.mxu0 0.0
    %3163 = vmatpush1.xpose.msra.mxu0 0.0
    %3164 = vmatprep.subr.mxu0 0.0
    %3165 = vmatpush1.xpose.msra.mxu0 0.0
    %3166 = vmatprep.subr.mxu0 0.0
    %3167 = vmatpush1.xpose.msra.mxu0 0.0
    %3168 = vmatprep.mubr.f32.mxu0 0.0
    %3169 = vmatmul.mubr.f32.gmra.mrb[0].mxu0 %v3100
    %v3170 = vpop.f32.mrb[0].mxu0
    %v3171 = vadd.f32 0.0, %v3170
    %v3172 = vpop.f32.mrb[0].mxu0
    %3173 = vdwg.mxu0
    %v3174 = vsel %vm699, %v3093, -inf
    %3175 = vmax.xlane.f32.xlu0 %v3174
    %v3176 = vpop.xlane.xlu0 %3175
    %v3177 = vsel %vm699, %v3171, -inf
    %3178 = vmax.xlane.f32.xlu0 %v3177
    %v3179 = vpop.xlane.xlu0 %3178
    %v3180 = vsub.f32 %v3093, %v3176
    %v3181 = vsub.f32 %v3171, %v3179
    %v3182 = vmul.f32 %v3180, 1.442695
    %v3183 = vpow.pop %v3182
    %v3184 = vmul.f32 %v3181, 1.442695
    %v3185 = vpow.pop %v3184
    %v3186 = vsel %vm699, %v3183, 0.0
    %3187 = vadd.xlane.f32.xlu0 %v3186
    %v3188 = vpop.xlane.xlu0 %3187
    %v3189 = vsel %vm699, %v3185, 0.0
    %3190 = vadd.xlane.f32.xlu0 %v3189
    %v3191 = vpop.xlane.xlu0 %3190
    %v3192 = vrcp.pop %v3188
    %v3193 = vrcp.pop %v3191
    %v3194 = vmul.f32 %v3183, %v3192
    %v3195 = vmul.f32 %v3185, %v3193
    %3197 = vrot.lane.b32.xlu0 %v2690, 120
    %v3198 = vpop.permute.xlu0 %3197
    %v3201 = vsel %vm699, %v3194, 0
    %3203 = vmatprep.subr.mxu0 0.0
    %3204 = vmatpush1.msra.mxu0 %v3198
    %3205 = vmatprep.subr.mxu0 0.0
    %3206 = vmatpush1.msra.mxu0 0.0
    %3207 = vmatprep.subr.mxu0 0.0
    %3208 = vmatpush1.msra.mxu0 0.0
    %3209 = vmatprep.subr.mxu0 0.0
    %3210 = vmatpush1.msra.mxu0 0.0
    %3211 = vmatprep.subr.mxu0 0.0
    %3212 = vmatpush1.msra.mxu0 0.0
    %3213 = vmatprep.subr.mxu0 0.0
    %3214 = vmatpush1.msra.mxu0 0.0
    %3215 = vmatprep.subr.mxu0 0.0
    %3216 = vmatpush1.msra.mxu0 0.0
    %3217 = vmatprep.subr.mxu0 0.0
    %3218 = vmatpush1.msra.mxu0 0.0
    %3219 = vmatprep.subr.mxu0 0.0
    %3220 = vmatpush1.msra.mxu0 0.0
    %3221 = vmatprep.subr.mxu0 0.0
    %3222 = vmatpush1.msra.mxu0 0.0
    %3223 = vmatprep.subr.mxu0 0.0
    %3224 = vmatpush1.msra.mxu0 0.0
    %3225 = vmatprep.subr.mxu0 0.0
    %3226 = vmatpush1.msra.mxu0 0.0
    %3227 = vmatprep.subr.mxu0 0.0
    %3228 = vmatpush1.msra.mxu0 0.0
    %3229 = vmatprep.subr.mxu0 0.0
    %3230 = vmatpush1.msra.mxu0 0.0
    %3231 = vmatprep.subr.mxu0 0.0
    %3232 = vmatpush1.msra.mxu0 0.0
    %3233 = vmatprep.subr.mxu0 0.0
    %3234 = vmatpush1.msra.mxu0 0.0
    %3235 = vmatprep.subr.mxu0 0.0
    %3236 = vmatpush1.msra.mxu0 0.0
    %3237 = vmatprep.subr.mxu0 0.0
    %3238 = vmatpush1.msra.mxu0 0.0
    %3239 = vmatprep.subr.mxu0 0.0
    %3240 = vmatpush1.msra.mxu0 0.0
    %3241 = vmatprep.subr.mxu0 0.0
    %3242 = vmatpush1.msra.mxu0 0.0
    %3243 = vmatprep.subr.mxu0 0.0
    %3244 = vmatpush1.msra.mxu0 0.0
    %3245 = vmatprep.subr.mxu0 0.0
    %3246 = vmatpush1.msra.mxu0 0.0
    %3247 = vmatprep.subr.mxu0 0.0
    %3248 = vmatpush1.msra.mxu0 0.0
    %3249 = vmatprep.subr.mxu0 0.0
    %3250 = vmatpush1.msra.mxu0 0.0
    %3251 = vmatprep.subr.mxu0 0.0
    %3252 = vmatpush1.msra.mxu0 0.0
    %3253 = vmatprep.subr.mxu0 0.0
    %3254 = vmatpush1.msra.mxu0 0.0
    %3255 = vmatprep.subr.mxu0 0.0
    %3256 = vmatpush1.msra.mxu0 0.0
    %3257 = vmatprep.subr.mxu0 0.0
    %3258 = vmatpush1.msra.mxu0 0.0
    %3259 = vmatprep.subr.mxu0 0.0
    %3260 = vmatpush1.msra.mxu0 0.0
    %3261 = vmatprep.subr.mxu0 0.0
    %3262 = vmatpush1.msra.mxu0 0.0
    %3263 = vmatprep.subr.mxu0 0.0
    %3264 = vmatpush1.msra.mxu0 0.0
    %3265 = vmatprep.subr.mxu0 0.0
    %3266 = vmatpush1.msra.mxu0 0.0
    %3267 = vmatprep.mubr.f32.mxu0 0.0
    %3268 = vmatmul.mubr.f32.gmra.mrb[0].mxu0 %v3201
    %v3269 = vpop.f32.mrb[0].mxu0
    %v3270 = vadd.f32 0.0, %v3269
    %v3271 = vpop.f32.mrb[0].mxu0
    %3272 = vdwg.mxu0
    %3274 = vrot.lane.b32.xlu0 %v2695, 120
    %v3275 = vpop.permute.xlu0 %3274
    %v3278 = vsel %vm699, %v3195, 0
    %3280 = vmatprep.subr.mxu0 0.0
    %3281 = vmatpush1.msra.mxu0 %v3275
    %3282 = vmatprep.subr.mxu0 0.0
    %3283 = vmatpush1.msra.mxu0 0.0
    %3284 = vmatprep.subr.mxu0 0.0
    %3285 = vmatpush1.msra.mxu0 0.0
    %3286 = vmatprep.subr.mxu0 0.0
    %3287 = vmatpush1.msra.mxu0 0.0
    %3288 = vmatprep.subr.mxu0 0.0
    %3289 = vmatpush1.msra.mxu0 0.0
    %3290 = vmatprep.subr.mxu0 0.0
    %3291 = vmatpush1.msra.mxu0 0.0
    %3292 = vmatprep.subr.mxu0 0.0
    %3293 = vmatpush1.msra.mxu0 0.0
    %3294 = vmatprep.subr.mxu0 0.0
    %3295 = vmatpush1.msra.mxu0 0.0
    %3296 = vmatprep.subr.mxu0 0.0
    %3297 = vmatpush1.msra.mxu0 0.0
    %3298 = vmatprep.subr.mxu0 0.0
    %3299 = vmatpush1.msra.mxu0 0.0
    %3300 = vmatprep.subr.mxu0 0.0
    %3301 = vmatpush1.msra.mxu0 0.0
    %3302 = vmatprep.subr.mxu0 0.0
    %3303 = vmatpush1.msra.mxu0 0.0
    %3304 = vmatprep.subr.mxu0 0.0
    %3305 = vmatpush1.msra.mxu0 0.0
    %3306 = vmatprep.subr.mxu0 0.0
    %3307 = vmatpush1.msra.mxu0 0.0
    %3308 = vmatprep.subr.mxu0 0.0
    %3309 = vmatpush1.msra.mxu0 0.0
    %3310 = vmatprep.subr.mxu0 0.0
    %3311 = vmatpush1.msra.mxu0 0.0
    %3312 = vmatprep.subr.mxu0 0.0
    %3313 = vmatpush1.msra.mxu0 0.0
    %3314 = vmatprep.subr.mxu0 0.0
    %3315 = vmatpush1.msra.mxu0 0.0
    %3316 = vmatprep.subr.mxu0 0.0
    %3317 = vmatpush1.msra.mxu0 0.0
    %3318 = vmatprep.subr.mxu0 0.0
    %3319 = vmatpush1.msra.mxu0 0.0
    %3320 = vmatprep.subr.mxu0 0.0
    %3321 = vmatpush1.msra.mxu0 0.0
    %3322 = vmatprep.subr.mxu0 0.0
    %3323 = vmatpush1.msra.mxu0 0.0
    %3324 = vmatprep.subr.mxu0 0.0
    %3325 = vmatpush1.msra.mxu0 0.0
    %3326 = vmatprep.subr.mxu0 0.0
    %3327 = vmatpush1.msra.mxu0 0.0
    %3328 = vmatprep.subr.mxu0 0.0
    %3329 = vmatpush1.msra.mxu0 0.0
    %3330 = vmatprep.subr.mxu0 0.0
    %3331 = vmatpush1.msra.mxu0 0.0
    %3332 = vmatprep.subr.mxu0 0.0
    %3333 = vmatpush1.msra.mxu0 0.0
    %3334 = vmatprep.subr.mxu0 0.0
    %3335 = vmatpush1.msra.mxu0 0.0
    %3336 = vmatprep.subr.mxu0 0.0
    %3337 = vmatpush1.msra.mxu0 0.0
    %3338 = vmatprep.subr.mxu0 0.0
    %3339 = vmatpush1.msra.mxu0 0.0
    %3340 = vmatprep.subr.mxu0 0.0
    %3341 = vmatpush1.msra.mxu0 0.0
    %3342 = vmatprep.subr.mxu0 0.0
    %3343 = vmatpush1.msra.mxu0 0.0
    %3344 = vmatprep.mubr.f32.mxu0 0.0
    %3345 = vmatmul.mubr.f32.gmra.mrb[0].mxu0 %v3278
    %v3346 = vpop.f32.mrb[0].mxu0
    %v3347 = vadd.f32 0.0, %v3346
    %v3348 = vpop.f32.mrb[0].mxu0
    %3349 = vdwg.mxu0
    %3350 = vrot.lane.b32.xlu0 %v2520, 112
    %v3351 = vpop.permute.xlu0 %3350
    %3352 = vrot.lane.b32.xlu0 %v2602, 112
    %v3353 = vpop.permute.xlu0 %3352
    %v3354 = vsel %vm699, %v3351, 0
    %v3356 = vsel %vm699, %v3353, 0
    %3358 = vmatprep.subr.mxu0 0.0
    %3359 = vmatpush1.xpose.msra.mxu0 %v3356
    %3360 = vmatprep.subr.mxu0 0.0
    %3361 = vmatpush1.xpose.msra.mxu0 0.0
    %3362 = vmatprep.subr.mxu0 0.0
    %3363 = vmatpush1.xpose.msra.mxu0 0.0
    %3364 = vmatprep.subr.mxu0 0.0
    %3365 = vmatpush1.xpose.msra.mxu0 0.0
    %3366 = vmatprep.subr.mxu0 0.0
    %3367 = vmatpush1.xpose.msra.mxu0 0.0
    %3368 = vmatprep.subr.mxu0 0.0
    %3369 = vmatpush1.xpose.msra.mxu0 0.0
    %3370 = vmatprep.subr.mxu0 0.0
    %3371 = vmatpush1.xpose.msra.mxu0 0.0
    %3372 = vmatprep.subr.mxu0 0.0
    %3373 = vmatpush1.xpose.msra.mxu0 0.0
    %3374 = vmatprep.subr.mxu0 0.0
    %3375 = vmatpush1.xpose.msra.mxu0 0.0
    %3376 = vmatprep.subr.mxu0 0.0
    %3377 = vmatpush1.xpose.msra.mxu0 0.0
    %3378 = vmatprep.subr.mxu0 0.0
    %3379 = vmatpush1.xpose.msra.mxu0 0.0
    %3380 = vmatprep.subr.mxu0 0.0
    %3381 = vmatpush1.xpose.msra.mxu0 0.0
    %3382 = vmatprep.subr.mxu0 0.0
    %3383 = vmatpush1.xpose.msra.mxu0 0.0
    %3384 = vmatprep.subr.mxu0 0.0
    %3385 = vmatpush1.xpose.msra.mxu0 0.0
    %3386 = vmatprep.subr.mxu0 0.0
    %3387 = vmatpush1.xpose.msra.mxu0 0.0
    %3388 = vmatprep.subr.mxu0 0.0
    %3389 = vmatpush1.xpose.msra.mxu0 0.0
    %3390 = vmatprep.subr.mxu0 0.0
    %3391 = vmatpush1.xpose.msra.mxu0 0.0
    %3392 = vmatprep.subr.mxu0 0.0
    %3393 = vmatpush1.xpose.msra.mxu0 0.0
    %3394 = vmatprep.subr.mxu0 0.0
    %3395 = vmatpush1.xpose.msra.mxu0 0.0
    %3396 = vmatprep.subr.mxu0 0.0
    %3397 = vmatpush1.xpose.msra.mxu0 0.0
    %3398 = vmatprep.subr.mxu0 0.0
    %3399 = vmatpush1.xpose.msra.mxu0 0.0
    %3400 = vmatprep.subr.mxu0 0.0
    %3401 = vmatpush1.xpose.msra.mxu0 0.0
    %3402 = vmatprep.subr.mxu0 0.0
    %3403 = vmatpush1.xpose.msra.mxu0 0.0
    %3404 = vmatprep.subr.mxu0 0.0
    %3405 = vmatpush1.xpose.msra.mxu0 0.0
    %3406 = vmatprep.subr.mxu0 0.0
    %3407 = vmatpush1.xpose.msra.mxu0 0.0
    %3408 = vmatprep.subr.mxu0 0.0
    %3409 = vmatpush1.xpose.msra.mxu0 0.0
    %3410 = vmatprep.subr.mxu0 0.0
    %3411 = vmatpush1.xpose.msra.mxu0 0.0
    %3412 = vmatprep.subr.mxu0 0.0
    %3413 = vmatpush1.xpose.msra.mxu0 0.0
    %3414 = vmatprep.subr.mxu0 0.0
    %3415 = vmatpush1.xpose.msra.mxu0 0.0
    %3416 = vmatprep.subr.mxu0 0.0
    %3417 = vmatpush1.xpose.msra.mxu0 0.0
    %3418 = vmatprep.subr.mxu0 0.0
    %3419 = vmatpush1.xpose.msra.mxu0 0.0
    %3420 = vmatprep.subr.mxu0 0.0
    %3421 = vmatpush1.xpose.msra.mxu0 0.0
    %3422 = vmatprep.mubr.f32.mxu0 0.0
    %3423 = vmatmul.mubr.f32.gmra.mrb[0].mxu0 %v3354
    %v3424 = vpop.f32.mrb[0].mxu0
    %v3425 = vadd.f32 0.0, %v3424
    %v3426 = vpop.f32.mrb[0].mxu0
    %3427 = vdwg.mxu0
    %3428 = vrot.lane.b32.xlu0 %v2521, 112
    %v3429 = vpop.permute.xlu0 %3428
    %3430 = vrot.lane.b32.xlu0 %v2607, 112
    %v3431 = vpop.permute.xlu0 %3430
    %v3432 = vsel %vm699, %v3429, 0
    %v3434 = vsel %vm699, %v3431, 0
    %3436 = vmatprep.subr.mxu0 0.0
    %3437 = vmatpush1.xpose.msra.mxu0 %v3434
    %3438 = vmatprep.subr.mxu0 0.0
    %3439 = vmatpush1.xpose.msra.mxu0 0.0
    %3440 = vmatprep.subr.mxu0 0.0
    %3441 = vmatpush1.xpose.msra.mxu0 0.0
    %3442 = vmatprep.subr.mxu0 0.0
    %3443 = vmatpush1.xpose.msra.mxu0 0.0
    %3444 = vmatprep.subr.mxu0 0.0
    %3445 = vmatpush1.xpose.msra.mxu0 0.0
    %3446 = vmatprep.subr.mxu0 0.0
    %3447 = vmatpush1.xpose.msra.mxu0 0.0
    %3448 = vmatprep.subr.mxu0 0.0
    %3449 = vmatpush1.xpose.msra.mxu0 0.0
    %3450 = vmatprep.subr.mxu0 0.0
    %3451 = vmatpush1.xpose.msra.mxu0 0.0
    %3452 = vmatprep.subr.mxu0 0.0
    %3453 = vmatpush1.xpose.msra.mxu0 0.0
    %3454 = vmatprep.subr.mxu0 0.0
    %3455 = vmatpush1.xpose.msra.mxu0 0.0
    %3456 = vmatprep.subr.mxu0 0.0
    %3457 = vmatpush1.xpose.msra.mxu0 0.0
    %3458 = vmatprep.subr.mxu0 0.0
    %3459 = vmatpush1.xpose.msra.mxu0 0.0
    %3460 = vmatprep.subr.mxu0 0.0
    %3461 = vmatpush1.xpose.msra.mxu0 0.0
    %3462 = vmatprep.subr.mxu0 0.0
    %3463 = vmatpush1.xpose.msra.mxu0 0.0
    %3464 = vmatprep.subr.mxu0 0.0
    %3465 = vmatpush1.xpose.msra.mxu0 0.0
    %3466 = vmatprep.subr.mxu0 0.0
    %3467 = vmatpush1.xpose.msra.mxu0 0.0
    %3468 = vmatprep.subr.mxu0 0.0
    %3469 = vmatpush1.xpose.msra.mxu0 0.0
    %3470 = vmatprep.subr.mxu0 0.0
    %3471 = vmatpush1.xpose.msra.mxu0 0.0
    %3472 = vmatprep.subr.mxu0 0.0
    %3473 = vmatpush1.xpose.msra.mxu0 0.0
    %3474 = vmatprep.subr.mxu0 0.0
    %3475 = vmatpush1.xpose.msra.mxu0 0.0
    %3476 = vmatprep.subr.mxu0 0.0
    %3477 = vmatpush1.xpose.msra.mxu0 0.0
    %3478 = vmatprep.subr.mxu0 0.0
    %3479 = vmatpush1.xpose.msra.mxu0 0.0
    %3480 = vmatprep.subr.mxu0 0.0
    %3481 = vmatpush1.xpose.msra.mxu0 0.0
    %3482 = vmatprep.subr.mxu0 0.0
    %3483 = vmatpush1.xpose.msra.mxu0 0.0
    %3484 = vmatprep.subr.mxu0 0.0
    %3485 = vmatpush1.xpose.msra.mxu0 0.0
    %3486 = vmatprep.subr.mxu0 0.0
    %3487 = vmatpush1.xpose.msra.mxu0 0.0
    %3488 = vmatprep.subr.mxu0 0.0
    %3489 = vmatpush1.xpose.msra.mxu0 0.0
    %3490 = vmatprep.subr.mxu0 0.0
    %3491 = vmatpush1.xpose.msra.mxu0 0.0
    %3492 = vmatprep.subr.mxu0 0.0
    %3493 = vmatpush1.xpose.msra.mxu0 0.0
    %3494 = vmatprep.subr.mxu0 0.0
    %3495 = vmatpush1.xpose.msra.mxu0 0.0
    %3496 = vmatprep.subr.mxu0 0.0
    %3497 = vmatpush1.xpose.msra.mxu0 0.0
    %3498 = vmatprep.subr.mxu0 0.0
    %3499 = vmatpush1.xpose.msra.mxu0 0.0
    %3500 = vmatprep.mubr.f32.mxu0 0.0
    %3501 = vmatmul.mubr.f32.gmra.mrb[0].mxu0 %v3432
    %v3502 = vpop.f32.mrb[0].mxu0
    %v3503 = vadd.f32 0.0, %v3502
    %v3504 = vpop.f32.mrb[0].mxu0
    %3505 = vdwg.mxu0
    %v3506 = vsel %vm699, %v3425, -inf
    %3507 = vmax.xlane.f32.xlu0 %v3506
    %v3508 = vpop.xlane.xlu0 %3507
    %v3509 = vsel %vm699, %v3503, -inf
    %3510 = vmax.xlane.f32.xlu0 %v3509
    %v3511 = vpop.xlane.xlu0 %3510
    %v3512 = vsub.f32 %v3425, %v3508
    %v3513 = vsub.f32 %v3503, %v3511
    %v3514 = vmul.f32 %v3512, 1.442695
    %v3515 = vpow.pop %v3514
    %v3516 = vmul.f32 %v3513, 1.442695
    %v3517 = vpow.pop %v3516
    %v3518 = vsel %vm699, %v3515, 0.0
    %3519 = vadd.xlane.f32.xlu0 %v3518
    %v3520 = vpop.xlane.xlu0 %3519
    %v3521 = vsel %vm699, %v3517, 0.0
    %3522 = vadd.xlane.f32.xlu0 %v3521
    %v3523 = vpop.xlane.xlu0 %3522
    %v3524 = vrcp.pop %v3520
    %v3525 = vrcp.pop %v3523
    %v3526 = vmul.f32 %v3515, %v3524
    %v3527 = vmul.f32 %v3517, %v3525
    %3528 = vrot.lane.b32.xlu0 %v2690, 112
    %v3529 = vpop.permute.xlu0 %3528
    %v3532 = vsel %vm699, %v3526, 0
    %3534 = vmatprep.subr.mxu0 0.0
    %3535 = vmatpush1.msra.mxu0 %v3529
    %3536 = vmatprep.subr.mxu0 0.0
    %3537 = vmatpush1.msra.mxu0 0.0
    %3538 = vmatprep.subr.mxu0 0.0
    %3539 = vmatpush1.msra.mxu0 0.0
    %3540 = vmatprep.subr.mxu0 0.0
    %3541 = vmatpush1.msra.mxu0 0.0
    %3542 = vmatprep.subr.mxu0 0.0
    %3543 = vmatpush1.msra.mxu0 0.0
    %3544 = vmatprep.subr.mxu0 0.0
    %3545 = vmatpush1.msra.mxu0 0.0
    %3546 = vmatprep.subr.mxu0 0.0
    %3547 = vmatpush1.msra.mxu0 0.0
    %3548 = vmatprep.subr.mxu0 0.0
    %3549 = vmatpush1.msra.mxu0 0.0
    %3550 = vmatprep.subr.mxu0 0.0
    %3551 = vmatpush1.msra.mxu0 0.0
    %3552 = vmatprep.subr.mxu0 0.0
    %3553 = vmatpush1.msra.mxu0 0.0
    %3554 = vmatprep.subr.mxu0 0.0
    %3555 = vmatpush1.msra.mxu0 0.0
    %3556 = vmatprep.subr.mxu0 0.0
    %3557 = vmatpush1.msra.mxu0 0.0
    %3558 = vmatprep.subr.mxu0 0.0
    %3559 = vmatpush1.msra.mxu0 0.0
    %3560 = vmatprep.subr.mxu0 0.0
    %3561 = vmatpush1.msra.mxu0 0.0
    %3562 = vmatprep.subr.mxu0 0.0
    %3563 = vmatpush1.msra.mxu0 0.0
    %3564 = vmatprep.subr.mxu0 0.0
    %3565 = vmatpush1.msra.mxu0 0.0
    %3566 = vmatprep.subr.mxu0 0.0
    %3567 = vmatpush1.msra.mxu0 0.0
    %3568 = vmatprep.subr.mxu0 0.0
    %3569 = vmatpush1.msra.mxu0 0.0
    %3570 = vmatprep.subr.mxu0 0.0
    %3571 = vmatpush1.msra.mxu0 0.0
    %3572 = vmatprep.subr.mxu0 0.0
    %3573 = vmatpush1.msra.mxu0 0.0
    %3574 = vmatprep.subr.mxu0 0.0
    %3575 = vmatpush1.msra.mxu0 0.0
    %3576 = vmatprep.subr.mxu0 0.0
    %3577 = vmatpush1.msra.mxu0 0.0
    %3578 = vmatprep.subr.mxu0 0.0
    %3579 = vmatpush1.msra.mxu0 0.0
    %3580 = vmatprep.subr.mxu0 0.0
    %3581 = vmatpush1.msra.mxu0 0.0
    %3582 = vmatprep.subr.mxu0 0.0
    %3583 = vmatpush1.msra.mxu0 0.0
    %3584 = vmatprep.subr.mxu0 0.0
    %3585 = vmatpush1.msra.mxu0 0.0
    %3586 = vmatprep.subr.mxu0 0.0
    %3587 = vmatpush1.msra.mxu0 0.0
    %3588 = vmatprep.subr.mxu0 0.0
    %3589 = vmatpush1.msra.mxu0 0.0
    %3590 = vmatprep.subr.mxu0 0.0
    %3591 = vmatpush1.msra.mxu0 0.0
    %3592 = vmatprep.subr.mxu0 0.0
    %3593 = vmatpush1.msra.mxu0 0.0
    %3594 = vmatprep.subr.mxu0 0.0
    %3595 = vmatpush1.msra.mxu0 0.0
    %3596 = vmatprep.subr.mxu0 0.0
    %3597 = vmatpush1.msra.mxu0 0.0
    %3598 = vmatprep.mubr.f32.mxu0 0.0
    %3599 = vmatmul.mubr.f32.gmra.mrb[0].mxu0 %v3532
    %v3600 = vpop.f32.mrb[0].mxu0
    %v3601 = vadd.f32 0.0, %v3600
    %v3602 = vpop.f32.mrb[0].mxu0
    %3603 = vdwg.mxu0
    %3604 = vrot.lane.b32.xlu0 %v2695, 112
    %v3605 = vpop.permute.xlu0 %3604
    %v3608 = vsel %vm699, %v3527, 0
    %3610 = vmatprep.subr.mxu0 0.0
    %3611 = vmatpush1.msra.mxu0 %v3605
    %3612 = vmatprep.subr.mxu0 0.0
    %3613 = vmatpush1.msra.mxu0 0.0
    %3614 = vmatprep.subr.mxu0 0.0
    %3615 = vmatpush1.msra.mxu0 0.0
    %3616 = vmatprep.subr.mxu0 0.0
    %3617 = vmatpush1.msra.mxu0 0.0
    %3618 = vmatprep.subr.mxu0 0.0
    %3619 = vmatpush1.msra.mxu0 0.0
    %3620 = vmatprep.subr.mxu0 0.0
    %3621 = vmatpush1.msra.mxu0 0.0
    %3622 = vmatprep.subr.mxu0 0.0
    %3623 = vmatpush1.msra.mxu0 0.0
    %3624 = vmatprep.subr.mxu0 0.0
    %3625 = vmatpush1.msra.mxu0 0.0
    %3626 = vmatprep.subr.mxu0 0.0
    %3627 = vmatpush1.msra.mxu0 0.0
    %3628 = vmatprep.subr.mxu0 0.0
    %3629 = vmatpush1.msra.mxu0 0.0
    %3630 = vmatprep.subr.mxu0 0.0
    %3631 = vmatpush1.msra.mxu0 0.0
    %3632 = vmatprep.subr.mxu0 0.0
    %3633 = vmatpush1.msra.mxu0 0.0
    %3634 = vmatprep.subr.mxu0 0.0
    %3635 = vmatpush1.msra.mxu0 0.0
    %3636 = vmatprep.subr.mxu0 0.0
    %3637 = vmatpush1.msra.mxu0 0.0
    %3638 = vmatprep.subr.mxu0 0.0
    %3639 = vmatpush1.msra.mxu0 0.0
    %3640 = vmatprep.subr.mxu0 0.0
    %3641 = vmatpush1.msra.mxu0 0.0
    %3642 = vmatprep.subr.mxu0 0.0
    %3643 = vmatpush1.msra.mxu0 0.0
    %3644 = vmatprep.subr.mxu0 0.0
    %3645 = vmatpush1.msra.mxu0 0.0
    %3646 = vmatprep.subr.mxu0 0.0
    %3647 = vmatpush1.msra.mxu0 0.0
    %3648 = vmatprep.subr.mxu0 0.0
    %3649 = vmatpush1.msra.mxu0 0.0
    %3650 = vmatprep.subr.mxu0 0.0
    %3651 = vmatpush1.msra.mxu0 0.0
    %3652 = vmatprep.subr.mxu0 0.0
    %3653 = vmatpush1.msra.mxu0 0.0
    %3654 = vmatprep.subr.mxu0 0.0
    %3655 = vmatpush1.msra.mxu0 0.0
    %3656 = vmatprep.subr.mxu0 0.0
    %3657 = vmatpush1.msra.mxu0 0.0
    %3658 = vmatprep.subr.mxu0 0.0
    %3659 = vmatpush1.msra.mxu0 0.0
    %3660 = vmatprep.subr.mxu0 0.0
    %3661 = vmatpush1.msra.mxu0 0.0
    %3662 = vmatprep.subr.mxu0 0.0
    %3663 = vmatpush1.msra.mxu0 0.0
    %3664 = vmatprep.subr.mxu0 0.0
    %3665 = vmatpush1.msra.mxu0 0.0
    %3666 = vmatprep.subr.mxu0 0.0
    %3667 = vmatpush1.msra.mxu0 0.0
    %3668 = vmatprep.subr.mxu0 0.0
    %3669 = vmatpush1.msra.mxu0 0.0
    %3670 = vmatprep.subr.mxu0 0.0
    %3671 = vmatpush1.msra.mxu0 0.0
    %3672 = vmatprep.subr.mxu0 0.0
    %3673 = vmatpush1.msra.mxu0 0.0
    %3674 = vmatprep.mubr.f32.mxu0 0.0
    %3675 = vmatmul.mubr.f32.gmra.mrb[0].mxu0 %v3608
    %v3676 = vpop.f32.mrb[0].mxu0
    %v3677 = vadd.f32 0.0, %v3676
    %v3678 = vpop.f32.mrb[0].mxu0
    %3679 = vdwg.mxu0
    %3680 = vrot.lane.b32.xlu0 %v2520, 104
    %v3681 = vpop.permute.xlu0 %3680
    %3682 = vrot.lane.b32.xlu0 %v2602, 104
    %v3683 = vpop.permute.xlu0 %3682
    %v3684 = vsel %vm699, %v3681, 0
    %v3686 = vsel %vm699, %v3683, 0
    %3688 = vmatprep.subr.mxu0 0.0
    %3689 = vmatpush1.xpose.msra.mxu0 %v3686
    %3690 = vmatprep.subr.mxu0 0.0
    %3691 = vmatpush1.xpose.msra.mxu0 0.0
    %3692 = vmatprep.subr.mxu0 0.0
    %3693 = vmatpush1.xpose.msra.mxu0 0.0
    %3694 = vmatprep.subr.mxu0 0.0
    %3695 = vmatpush1.xpose.msra.mxu0 0.0
    %3696 = vmatprep.subr.mxu0 0.0
    %3697 = vmatpush1.xpose.msra.mxu0 0.0
    %3698 = vmatprep.subr.mxu0 0.0
    %3699 = vmatpush1.xpose.msra.mxu0 0.0
    %3700 = vmatprep.subr.mxu0 0.0
    %3701 = vmatpush1.xpose.msra.mxu0 0.0
    %3702 = vmatprep.subr.mxu0 0.0
    %3703 = vmatpush1.xpose.msra.mxu0 0.0
    %3704 = vmatprep.subr.mxu0 0.0
    %3705 = vmatpush1.xpose.msra.mxu0 0.0
    %3706 = vmatprep.subr.mxu0 0.0
    %3707 = vmatpush1.xpose.msra.mxu0 0.0
    %3708 = vmatprep.subr.mxu0 0.0
    %3709 = vmatpush1.xpose.msra.mxu0 0.0
    %3710 = vmatprep.subr.mxu0 0.0
    %3711 = vmatpush1.xpose.msra.mxu0 0.0
    %3712 = vmatprep.subr.mxu0 0.0
    %3713 = vmatpush1.xpose.msra.mxu0 0.0
    %3714 = vmatprep.subr.mxu0 0.0
    %3715 = vmatpush1.xpose.msra.mxu0 0.0
    %3716 = vmatprep.subr.mxu0 0.0
    %3717 = vmatpush1.xpose.msra.mxu0 0.0
    %3718 = vmatprep.subr.mxu0 0.0
    %3719 = vmatpush1.xpose.msra.mxu0 0.0
    %3720 = vmatprep.subr.mxu0 0.0
    %3721 = vmatpush1.xpose.msra.mxu0 0.0
    %3722 = vmatprep.subr.mxu0 0.0
    %3723 = vmatpush1.xpose.msra.mxu0 0.0
    %3724 = vmatprep.subr.mxu0 0.0
    %3725 = vmatpush1.xpose.msra.mxu0 0.0
    %3726 = vmatprep.subr.mxu0 0.0
    %3727 = vmatpush1.xpose.msra.mxu0 0.0
    %3728 = vmatprep.subr.mxu0 0.0
    %3729 = vmatpush1.xpose.msra.mxu0 0.0
    %3730 = vmatprep.subr.mxu0 0.0
    %3731 = vmatpush1.xpose.msra.mxu0 0.0
    %3732 = vmatprep.subr.mxu0 0.0
    %3733 = vmatpush1.xpose.msra.mxu0 0.0
    %3734 = vmatprep.subr.mxu0 0.0
    %3735 = vmatpush1.xpose.msra.mxu0 0.0
    %3736 = vmatprep.subr.mxu0 0.0
    %3737 = vmatpush1.xpose.msra.mxu0 0.0
    %3738 = vmatprep.subr.mxu0 0.0
    %3739 = vmatpush1.xpose.msra.mxu0 0.0
    %3740 = vmatprep.subr.mxu0 0.0
    %3741 = vmatpush1.xpose.msra.mxu0 0.0
    %3742 = vmatprep.subr.mxu0 0.0
    %3743 = vmatpush1.xpose.msra.mxu0 0.0
    %3744 = vmatprep.subr.mxu0 0.0
    %3745 = vmatpush1.xpose.msra.mxu0 0.0
    %3746 = vmatprep.subr.mxu0 0.0
    %3747 = vmatpush1.xpose.msra.mxu0 0.0
    %3748 = vmatprep.subr.mxu0 0.0
    %3749 = vmatpush1.xpose.msra.mxu0 0.0
    %3750 = vmatprep.subr.mxu0 0.0
    %3751 = vmatpush1.xpose.msra.mxu0 0.0
    %3752 = vmatprep.mubr.f32.mxu0 0.0
    %3753 = vmatmul.mubr.f32.gmra.mrb[0].mxu0 %v3684
    %v3754 = vpop.f32.mrb[0].mxu0
    %v3755 = vadd.f32 0.0, %v3754
    %v3756 = vpop.f32.mrb[0].mxu0
    %3757 = vdwg.mxu0
    %3758 = vrot.lane.b32.xlu0 %v2521, 104
    %v3759 = vpop.permute.xlu0 %3758
    %3760 = vrot.lane.b32.xlu0 %v2607, 104
    %v3761 = vpop.permute.xlu0 %3760
    %v3762 = vsel %vm699, %v3759, 0
    %v3764 = vsel %vm699, %v3761, 0
    %3766 = vmatprep.subr.mxu0 0.0
    %3767 = vmatpush1.xpose.msra.mxu0 %v3764
    %3768 = vmatprep.subr.mxu0 0.0
    %3769 = vmatpush1.xpose.msra.mxu0 0.0
    %3770 = vmatprep.subr.mxu0 0.0
    %3771 = vmatpush1.xpose.msra.mxu0 0.0
    %3772 = vmatprep.subr.mxu0 0.0
    %3773 = vmatpush1.xpose.msra.mxu0 0.0
    %3774 = vmatprep.subr.mxu0 0.0
    %3775 = vmatpush1.xpose.msra.mxu0 0.0
    %3776 = vmatprep.subr.mxu0 0.0
    %3777 = vmatpush1.xpose.msra.mxu0 0.0
    %3778 = vmatprep.subr.mxu0 0.0
    %3779 = vmatpush1.xpose.msra.mxu0 0.0
    %3780 = vmatprep.subr.mxu0 0.0
    %3781 = vmatpush1.xpose.msra.mxu0 0.0
    %3782 = vmatprep.subr.mxu0 0.0
    %3783 = vmatpush1.xpose.msra.mxu0 0.0
    %3784 = vmatprep.subr.mxu0 0.0
    %3785 = vmatpush1.xpose.msra.mxu0 0.0
    %3786 = vmatprep.subr.mxu0 0.0
    %3787 = vmatpush1.xpose.msra.mxu0 0.0
    %3788 = vmatprep.subr.mxu0 0.0
    %3789 = vmatpush1.xpose.msra.mxu0 0.0
    %3790 = vmatprep.subr.mxu0 0.0
    %3791 = vmatpush1.xpose.msra.mxu0 0.0
    %3792 = vmatprep.subr.mxu0 0.0
    %3793 = vmatpush1.xpose.msra.mxu0 0.0
    %3794 = vmatprep.subr.mxu0 0.0
    %3795 = vmatpush1.xpose.msra.mxu0 0.0
    %3796 = vmatprep.subr.mxu0 0.0
    %3797 = vmatpush1.xpose.msra.mxu0 0.0
    %3798 = vmatprep.subr.mxu0 0.0
    %3799 = vmatpush1.xpose.msra.mxu0 0.0
    %3800 = vmatprep.subr.mxu0 0.0
    %3801 = vmatpush1.xpose.msra.mxu0 0.0
    %3802 = vmatprep.subr.mxu0 0.0
    %3803 = vmatpush1.xpose.msra.mxu0 0.0
    %3804 = vmatprep.subr.mxu0 0.0
    %3805 = vmatpush1.xpose.msra.mxu0 0.0
    %3806 = vmatprep.subr.mxu0 0.0
    %3807 = vmatpush1.xpose.msra.mxu0 0.0
    %3808 = vmatprep.subr.mxu0 0.0
    %3809 = vmatpush1.xpose.msra.mxu0 0.0
    %3810 = vmatprep.subr.mxu0 0.0
    %3811 = vmatpush1.xpose.msra.mxu0 0.0
    %3812 = vmatprep.subr.mxu0 0.0
    %3813 = vmatpush1.xpose.msra.mxu0 0.0
    %3814 = vmatprep.subr.mxu0 0.0
    %3815 = vmatpush1.xpose.msra.mxu0 0.0
    %3816 = vmatprep.subr.mxu0 0.0
    %3817 = vmatpush1.xpose.msra.mxu0 0.0
    %3818 = vmatprep.subr.mxu0 0.0
    %3819 = vmatpush1.xpose.msra.mxu0 0.0
    %3820 = vmatprep.subr.mxu0 0.0
    %3821 = vmatpush1.xpose.msra.mxu0 0.0
    %3822 = vmatprep.subr.mxu0 0.0
    %3823 = vmatpush1.xpose.msra.mxu0 0.0
    %3824 = vmatprep.subr.mxu0 0.0
    %3825 = vmatpush1.xpose.msra.mxu0 0.0
    %3826 = vmatprep.subr.mxu0 0.0
    %3827 = vmatpush1.xpose.msra.mxu0 0.0
    %3828 = vmatprep.subr.mxu0 0.0
    %3829 = vmatpush1.xpose.msra.mxu0 0.0
    %3830 = vmatprep.mubr.f32.mxu0 0.0
    %3831 = vmatmul.mubr.f32.gmra.mrb[0].mxu0 %v3762
    %v3832 = vpop.f32.mrb[0].mxu0
    %v3833 = vadd.f32 0.0, %v3832
    %v3834 = vpop.f32.mrb[0].mxu0
    %3835 = vdwg.mxu0
    %v3836 = vsel %vm699, %v3755, -inf
    %3837 = vmax.xlane.f32.xlu0 %v3836
    %v3838 = vpop.xlane.xlu0 %3837
    %v3839 = vsel %vm699, %v3833, -inf
    %3840 = vmax.xlane.f32.xlu0 %v3839
    %v3841 = vpop.xlane.xlu0 %3840
    %v3842 = vsub.f32 %v3755, %v3838
    %v3843 = vsub.f32 %v3833, %v3841
    %v3844 = vmul.f32 %v3842, 1.442695
    %v3845 = vpow.pop %v3844
    %v3846 = vmul.f32 %v3843, 1.442695
    %v3847 = vpow.pop %v3846
    %v3848 = vsel %vm699, %v3845, 0.0
    %3849 = vadd.xlane.f32.xlu0 %v3848
    %v3850 = vpop.xlane.xlu0 %3849
    %v3851 = vsel %vm699, %v3847, 0.0
    %3852 = vadd.xlane.f32.xlu0 %v3851
    %v3853 = vpop.xlane.xlu0 %3852
    %v3854 = vrcp.pop %v3850
    %v3855 = vrcp.pop %v3853
    %v3856 = vmul.f32 %v3845, %v3854
    %v3857 = vmul.f32 %v3847, %v3855
    %3858 = vrot.lane.b32.xlu0 %v2690, 104
    %v3859 = vpop.permute.xlu0 %3858
    %v3862 = vsel %vm699, %v3856, 0
    %3864 = vmatprep.subr.mxu0 0.0
    %3865 = vmatpush1.msra.mxu0 %v3859
    %3866 = vmatprep.subr.mxu0 0.0
    %3867 = vmatpush1.msra.mxu0 0.0
    %3868 = vmatprep.subr.mxu0 0.0
    %3869 = vmatpush1.msra.mxu0 0.0
    %3870 = vmatprep.subr.mxu0 0.0
    %3871 = vmatpush1.msra.mxu0 0.0
    %3872 = vmatprep.subr.mxu0 0.0
    %3873 = vmatpush1.msra.mxu0 0.0
    %3874 = vmatprep.subr.mxu0 0.0
    %3875 = vmatpush1.msra.mxu0 0.0
    %3876 = vmatprep.subr.mxu0 0.0
    %3877 = vmatpush1.msra.mxu0 0.0
    %3878 = vmatprep.subr.mxu0 0.0
    %3879 = vmatpush1.msra.mxu0 0.0
    %3880 = vmatprep.subr.mxu0 0.0
    %3881 = vmatpush1.msra.mxu0 0.0
    %3882 = vmatprep.subr.mxu0 0.0
    %3883 = vmatpush1.msra.mxu0 0.0
    %3884 = vmatprep.subr.mxu0 0.0
    %3885 = vmatpush1.msra.mxu0 0.0
    %3886 = vmatprep.subr.mxu0 0.0
    %3887 = vmatpush1.msra.mxu0 0.0
    %3888 = vmatprep.subr.mxu0 0.0
    %3889 = vmatpush1.msra.mxu0 0.0
    %3890 = vmatprep.subr.mxu0 0.0
    %3891 = vmatpush1.msra.mxu0 0.0
    %3892 = vmatprep.subr.mxu0 0.0
    %3893 = vmatpush1.msra.mxu0 0.0
    %3894 = vmatprep.subr.mxu0 0.0
    %3895 = vmatpush1.msra.mxu0 0.0
    %3896 = vmatprep.subr.mxu0 0.0
    %3897 = vmatpush1.msra.mxu0 0.0
    %3898 = vmatprep.subr.mxu0 0.0
    %3899 = vmatpush1.msra.mxu0 0.0
    %3900 = vmatprep.subr.mxu0 0.0
    %3901 = vmatpush1.msra.mxu0 0.0
    %3902 = vmatprep.subr.mxu0 0.0
    %3903 = vmatpush1.msra.mxu0 0.0
    %3904 = vmatprep.subr.mxu0 0.0
    %3905 = vmatpush1.msra.mxu0 0.0
    %3906 = vmatprep.subr.mxu0 0.0
    %3907 = vmatpush1.msra.mxu0 0.0
    %3908 = vmatprep.subr.mxu0 0.0
    %3909 = vmatpush1.msra.mxu0 0.0
    %3910 = vmatprep.subr.mxu0 0.0
    %3911 = vmatpush1.msra.mxu0 0.0
    %3912 = vmatprep.subr.mxu0 0.0
    %3913 = vmatpush1.msra.mxu0 0.0
    %3914 = vmatprep.subr.mxu0 0.0
    %3915 = vmatpush1.msra.mxu0 0.0
    %3916 = vmatprep.subr.mxu0 0.0
    %3917 = vmatpush1.msra.mxu0 0.0
    %3918 = vmatprep.subr.mxu0 0.0
    %3919 = vmatpush1.msra.mxu0 0.0
    %3920 = vmatprep.subr.mxu0 0.0
    %3921 = vmatpush1.msra.mxu0 0.0
    %3922 = vmatprep.subr.mxu0 0.0
    %3923 = vmatpush1.msra.mxu0 0.0
    %3924 = vmatprep.subr.mxu0 0.0
    %3925 = vmatpush1.msra.mxu0 0.0
    %3926 = vmatprep.subr.mxu0 0.0
    %3927 = vmatpush1.msra.mxu0 0.0
    %3928 = vmatprep.mubr.f32.mxu0 0.0
    %3929 = vmatmul.mubr.f32.gmra.mrb[0].mxu0 %v3862
    %v3930 = vpop.f32.mrb[0].mxu0
    %v3931 = vadd.f32 0.0, %v3930
    %v3932 = vpop.f32.mrb[0].mxu0
    %3933 = vdwg.mxu0
    %3934 = vrot.lane.b32.xlu0 %v2695, 104
    %v3935 = vpop.permute.xlu0 %3934
    %v3938 = vsel %vm699, %v3857, 0
    %3940 = vmatprep.subr.mxu0 0.0
    %3941 = vmatpush1.msra.mxu0 %v3935
    %3942 = vmatprep.subr.mxu0 0.0
    %3943 = vmatpush1.msra.mxu0 0.0
    %3944 = vmatprep.subr.mxu0 0.0
    %3945 = vmatpush1.msra.mxu0 0.0
    %3946 = vmatprep.subr.mxu0 0.0
    %3947 = vmatpush1.msra.mxu0 0.0
    %3948 = vmatprep.subr.mxu0 0.0
    %3949 = vmatpush1.msra.mxu0 0.0
    %3950 = vmatprep.subr.mxu0 0.0
    %3951 = vmatpush1.msra.mxu0 0.0
    %3952 = vmatprep.subr.mxu0 0.0
    %3953 = vmatpush1.msra.mxu0 0.0
    %3954 = vmatprep.subr.mxu0 0.0
    %3955 = vmatpush1.msra.mxu0 0.0
    %3956 = vmatprep.subr.mxu0 0.0
    %3957 = vmatpush1.msra.mxu0 0.0
    %3958 = vmatprep.subr.mxu0 0.0
    %3959 = vmatpush1.msra.mxu0 0.0
    %3960 = vmatprep.subr.mxu0 0.0
    %3961 = vmatpush1.msra.mxu0 0.0
    %3962 = vmatprep.subr.mxu0 0.0
    %3963 = vmatpush1.msra.mxu0 0.0
    %3964 = vmatprep.subr.mxu0 0.0
    %3965 = vmatpush1.msra.mxu0 0.0
    %3966 = vmatprep.subr.mxu0 0.0
    %3967 = vmatpush1.msra.mxu0 0.0
    %3968 = vmatprep.subr.mxu0 0.0
    %3969 = vmatpush1.msra.mxu0 0.0
    %3970 = vmatprep.subr.mxu0 0.0
    %3971 = vmatpush1.msra.mxu0 0.0
    %3972 = vmatprep.subr.mxu0 0.0
    %3973 = vmatpush1.msra.mxu0 0.0
    %3974 = vmatprep.subr.mxu0 0.0
    %3975 = vmatpush1.msra.mxu0 0.0
    %3976 = vmatprep.subr.mxu0 0.0
    %3977 = vmatpush1.msra.mxu0 0.0
    %3978 = vmatprep.subr.mxu0 0.0
    %3979 = vmatpush1.msra.mxu0 0.0
    %3980 = vmatprep.subr.mxu0 0.0
    %3981 = vmatpush1.msra.mxu0 0.0
    %3982 = vmatprep.subr.mxu0 0.0
    %3983 = vmatpush1.msra.mxu0 0.0
    %3984 = vmatprep.subr.mxu0 0.0
    %3985 = vmatpush1.msra.mxu0 0.0
    %3986 = vmatprep.subr.mxu0 0.0
    %3987 = vmatpush1.msra.mxu0 0.0
    %3988 = vmatprep.subr.mxu0 0.0
    %3989 = vmatpush1.msra.mxu0 0.0
    %3990 = vmatprep.subr.mxu0 0.0
    %3991 = vmatpush1.msra.mxu0 0.0
    %3992 = vmatprep.subr.mxu0 0.0
    %3993 = vmatpush1.msra.mxu0 0.0
    %3994 = vmatprep.subr.mxu0 0.0
    %3995 = vmatpush1.msra.mxu0 0.0
    %3996 = vmatprep.subr.mxu0 0.0
    %3997 = vmatpush1.msra.mxu0 0.0
    %3998 = vmatprep.subr.mxu0 0.0
    %3999 = vmatpush1.msra.mxu0 0.0
    %4000 = vmatprep.subr.mxu0 0.0
    %4001 = vmatpush1.msra.mxu0 0.0
    %4002 = vmatprep.subr.mxu0 0.0
    %4003 = vmatpush1.msra.mxu0 0.0
    %4004 = vmatprep.mubr.f32.mxu0 0.0
    %4005 = vmatmul.mubr.f32.gmra.mrb[0].mxu0 %v3938
    %v4006 = vpop.f32.mrb[0].mxu0
    %v4007 = vadd.f32 0.0, %v4006
    %v4008 = vpop.f32.mrb[0].mxu0
    %4009 = vdwg.mxu0
    %4012 = vrot.lane.b32.xlu0 %v3270, 8
    %v4013 = vpop.permute.xlu0 %4012
    %4014 = vrot.lane.b32.xlu0 %v3347, 8
    %v4015 = vpop.permute.xlu0 %4014
    %4020 = vrot.lane.b32.xlu0 %v3601, 16
    %v4021 = vpop.permute.xlu0 %4020
    %4022 = vrot.lane.b32.xlu0 %v3677, 16
    %v4023 = vpop.permute.xlu0 %4022
    %4028 = vrot.lane.b32.xlu0 %v3931, 24
    %v4029 = vpop.permute.xlu0 %4028
    %4030 = vrot.lane.b32.xlu0 %v4007, 24
    %v4031 = vpop.permute.xlu0 %4030
    %v4034 = vsel %vm699, %v2942, %v4013
    %v4035 = vsel %vm699, %v3015, %v4015
    %v4036 = vsel %vm2038, %v4034, %v4021
    %v4037 = vsel %vm2038, %v4035, %v4023
    %v4038 = vsel %vm2041, %v4036, %v4029
    %v4039 = vsel %vm2041, %v4037, %v4031
    %s4040 = scalar_lea.vmem %s9, 32
    %v4041 = vld [vmem:[%s4040] sm:$0xff]
    %v4042 = vld [vmem:[%s4040 + $0x8] sm:$0xff]
    %v4043 = vld [vmem:[%s4040 + $0x10] sm:$0xff]
    %v4044 = vld [vmem:[%s4040 + $0x18] sm:$0xff]
    %v4046 = vsel %vm389, %v4038, 0
    %v4049 = vsel %vm389, %v4039, 0
    %4051 = vmatprep.subr.mxu0 0.0
    %4052 = vmatpush1.msra.mxu0 %v4041
    %4053 = vmatprep.subr.mxu0 0.0
    %4054 = vmatpush1.msra.mxu0 %v4042
    %4055 = vmatprep.subr.mxu0 0.0
    %4056 = vmatpush1.msra.mxu0 %v4043
    %4057 = vmatprep.subr.mxu0 0.0
    %4058 = vmatpush1.msra.mxu0 %v4044
    %4059 = vmatprep.subr.mxu0 0.0
    %4060 = vmatpush1.msra.mxu0 0.0
    %4061 = vmatprep.subr.mxu0 0.0
    %4062 = vmatpush1.msra.mxu0 0.0
    %4063 = vmatprep.subr.mxu0 0.0
    %4064 = vmatpush1.msra.mxu0 0.0
    %4065 = vmatprep.subr.mxu0 0.0
    %4066 = vmatpush1.msra.mxu0 0.0
    %4067 = vmatprep.subr.mxu0 0.0
    %4068 = vmatpush1.msra.mxu0 0.0
    %4069 = vmatprep.subr.mxu0 0.0
    %4070 = vmatpush1.msra.mxu0 0.0
    %4071 = vmatprep.subr.mxu0 0.0
    %4072 = vmatpush1.msra.mxu0 0.0
    %4073 = vmatprep.subr.mxu0 0.0
    %4074 = vmatpush1.msra.mxu0 0.0
    %4075 = vmatprep.subr.mxu0 0.0
    %4076 = vmatpush1.msra.mxu0 0.0
    %4077 = vmatprep.subr.mxu0 0.0
    %4078 = vmatpush1.msra.mxu0 0.0
    %4079 = vmatprep.subr.mxu0 0.0
    %4080 = vmatpush1.msra.mxu0 0.0
    %4081 = vmatprep.subr.mxu0 0.0
    %4082 = vmatpush1.msra.mxu0 0.0
    %4083 = vmatprep.subr.mxu0 0.0
    %4084 = vmatpush1.msra.mxu0 0.0
    %4085 = vmatprep.subr.mxu0 0.0
    %4086 = vmatpush1.msra.mxu0 0.0
    %4087 = vmatprep.subr.mxu0 0.0
    %4088 = vmatpush1.msra.mxu0 0.0
    %4089 = vmatprep.subr.mxu0 0.0
    %4090 = vmatpush1.msra.mxu0 0.0
    %4091 = vmatprep.subr.mxu0 0.0
    %4092 = vmatpush1.msra.mxu0 0.0
    %4093 = vmatprep.subr.mxu0 0.0
    %4094 = vmatpush1.msra.mxu0 0.0
    %4095 = vmatprep.subr.mxu0 0.0
    %4096 = vmatpush1.msra.mxu0 0.0
    %4097 = vmatprep.subr.mxu0 0.0
    %4098 = vmatpush1.msra.mxu0 0.0
    %4099 = vmatprep.subr.mxu0 0.0
    %4100 = vmatpush1.msra.mxu0 0.0
    %4101 = vmatprep.subr.mxu0 0.0
    %4102 = vmatpush1.msra.mxu0 0.0
    %4103 = vmatprep.subr.mxu0 0.0
    %4104 = vmatpush1.msra.mxu0 0.0
    %4105 = vmatprep.subr.mxu0 0.0
    %4106 = vmatpush1.msra.mxu0 0.0
    %4107 = vmatprep.subr.mxu0 0.0
    %4108 = vmatpush1.msra.mxu0 0.0
    %4109 = vmatprep.subr.mxu0 0.0
    %4110 = vmatpush1.msra.mxu0 0.0
    %4111 = vmatprep.subr.mxu0 0.0
    %4112 = vmatpush1.msra.mxu0 0.0
    %4113 = vmatprep.subr.mxu0 0.0
    %4114 = vmatpush1.msra.mxu0 0.0
    %4115 = vmatprep.mubr.f32.mxu0 0.0
    %4116 = vmatmul.mubr.f32.gmra.mrb[0].mxu0 %v4046
    %v4117 = vpop.f32.mrb[0].mxu0
    %v4118 = vadd.f32 0.0, %v4117
    %v4119 = vpop.f32.mrb[0].mxu0
    %4120 = vmatprep.mubr.f32.mxu0 0.0
    %4121 = vmatmul.mubr.f32.gmra.mrb[0].mxu0 %v4049
    %v4122 = vpop.f32.mrb[0].mxu0
    %v4123 = vadd.f32 0.0, %v4122
    %v4124 = vpop.f32.mrb[0].mxu0
    %4125 = vdwg.mxu0
    %v4126 = vadd.f32 %v2378, %v4118
    %v4127 = vadd.f32 %v2379, %v4123
    %s4128 = scalar_lea.vmem %s10, 1
    %v4129 = vld [vmem:[%s4128] sm:$0x1]
    %v4131 = vlaneseq
    %v4132 = vshrl.u32 %v4131, 7
    %v4133 = vsub.s32 0, %v4132
    %v4134 = vrot.slane %v4129, %v4133
    %v4136 = vadd.f32 %v4126, %v4134
    %v4137 = vadd.f32 %v4127, %v4134
    %s4138 = scalar_lea.vmem %s17, 1
    %v4139 = vld [vmem:[%s4138] sm:$0x1]
    %s4140 = scalar_lea.vmem %s18, 1
    %v4141 = vld [vmem:[%s4140] sm:$0x1]
    %v4142 = vsel %vm389, %v4136, 0.0
    %4143 = vadd.xlane.f32.xlu0 %v4142
    %v4144 = vpop.xlane.xlu0 %4143
    %v4145 = vsel %vm389, %v4137, 0.0
    %4146 = vadd.xlane.f32.xlu0 %v4145
    %v4147 = vpop.xlane.xlu0 %4146
    %v4148 = vmul.f32 %v4144, %v396
    %v4149 = vmul.f32 %v4147, %v396
    %v4150 = vsub.f32 %v4136, %v4148
    %v4151 = vsub.f32 %v4137, %v4149
    %v4152 = vmul.f32 %v4150, %v4150
    %v4153 = vmul.f32 %v4151, %v4151
    %v4154 = vsel %vm389, %v4152, 0.0
    %4155 = vadd.xlane.f32.xlu0 %v4154
    %v4156 = vpop.xlane.xlu0 %4155
    %v4157 = vsel %vm389, %v4153, 0.0
    %4158 = vadd.xlane.f32.xlu0 %v4157
    %v4159 = vpop.xlane.xlu0 %4158
    %v4160 = vmul.f32 %v4156, %v396
    %v4161 = vmul.f32 %v4159, %v396
    %v4162 = vadd.f32 %v4160, 1e-05
    %v4163 = vadd.f32 %v4161, 1e-05
    %v4164 = vrsqrt.pop %v4162
    %v4165 = vrsqrt.pop %v4163
    %v4166 = vmul.f32 %v4150, %v4164
    %v4167 = vmul.f32 %v4151, %v4165
    %v4169 = vlaneseq
    %v4170 = vshrl.u32 %v4169, 7
    %v4171 = vsub.s32 0, %v4170
    %v4172 = vrot.slane %v4139, %v4171
    %v4174 = vmul.f32 %v4166, %v4172
    %v4175 = vmul.f32 %v4167, %v4172
    %v4177 = vlaneseq
    %v4178 = vshrl.u32 %v4177, 7
    %v4179 = vsub.s32 0, %v4178
    %v4180 = vrot.slane %v4141, %v4179
    %v4182 = vadd.f32 %v4174, %v4180
    %v4183 = vadd.f32 %v4175, %v4180
    %s4184 = scalar_lea.vmem [#allocation6], 32
    %v4185 = vld [vmem:[%s4184] sm:$0xff]
    %v4186 = vld [vmem:[%s4184 + $0x8] sm:$0xff]
    %v4187 = vld [vmem:[%s4184 + $0x10] sm:$0xff]
    %v4188 = vld [vmem:[%s4184 + $0x18] sm:$0xff]
    %s4189 = scalar_lea.vmem %s14, 1
    %v4190 = vld [vmem:[%s4189] sm:$0x1]
    %v4192 = vlaneseq
    %v4193 = vshrl.u32 %v4192, 7
    %v4194 = vsub.s32 0, %v4193
    %v4195 = vrot.slane %v4190, %v4194
    %v4198 = vsel %vm389, %v4182, 0
    %v4201 = vsel %vm389, %v4183, 0
    %4203 = vmatprep.subr.mxu0 0.0
    %4204 = vmatpush1.msra.mxu0 %v4185
    %4205 = vmatprep.subr.mxu0 0.0
    %4206 = vmatpush1.msra.mxu0 %v4186
    %4207 = vmatprep.subr.mxu0 0.0
    %4208 = vmatpush1.msra.mxu0 %v4187
    %4209 = vmatprep.subr.mxu0 0.0
    %4210 = vmatpush1.msra.mxu0 %v4188
    %4211 = vmatprep.subr.mxu0 0.0
    %4212 = vmatpush1.msra.mxu0 0.0
    %4213 = vmatprep.subr.mxu0 0.0
    %4214 = vmatpush1.msra.mxu0 0.0
    %4215 = vmatprep.subr.mxu0 0.0
    %4216 = vmatpush1.msra.mxu0 0.0
    %4217 = vmatprep.subr.mxu0 0.0
    %4218 = vmatpush1.msra.mxu0 0.0
    %4219 = vmatprep.subr.mxu0 0.0
    %4220 = vmatpush1.msra.mxu0 0.0
    %4221 = vmatprep.subr.mxu0 0.0
    %4222 = vmatpush1.msra.mxu0 0.0
    %4223 = vmatprep.subr.mxu0 0.0
    %4224 = vmatpush1.msra.mxu0 0.0
    %4225 = vmatprep.subr.mxu0 0.0
    %4226 = vmatpush1.msra.mxu0 0.0
    %4227 = vmatprep.subr.mxu0 0.0
    %4228 = vmatpush1.msra.mxu0 0.0
    %4229 = vmatprep.subr.mxu0 0.0
    %4230 = vmatpush1.msra.mxu0 0.0
    %4231 = vmatprep.subr.mxu0 0.0
    %4232 = vmatpush1.msra.mxu0 0.0
    %4233 = vmatprep.subr.mxu0 0.0
    %4234 = vmatpush1.msra.mxu0 0.0
    %4235 = vmatprep.subr.mxu0 0.0
    %4236 = vmatpush1.msra.mxu0 0.0
    %4237 = vmatprep.subr.mxu0 0.0
    %4238 = vmatpush1.msra.mxu0 0.0
    %4239 = vmatprep.subr.mxu0 0.0
    %4240 = vmatpush1.msra.mxu0 0.0
    %4241 = vmatprep.subr.mxu0 0.0
    %4242 = vmatpush1.msra.mxu0 0.0
    %4243 = vmatprep.subr.mxu0 0.0
    %4244 = vmatpush1.msra.mxu0 0.0
    %4245 = vmatprep.subr.mxu0 0.0
    %4246 = vmatpush1.msra.mxu0 0.0
    %4247 = vmatprep.subr.mxu0 0.0
    %4248 = vmatpush1.msra.mxu0 0.0
    %4249 = vmatprep.subr.mxu0 0.0
    %4250 = vmatpush1.msra.mxu0 0.0
    %4251 = vmatprep.subr.mxu0 0.0
    %4252 = vmatpush1.msra.mxu0 0.0
    %4253 = vmatprep.subr.mxu0 0.0
    %4254 = vmatpush1.msra.mxu0 0.0
    %4255 = vmatprep.subr.mxu0 0.0
    %4256 = vmatpush1.msra.mxu0 0.0
    %4257 = vmatprep.subr.mxu0 0.0
    %4258 = vmatpush1.msra.mxu0 0.0
    %4259 = vmatprep.subr.mxu0 0.0
    %4260 = vmatpush1.msra.mxu0 0.0
    %4261 = vmatprep.subr.mxu0 0.0
    %4262 = vmatpush1.msra.mxu0 0.0
    %4263 = vmatprep.subr.mxu0 0.0
    %4264 = vmatpush1.msra.mxu0 0.0
    %4265 = vmatprep.subr.mxu0 0.0
    %4266 = vmatpush1.msra.mxu0 0.0
    %4267 = vmatprep.mubr.f32.mxu0 0.0
    %4268 = vmatmul.mubr.f32.gmra.mrb[0].mxu0 %v4198
    %v4269 = vpop.f32.mrb[0].mxu0
    %v4270 = vadd.f32 %v4195, %v4269
    %v4271 = vpop.f32.mrb[0].mxu0
    %4272 = vmatprep.mubr.f32.mxu0 0.0
    %4273 = vmatmul.mubr.f32.gmra.mrb[0].mxu0 %v4201
    %v4274 = vpop.f32.mrb[0].mxu0
    %v4275 = vadd.f32 %v4195, %v4274
    %v4276 = vpop.f32.mrb[0].mxu0
    %4277 = vdwg.mxu0
    %v4278 = vmax.f32 %v4270, 0.0
    %v4279 = vmax.f32 %v4275, 0.0
    %s4280 = scalar_lea.vmem %s15, 128
    %v4281 = vld [vmem:[%s4280] sm:$0xff]
    %v4282 = vld [vmem:[%s4280 + $0x8] sm:$0xff]
    %v4283 = vld [vmem:[%s4280 + $0x10] sm:$0xff]
    %v4284 = vld [vmem:[%s4280 + $0x18] sm:$0xff]
    %v4285 = vld [vmem:[%s4280 + $0x20] sm:$0xff]
    %v4286 = vld [vmem:[%s4280 + $0x28] sm:$0xff]
    %v4287 = vld [vmem:[%s4280 + $0x30] sm:$0xff]
    %v4288 = vld [vmem:[%s4280 + $0x38] sm:$0xff]
    %v4289 = vld [vmem:[%s4280 + $0x40] sm:$0xff]
    %v4290 = vld [vmem:[%s4280 + $0x48] sm:$0xff]
    %v4291 = vld [vmem:[%s4280 + $0x50] sm:$0xff]
    %v4292 = vld [vmem:[%s4280 + $0x58] sm:$0xff]
    %v4293 = vld [vmem:[%s4280 + $0x60] sm:$0xff]
    %v4294 = vld [vmem:[%s4280 + $0x68] sm:$0xff]
    %v4295 = vld [vmem:[%s4280 + $0x70] sm:$0xff]
    %v4296 = vld [vmem:[%s4280 + $0x78] sm:$0xff]
    %4297 = vmatprep.subr.mxu0 0.0
    %4298 = vmatpush1.msra.mxu0 %v4281
    %4299 = vmatprep.subr.mxu0 0.0
    %4300 = vmatpush1.msra.mxu0 %v4282
    %4301 = vmatprep.subr.mxu0 0.0
    %4302 = vmatpush1.msra.mxu0 %v4283
    %4303 = vmatprep.subr.mxu0 0.0
    %4304 = vmatpush1.msra.mxu0 %v4284
    %4305 = vmatprep.subr.mxu0 0.0
    %4306 = vmatpush1.msra.mxu0 %v4285
    %4307 = vmatprep.subr.mxu0 0.0
    %4308 = vmatpush1.msra.mxu0 %v4286
    %4309 = vmatprep.subr.mxu0 0.0
    %4310 = vmatpush1.msra.mxu0 %v4287
    %4311 = vmatprep.subr.mxu0 0.0
    %4312 = vmatpush1.msra.mxu0 %v4288
    %4313 = vmatprep.subr.mxu0 0.0
    %4314 = vmatpush1.msra.mxu0 %v4289
    %4315 = vmatprep.subr.mxu0 0.0
    %4316 = vmatpush1.msra.mxu0 %v4290
    %4317 = vmatprep.subr.mxu0 0.0
    %4318 = vmatpush1.msra.mxu0 %v4291
    %4319 = vmatprep.subr.mxu0 0.0
    %4320 = vmatpush1.msra.mxu0 %v4292
    %4321 = vmatprep.subr.mxu0 0.0
    %4322 = vmatpush1.msra.mxu0 %v4293
    %4323 = vmatprep.subr.mxu0 0.0
    %4324 = vmatpush1.msra.mxu0 %v4294
    %4325 = vmatprep.subr.mxu0 0.0
    %4326 = vmatpush1.msra.mxu0 %v4295
    %4327 = vmatprep.subr.mxu0 0.0
    %4328 = vmatpush1.msra.mxu0 %v4296
    %4329 = vmatprep.subr.mxu0 0.0
    %4330 = vmatpush1.msra.mxu0 0.0
    %4331 = vmatprep.subr.mxu0 0.0
    %4332 = vmatpush1.msra.mxu0 0.0
    %4333 = vmatprep.subr.mxu0 0.0
    %4334 = vmatpush1.msra.mxu0 0.0
    %4335 = vmatprep.subr.mxu0 0.0
    %4336 = vmatpush1.msra.mxu0 0.0
    %4337 = vmatprep.subr.mxu0 0.0
    %4338 = vmatpush1.msra.mxu0 0.0
    %4339 = vmatprep.subr.mxu0 0.0
    %4340 = vmatpush1.msra.mxu0 0.0
    %4341 = vmatprep.subr.mxu0 0.0
    %4342 = vmatpush1.msra.mxu0 0.0
    %4343 = vmatprep.subr.mxu0 0.0
    %4344 = vmatpush1.msra.mxu0 0.0
    %4345 = vmatprep.subr.mxu0 0.0
    %4346 = vmatpush1.msra.mxu0 0.0
    %4347 = vmatprep.subr.mxu0 0.0
    %4348 = vmatpush1.msra.mxu0 0.0
    %4349 = vmatprep.subr.mxu0 0.0
    %4350 = vmatpush1.msra.mxu0 0.0
    %4351 = vmatprep.subr.mxu0 0.0
    %4352 = vmatpush1.msra.mxu0 0.0
    %4353 = vmatprep.subr.mxu0 0.0
    %4354 = vmatpush1.msra.mxu0 0.0
    %4355 = vmatprep.subr.mxu0 0.0
    %4356 = vmatpush1.msra.mxu0 0.0
    %4357 = vmatprep.subr.mxu0 0.0
    %4358 = vmatpush1.msra.mxu0 0.0
    %4359 = vmatprep.subr.mxu0 0.0
    %4360 = vmatpush1.msra.mxu0 0.0
    %4361 = vmatprep.mubr.f32.mxu0 0.0
    %4362 = vmatmul.mubr.f32.gmra.mrb[0].mxu0 %v4278
    %v4363 = vpop.f32.mrb[0].mxu0
    %v4364 = vadd.f32 0.0, %v4363
    %v4365 = vpop.f32.mrb[0].mxu0
    %4366 = vmatprep.mubr.f32.mxu0 0.0
    %4367 = vmatmul.mubr.f32.gmra.mrb[0].mxu0 %v4279
    %v4368 = vpop.f32.mrb[0].mxu0
    %v4369 = vadd.f32 0.0, %v4368
    %v4370 = vpop.f32.mrb[0].mxu0
    %4371 = vdwg.mxu0
    %v4372 = vadd.f32 %v4136, %v4364
    %v4373 = vadd.f32 %v4137, %v4369
    %s4374 = scalar_lea.vmem %s16, 1
    %v4375 = vld [vmem:[%s4374] sm:$0x1]
    %v4377 = vlaneseq
    %v4378 = vshrl.u32 %v4377, 7
    %v4379 = vsub.s32 0, %v4378
    %v4380 = vrot.slane %v4375, %v4379
    %v4382 = vadd.f32 %v4372, %v4380
    %v4383 = vadd.f32 %v4373, %v4380
    %v4384 = vld [vmem:[%s19] sm:$0x1]
    %v4385 = vld [vmem:[%s20] sm:$0x1]
    %v4386 = vsel %vm389, %v4382, 0.0
    %4387 = vadd.xlane.f32.xlu0 %v4386
    %v4388 = vpop.xlane.xlu0 %4387
    %v4389 = vsel %vm389, %v4383, 0.0
    %4390 = vadd.xlane.f32.xlu0 %v4389
    %v4391 = vpop.xlane.xlu0 %4390
    %v4392 = vmul.f32 %v4388, %v396
    %v4393 = vmul.f32 %v4391, %v396
    %v4394 = vsub.f32 %v4382, %v4392
    %v4395 = vsub.f32 %v4383, %v4393
    %v4396 = vmul.f32 %v4394, %v4394
    %v4397 = vmul.f32 %v4395, %v4395
    %v4398 = vsel %vm389, %v4396, 0.0
    %4399 = vadd.xlane.f32.xlu0 %v4398
    %v4400 = vpop.xlane.xlu0 %4399
    %v4401 = vsel %vm389, %v4397, 0.0
    %4402 = vadd.xlane.f32.xlu0 %v4401
    %v4403 = vpop.xlane.xlu0 %4402
    %v4404 = vmul.f32 %v4400, %v396
    %v4405 = vmul.f32 %v4403, %v396
    %v4406 = vadd.f32 %v4404, 1e-05
    %v4407 = vadd.f32 %v4405, 1e-05
    %v4408 = vrsqrt.pop %v4406
    %v4409 = vrsqrt.pop %v4407
    %v4410 = vmul.f32 %v4394, %v4408
    %v4411 = vmul.f32 %v4395, %v4409
    %v4413 = vlaneseq
    %v4414 = vshrl.u32 %v4413, 7
    %v4415 = vsub.s32 0, %v4414
    %v4416 = vrot.slane %v4384, %v4415
    %v4418 = vmul.f32 %v4410, %v4416
    %v4419 = vmul.f32 %v4411, %v4416
    %v4421 = vlaneseq
    %v4422 = vshrl.u32 %v4421, 7
    %v4423 = vsub.s32 0, %v4422
    %v4424 = vrot.slane %v4385, %v4423
    %v4426 = vadd.f32 %v4418, %v4424
    %v4427 = vadd.f32 %v4419, %v4424
    %vm4428 = vcmask 254976
    %v4429 = vsel %vm4428, %v4426, -inf
    %v4430 = vrot.slane %v4429, 4
    %v4431 = vmax.f32 %v4429, %v4430
    %v4432 = vrot.slane %v4431, 2
    %v4433 = vmax.f32 %v4431, %v4432
    %v4434 = vrot.slane %v4433, 1
    %v4435 = vmax.f32 %v4433, %v4434
    %v4436 = vsel %vm4428, %v4427, -inf
    %v4437 = vrot.slane %v4436, 4
    %v4438 = vmax.f32 %v4436, %v4437
    %v4439 = vrot.slane %v4438, 2
    %v4440 = vmax.f32 %v4438, %v4439
    %v4441 = vrot.slane %v4440, 1
    %v4442 = vmax.f32 %v4440, %v4441
    %vm4443 = vcmask 257026
    %v4444 = vsel %vm4443, %v4426, -inf
    %v4445 = vrot.slane %v4444, 4
    %v4446 = vmax.f32 %v4444, %v4445
    %v4447 = vrot.slane %v4446, 2
    %v4448 = vmax.f32 %v4446, %v4447
    %v4449 = vrot.slane %v4448, 1
    %v4450 = vmax.f32 %v4448, %v4449
    %v4451 = vsel %vm4443, %v4427, -inf
    %v4452 = vrot.slane %v4451, 4
    %v4453 = vmax.f32 %v4451, %v4452
    %v4454 = vrot.slane %v4453, 2
    %v4455 = vmax.f32 %v4453, %v4454
    %v4456 = vrot.slane %v4455, 1
    %v4457 = vmax.f32 %v4455, %v4456
    %vm4458 = vcmask 259076
    %v4459 = vsel %vm4458, %v4426, -inf
    %v4460 = vrot.slane %v4459, 4
    %v4461 = vmax.f32 %v4459, %v4460
    %v4462 = vrot.slane %v4461, 2
    %v4463 = vmax.f32 %v4461, %v4462
    %v4464 = vrot.slane %v4463, 1
    %v4465 = vmax.f32 %v4463, %v4464
    %v4466 = vsel %vm4458, %v4427, -inf
    %v4467 = vrot.slane %v4466, 4
    %v4468 = vmax.f32 %v4466, %v4467
    %v4469 = vrot.slane %v4468, 2
    %v4470 = vmax.f32 %v4468, %v4469
    %v4471 = vrot.slane %v4470, 1
    %v4472 = vmax.f32 %v4470, %v4471
    %vm4473 = vcmask 261126
    %v4474 = vsel %vm4473, %v4426, -inf
    %v4475 = vrot.slane %v4474, 4
    %v4476 = vmax.f32 %v4474, %v4475
    %v4477 = vrot.slane %v4476, 2
    %v4478 = vmax.f32 %v4476, %v4477
    %v4479 = vrot.slane %v4478, 1
    %v4480 = vmax.f32 %v4478, %v4479
    %v4481 = vsel %vm4473, %v4427, -inf
    %v4482 = vrot.slane %v4481, 4
    %v4483 = vmax.f32 %v4481, %v4482
    %v4484 = vrot.slane %v4483, 2
    %v4485 = vmax.f32 %v4483, %v4484
    %v4486 = vrot.slane %v4485, 1
    %v4487 = vmax.f32 %v4485, %v4486
    %vm4488 = vcmask 1040384
    %v4489 = vsel %vm4488, %v4435, %v4450
    %v4490 = vsel %vm4488, %v4442, %v4457
    %vm4491 = vcmask 1041408
    %v4492 = vsel %vm4491, %v4489, %v4465
    %v4493 = vsel %vm4491, %v4490, %v4472
    %vm4494 = vcmask 1042432
    %v4495 = vsel %vm4494, %v4492, %v4480
    %v4496 = vsel %vm4494, %v4493, %v4487
    %vm4497 = vcmask 257024
    %v4498 = vsel %vm4497, %v4495, -inf
    %v4499 = vrot.slane %v4498, 4
    %v4500 = vmax.f32 %v4498, %v4499
    %v4501 = vrot.slane %v4500, 2
    %v4502 = vmax.f32 %v4500, %v4501
    %v4503 = vrot.slane %v4502, 1
    %v4504 = vmax.f32 %v4502, %v4503
    %v4505 = vsel %vm4497, %v4496, -inf
    %v4506 = vrot.slane %v4505, 4
    %v4507 = vmax.f32 %v4505, %v4506
    %v4508 = vrot.slane %v4507, 2
    %v4509 = vmax.f32 %v4507, %v4508
    %v4510 = vrot.slane %v4509, 1
    %v4511 = vmax.f32 %v4509, %v4510
    %v4514 = vrot.slane %v4495, 7
    %v4515 = vrot.slane %v4496, 7
    %v4518 = vsel %vm4488, %v4504, %v4514
    %v4519 = vsel %vm4488, %v4511, %v4515
    %vm4520 = vcmask 258048
    %4521 = vst.msk [vmem:[%s21] sm:$0x1f] %vm4520, %v4518
    %4522 = vst.msk [vmem:[%s21 + $0x8] sm:$0x1f] %vm4520, %v4519
    // Predicated region
    $region98: #{tpu_custom_call.1} parent=1 // pred_check
      _
    $region99: #{tpu_custom_call.1} parent=1 // pred_check_branch
      %4524 = sbr.rel (0) target = $region101
    $region100: #{tpu_custom_call.1} parent=1 // pred_region
      _
    $region101: #{tpu_custom_call.1} parent=1 // pred_fallthru
      _
    // Predicated region
    $region102: #{tpu_custom_call.1} parent=1 // pred_check
      _
    $region103: #{tpu_custom_call.1} parent=1 // pred_check_branch
      %4526 = sbr.rel (0) target = $region105
    $region104: #{tpu_custom_call.1} parent=1 // pred_region
      _
    $region105: #{tpu_custom_call.1} parent=1 // pred_fallthru
      _
    %4527 = vsyncpa [#allocation3], 1
    %4528 = vsyncpa [#allocation5], 1

</llo_original>
